<compile_context>
chip_gen: v7x
topology: tpu7x:2x2x1
jax: 0.10.0
libtpu: 0.0.40
codegen_flags: <defaults>
</compile_context>

<pallas_src>
import jax
import jax.numpy as jnp
from jax.experimental import pallas as pl
from jax.experimental.pallas import tpu as pltpu

EMBED_DIM = 1024
NUM_CLASSES = 7
PAD_CLASSES = 128          # lane-dense output width (slice to 7 outside)
FRAME = 16
LN_EPS = 1e-5


def classifier_kernel(x_ref, w1_ref, w2_ref, p_ref, out_ref):
    # x_ref: (TB, FRAME, D) tile (f32 or bf16).
    # p_ref: (4, D) packed small params: row0=b1, row1=gamma, row2=beta,
    #        row3[:128]=b2 (padded).
    #
    # Frame SUM first (fc1 is linear; the 1/FRAME scale is folded into w1).
    # Unrolled static middle-axis slices -> plain VPU adds, f32 accumulation
    # regardless of the input dtype.
    acc = x_ref[:, 0, :].astype(jnp.float32)
    for f in range(1, FRAME):
        acc = acc + x_ref[:, f, :].astype(jnp.float32)      # (TB, D) f32

    # fc1 on the MXU: bf16 operands, f32 accumulation. w1_ref is pre-scaled
    # by 1/FRAME, so this equals fc1(mean_f(x)).
    h = jnp.dot(acc.astype(jnp.bfloat16), w1_ref[...],
                preferred_element_type=jnp.float32)          # (TB, D) f32
    h = h + p_ref[0:1, :]                                    # + b1

    # LayerNorm over the embedding dim (eps=1e-5, affine). rsqrt -> EUP slot.
    mu = jnp.mean(h, axis=-1, keepdims=True)
    var = jnp.mean((h - mu) ** 2, axis=-1, keepdims=True)
    y = (h - mu) * jax.lax.rsqrt(var + LN_EPS)
    y = y * p_ref[1:2, :] + p_ref[2:3, :]                    # gamma, beta

    # fc2 into a 128-lane padded output (unmasked lane-dense stores).
    out = jnp.dot(y, w2_ref[...], preferred_element_type=jnp.float32)
    out = out + p_ref[3:4, :PAD_CLASSES]                     # + b2 (padded)
    out_ref[...] = out.astype(out_ref.dtype)                 # (TB, 128)


def _resident_spec(shape):
    """Constant-index (VMEM-resident) operand; single-buffered if supported."""
    index_map = lambda i: (0,) * len(shape)
    try:
        return pl.BlockSpec(shape, index_map, pipeline_mode=pl.Buffered(1))
    except Exception:  # older API without pipeline_mode / Buffered
        return pl.BlockSpec(shape, index_map)


def prepare_params(params):
    """One-time parameter preparation (hoist out of the per-call hot path).

    Returns (w1_prep, w2_pad, small_pack):
      w1_prep:   (D, D) bf16, pre-scaled by 1/FRAME (frame mean folded in)
      w2_pad:    (D, 128) f32, fc2 weight zero-padded to 128 output lanes
      small_pack:(4, D) f32  -> [b1; gamma; beta; b2 padded to 128 lanes]
    """
    w1, b1, gamma, beta, w2, b2 = params
    w1_prep = (w1.astype(jnp.float32) * (1.0 / FRAME)).astype(jnp.bfloat16)
    w2_pad = jnp.zeros((EMBED_DIM, PAD_CLASSES), jnp.float32)
    w2_pad = w2_pad.at[:, :NUM_CLASSES].set(w2.astype(jnp.float32))
    small = jnp.zeros((4, EMBED_DIM), jnp.float32)
    small = small.at[0].set(b1.astype(jnp.float32))
    small = small.at[1].set(gamma.astype(jnp.float32))
    small = small.at[2].set(beta.astype(jnp.float32))
    small = small.at[3, :NUM_CLASSES].set(b2.astype(jnp.float32))
    return w1_prep, w2_pad, small


def classifier_forward(x, prepared, *, block_rows=256, core_parallel=False):
    """x: any shape reshapeable to (-1, 16, 1024), f32 or bf16 (no cast added
    here — pass bf16 only if upstream already produces it). Returns (B, 7)."""
    w1_prep, w2_pad, small_pack = prepared
    x = x.reshape(-1, FRAME, EMBED_DIM)
    B = x.shape[0]
    TB = min(block_rows, B)
    grid = (pl.cdiv(B, TB),)

    # v7x: 2 TensorCores -> explicit core-parallel sharding of the batch grid.
    # Default "parallel" is safe everywhere (single-TC v5e/v6e).
    if core_parallel:
        dim_sem = (pltpu.CORE_PARALLEL,)
    else:
        dim_sem = (pltpu.PARALLEL,)

    out_padded = pl.pallas_call(
        classifier_kernel,
        out_shape=jax.ShapeDtypeStruct((B, PAD_CLASSES), x.dtype),
        grid_spec=pltpu.PrefetchScalarGridSpec(
            num_scalar_prefetch=0,
            grid=grid,
            in_specs=[
                # x: tiled over the batch axis, double-buffered by Pallas.
                pl.BlockSpec((TB, FRAME, EMBED_DIM), lambda i: (i, 0, 0)),
                # Weights / packed params: constant index_map -> VMEM resident,
                # single-buffered.
                _resident_spec((EMBED_DIM, EMBED_DIM)),     # w1 (bf16)
                _resident_spec((EMBED_DIM, PAD_CLASSES)),   # w2 padded
                _resident_spec((4, EMBED_DIM)),             # b1/gamma/beta/b2
            ],
            out_specs=pl.BlockSpec((TB, PAD_CLASSES), lambda i: (i, 0)),
        ),
        compiler_params=pltpu.CompilerParams(
            dimension_semantics=dim_sem,
            # TB=256 with f32 x: 32 MiB x double-buffer + ~2.5 MiB weights +
            # output buffers ≈ 38 MiB -> 48 MiB scoped limit fits v7x's 64 MiB
            # physical VMEM and is far under v5e/v6e's 128 MiB.
            vmem_limit_bytes=48 * 1024 * 1024,
        ),
    )(x, w1_prep, w2_pad, small_pack)
    return out_padded[:, :NUM_CLASSES]


def init_params(key):
    """Deterministic init mimicking PyTorch defaults (uniform +/- 1/sqrt(fan_in),
    LayerNorm gamma=1 / beta=0). Linear weights stored as (in, out)."""
    k1, k2, k3, k4 = jax.random.split(key, 4)
    bound1 = 1.0 / (EMBED_DIM ** 0.5)
    w1 = jax.random.uniform(k1, (EMBED_DIM, EMBED_DIM), jnp.float32,
                            -bound1, bound1)
    b1 = jax.random.uniform(k2, (EMBED_DIM,), jnp.float32, -bound1, bound1)
    gamma = jnp.ones((EMBED_DIM,), jnp.float32)
    beta = jnp.zeros((EMBED_DIM,), jnp.float32)
    w2 = jax.random.uniform(k3, (EMBED_DIM, NUM_CLASSES), jnp.float32,
                            -bound1, bound1)
    b2 = jax.random.uniform(k4, (NUM_CLASSES,), jnp.float32, -bound1, bound1)
    return (w1, b1, gamma, beta, w2, b2)


def reference_forward(x, params):
    """Pure-JAX f32 reference mirroring the PyTorch forward exactly."""
    w1, b1, gamma, beta, w2, b2 = params
    x = x.reshape(-1, FRAME, EMBED_DIM)
    h = jnp.einsum("bfd,de->bfe", x, w1) + b1
    m = h.mean(axis=1)
    mu = m.mean(axis=-1, keepdims=True)
    var = jnp.mean((m - mu) ** 2, axis=-1, keepdims=True)
    y = (m - mu) / jnp.sqrt(var + LN_EPS) * gamma + beta
    return y @ w2 + b2


if __name__ == "__main__":
    key = jax.random.PRNGKey(0)
    kx, kp = jax.random.split(key)

    # Small batch; frame/embed dims are fixed by the module's view(-1,16,1024).
    B = 4
    x = jax.random.normal(kx, (B, FRAME, EMBED_DIM), dtype=jnp.float32)
    params = init_params(kp)
    prepared = prepare_params(params)       # one-time, outside the hot path

    # f32 activation path.
    out = classifier_forward(x, prepared)
    out = jax.block_until_ready(out)
    ref = reference_forward(x, params)
    assert out.shape == (B, NUM_CLASSES)
    max_err = float(jnp.max(jnp.abs(out - ref)))
    assert jnp.allclose(out, ref, atol=2e-2, rtol=2e-2), (
        f"f32-path mismatch vs reference (max abs err {max_err})")

    # bf16 activation path (upstream-provided bf16; kernel accumulates in f32).
    x_bf16 = x.astype(jnp.bfloat16)
    out_bf = classifier_forward(x_bf16, prepared)
    out_bf = jax.block_until_ready(out_bf)
    ref_bf = reference_forward(x_bf16.astype(jnp.float32), params)
    assert out_bf.shape == (B, NUM_CLASSES)
    max_err_bf = float(jnp.max(jnp.abs(out_bf.astype(jnp.float32) - ref_bf)))
    assert jnp.allclose(out_bf.astype(jnp.float32), ref_bf,
                        atol=1e-1, rtol=1e-1), (
        f"bf16-path mismatch vs reference (max abs err {max_err_bf})")

    print("KERNEL_OK")
</pallas_src>

<mosaic_0001>
module attributes {stable_mosaic.version = 11 : i64} {
  func.func @classifier_kernel(%arg0: i32, %arg1: memref<4x16x1024xf32, #tpu.memory_space<vmem>>, %arg2: memref<1024x1024xbf16, #tpu.memory_space<vmem>>, %arg3: memref<1024x128xf32, #tpu.memory_space<vmem>>, %arg4: memref<4x1024xf32, #tpu.memory_space<vmem>>, %arg5: memref<4x128xf32, #tpu.memory_space<vmem>>) attributes {dimension_semantics = [#tpu.dimension_semantics<parallel>], iteration_bounds = array<i64: 1>, scalar_prefetch = 0 : i64, scratch_operands = 0 : i64, tpu.core_type = #tpu.core_type<tc>, window_params = [{transform_indices = @transform_0, window_bounds = array<i64: 4, 16, 1024>}, {pipeline_mode = #tpu.pipeline_mode<synchronous>, transform_indices = @transform_1, window_bounds = array<i64: 1024, 1024>}, {pipeline_mode = #tpu.pipeline_mode<synchronous>, transform_indices = @transform_2, window_bounds = array<i64: 1024, 128>}, {pipeline_mode = #tpu.pipeline_mode<synchronous>, transform_indices = @transform_3, window_bounds = array<i64: 4, 1024>}, {transform_indices = @transform_4, window_bounds = array<i64: 4, 128>}]} {
    %c0 = arith.constant 0 : index
    %c0_0 = arith.constant 0 : index
    %c0_1 = arith.constant 0 : index
    %0 = vector.load %arg1[%c0, %c0_0, %c0_1] : memref<4x16x1024xf32, #tpu.memory_space<vmem>>, vector<4x1x1024xf32>
    %1 = vector.shape_cast %0 : vector<4x1x1024xf32> to vector<4x1024xf32>
    %c0_2 = arith.constant 0 : index
    %c1 = arith.constant 1 : index
    %c0_3 = arith.constant 0 : index
    %2 = vector.load %arg1[%c0_2, %c1, %c0_3] : memref<4x16x1024xf32, #tpu.memory_space<vmem>>, vector<4x1x1024xf32>
    %3 = vector.shape_cast %2 : vector<4x1x1024xf32> to vector<4x1024xf32>
    %4 = arith.addf %1, %3 : vector<4x1024xf32>
    %c0_4 = arith.constant 0 : index
    %c2 = arith.constant 2 : index
    %c0_5 = arith.constant 0 : index
    %5 = vector.load %arg1[%c0_4, %c2, %c0_5] : memref<4x16x1024xf32, #tpu.memory_space<vmem>>, vector<4x1x1024xf32>
    %6 = vector.shape_cast %5 : vector<4x1x1024xf32> to vector<4x1024xf32>
    %7 = arith.addf %4, %6 : vector<4x1024xf32>
    %c0_6 = arith.constant 0 : index
    %c3 = arith.constant 3 : index
    %c0_7 = arith.constant 0 : index
    %8 = vector.load %arg1[%c0_6, %c3, %c0_7] : memref<4x16x1024xf32, #tpu.memory_space<vmem>>, vector<4x1x1024xf32>
    %9 = vector.shape_cast %8 : vector<4x1x1024xf32> to vector<4x1024xf32>
    %10 = arith.addf %7, %9 : vector<4x1024xf32>
    %c0_8 = arith.constant 0 : index
    %c4 = arith.constant 4 : index
    %c0_9 = arith.constant 0 : index
    %11 = vector.load %arg1[%c0_8, %c4, %c0_9] : memref<4x16x1024xf32, #tpu.memory_space<vmem>>, vector<4x1x1024xf32>
    %12 = vector.shape_cast %11 : vector<4x1x1024xf32> to vector<4x1024xf32>
    %13 = arith.addf %10, %12 : vector<4x1024xf32>
    %c0_10 = arith.constant 0 : index
    %c5 = arith.constant 5 : index
    %c0_11 = arith.constant 0 : index
    %14 = vector.load %arg1[%c0_10, %c5, %c0_11] : memref<4x16x1024xf32, #tpu.memory_space<vmem>>, vector<4x1x1024xf32>
    %15 = vector.shape_cast %14 : vector<4x1x1024xf32> to vector<4x1024xf32>
    %16 = arith.addf %13, %15 : vector<4x1024xf32>
    %c0_12 = arith.constant 0 : index
    %c6 = arith.constant 6 : index
    %c0_13 = arith.constant 0 : index
    %17 = vector.load %arg1[%c0_12, %c6, %c0_13] : memref<4x16x1024xf32, #tpu.memory_space<vmem>>, vector<4x1x1024xf32>
    %18 = vector.shape_cast %17 : vector<4x1x1024xf32> to vector<4x1024xf32>
    %19 = arith.addf %16, %18 : vector<4x1024xf32>
    %c0_14 = arith.constant 0 : index
    %c7 = arith.constant 7 : index
    %c0_15 = arith.constant 0 : index
    %20 = vector.load %arg1[%c0_14, %c7, %c0_15] : memref<4x16x1024xf32, #tpu.memory_space<vmem>>, vector<4x1x1024xf32>
    %21 = vector.shape_cast %20 : vector<4x1x1024xf32> to vector<4x1024xf32>
    %22 = arith.addf %19, %21 : vector<4x1024xf32>
    %c0_16 = arith.constant 0 : index
    %c8 = arith.constant 8 : index
    %c0_17 = arith.constant 0 : index
    %23 = vector.load %arg1[%c0_16, %c8, %c0_17] : memref<4x16x1024xf32, #tpu.memory_space<vmem>>, vector<4x1x1024xf32>
    %24 = vector.shape_cast %23 : vector<4x1x1024xf32> to vector<4x1024xf32>
    %25 = arith.addf %22, %24 : vector<4x1024xf32>
    %c0_18 = arith.constant 0 : index
    %c9 = arith.constant 9 : index
    %c0_19 = arith.constant 0 : index
    %26 = vector.load %arg1[%c0_18, %c9, %c0_19] : memref<4x16x1024xf32, #tpu.memory_space<vmem>>, vector<4x1x1024xf32>
    %27 = vector.shape_cast %26 : vector<4x1x1024xf32> to vector<4x1024xf32>
    %28 = arith.addf %25, %27 : vector<4x1024xf32>
    %c0_20 = arith.constant 0 : index
    %c10 = arith.constant 10 : index
    %c0_21 = arith.constant 0 : index
    %29 = vector.load %arg1[%c0_20, %c10, %c0_21] : memref<4x16x1024xf32, #tpu.memory_space<vmem>>, vector<4x1x1024xf32>
    %30 = vector.shape_cast %29 : vector<4x1x1024xf32> to vector<4x1024xf32>
    %31 = arith.addf %28, %30 : vector<4x1024xf32>
    %c0_22 = arith.constant 0 : index
    %c11 = arith.constant 11 : index
    %c0_23 = arith.constant 0 : index
    %32 = vector.load %arg1[%c0_22, %c11, %c0_23] : memref<4x16x1024xf32, #tpu.memory_space<vmem>>, vector<4x1x1024xf32>
    %33 = vector.shape_cast %32 : vector<4x1x1024xf32> to vector<4x1024xf32>
    %34 = arith.addf %31, %33 : vector<4x1024xf32>
    %c0_24 = arith.constant 0 : index
    %c12 = arith.constant 12 : index
    %c0_25 = arith.constant 0 : index
    %35 = vector.load %arg1[%c0_24, %c12, %c0_25] : memref<4x16x1024xf32, #tpu.memory_space<vmem>>, vector<4x1x1024xf32>
    %36 = vector.shape_cast %35 : vector<4x1x1024xf32> to vector<4x1024xf32>
    %37 = arith.addf %34, %36 : vector<4x1024xf32>
    %c0_26 = arith.constant 0 : index
    %c13 = arith.constant 13 : index
    %c0_27 = arith.constant 0 : index
    %38 = vector.load %arg1[%c0_26, %c13, %c0_27] : memref<4x16x1024xf32, #tpu.memory_space<vmem>>, vector<4x1x1024xf32>
    %39 = vector.shape_cast %38 : vector<4x1x1024xf32> to vector<4x1024xf32>
    %40 = arith.addf %37, %39 : vector<4x1024xf32>
    %c0_28 = arith.constant 0 : index
    %c14 = arith.constant 14 : index
    %c0_29 = arith.constant 0 : index
    %41 = vector.load %arg1[%c0_28, %c14, %c0_29] : memref<4x16x1024xf32, #tpu.memory_space<vmem>>, vector<4x1x1024xf32>
    %42 = vector.shape_cast %41 : vector<4x1x1024xf32> to vector<4x1024xf32>
    %43 = arith.addf %40, %42 : vector<4x1024xf32>
    %c0_30 = arith.constant 0 : index
    %c15 = arith.constant 15 : index
    %c0_31 = arith.constant 0 : index
    %44 = vector.load %arg1[%c0_30, %c15, %c0_31] : memref<4x16x1024xf32, #tpu.memory_space<vmem>>, vector<4x1x1024xf32>
    %45 = vector.shape_cast %44 : vector<4x1x1024xf32> to vector<4x1024xf32>
    %46 = arith.addf %43, %45 : vector<4x1024xf32>
    %47 = arith.truncf %46 : vector<4x1024xf32> to vector<4x1024xbf16>
    %c0_32 = arith.constant 0 : index
    %c0_33 = arith.constant 0 : index
    %48 = vector.load %arg2[%c0_32, %c0_33] : memref<1024x1024xbf16, #tpu.memory_space<vmem>>, vector<1024x1024xbf16>
    %cst = arith.constant dense<0.000000e+00> : vector<4x1024xf32>
    %49 = tpu.matmul %47, %48, %cst {dimension_numbers = #tpu.dot_dimension_numbers<[1], [0], [0], [1], [0, 0, 1, 1], [], []>} : vector<4x1024xbf16>, vector<1024x1024xbf16>, vector<4x1024xf32> -> vector<4x1024xf32>
    %c0_34 = arith.constant 0 : index
    %c0_35 = arith.constant 0 : index
    %50 = vector.load %arg4[%c0_34, %c0_35] : memref<4x1024xf32, #tpu.memory_space<vmem>>, vector<1x1024xf32>
    %51 = vector.broadcast %50 : vector<1x1024xf32> to vector<4x1024xf32>
    %52 = arith.addf %49, %51 : vector<4x1024xf32>
    %cst_36 = arith.constant dense<0.000000e+00> : vector<4xf32>
    %53 = vector.multi_reduction <add>, %52, %cst_36 [1] : vector<4x1024xf32> to vector<4xf32>
    %54 = vector.shape_cast %53 : vector<4xf32> to vector<4x1xf32>
    %cst_37 = arith.constant 1.024000e+03 : f32
    %55 = vector.broadcast %cst_37 : f32 to vector<4x1xf32>
    %56 = arith.divf %54, %55 : vector<4x1xf32>
    %57 = vector.broadcast %56 : vector<4x1xf32> to vector<4x1024xf32>
    %58 = arith.subf %52, %57 : vector<4x1024xf32>
    %59 = arith.mulf %58, %58 : vector<4x1024xf32>
    %cst_38 = arith.constant dense<0.000000e+00> : vector<4xf32>
    %60 = vector.multi_reduction <add>, %59, %cst_38 [1] : vector<4x1024xf32> to vector<4xf32>
    %61 = vector.shape_cast %60 : vector<4xf32> to vector<4x1xf32>
    %cst_39 = arith.constant 1.024000e+03 : f32
    %62 = vector.broadcast %cst_39 : f32 to vector<4x1xf32>
    %63 = arith.divf %61, %62 : vector<4x1xf32>
    %64 = vector.broadcast %56 : vector<4x1xf32> to vector<4x1024xf32>
    %65 = arith.subf %52, %64 : vector<4x1024xf32>
    %cst_40 = arith.constant 9.99999974E-6 : f32
    %66 = vector.broadcast %cst_40 : f32 to vector<4x1xf32>
    %67 = arith.addf %63, %66 : vector<4x1xf32>
    %68 = math.rsqrt %67 : vector<4x1xf32>
    %69 = vector.broadcast %68 : vector<4x1xf32> to vector<4x1024xf32>
    %70 = arith.mulf %65, %69 : vector<4x1024xf32>
    %c1_41 = arith.constant 1 : index
    %c0_42 = arith.constant 0 : index
    %71 = vector.load %arg4[%c1_41, %c0_42] : memref<4x1024xf32, #tpu.memory_space<vmem>>, vector<1x1024xf32>
    %72 = vector.broadcast %71 : vector<1x1024xf32> to vector<4x1024xf32>
    %73 = arith.mulf %70, %72 : vector<4x1024xf32>
    %c2_43 = arith.constant 2 : index
    %c0_44 = arith.constant 0 : index
    %74 = vector.load %arg4[%c2_43, %c0_44] : memref<4x1024xf32, #tpu.memory_space<vmem>>, vector<1x1024xf32>
    %75 = vector.broadcast %74 : vector<1x1024xf32> to vector<4x1024xf32>
    %76 = arith.addf %73, %75 : vector<4x1024xf32>
    %c0_45 = arith.constant 0 : index
    %c0_46 = arith.constant 0 : index
    %77 = vector.load %arg3[%c0_45, %c0_46] : memref<1024x128xf32, #tpu.memory_space<vmem>>, vector<1024x128xf32>
    %cst_47 = arith.constant dense<0.000000e+00> : vector<4x128xf32>
    %78 = tpu.matmul %76, %77, %cst_47 {dimension_numbers = #tpu.dot_dimension_numbers<[1], [0], [0], [1], [0, 0, 1, 1], [], []>} : vector<4x1024xf32>, vector<1024x128xf32>, vector<4x128xf32> -> vector<4x128xf32>
    %c3_48 = arith.constant 3 : index
    %c0_49 = arith.constant 0 : index
    %79 = vector.load %arg4[%c3_48, %c0_49] : memref<4x1024xf32, #tpu.memory_space<vmem>>, vector<1x128xf32>
    %80 = vector.broadcast %79 : vector<1x128xf32> to vector<4x128xf32>
    %81 = arith.addf %78, %80 : vector<4x128xf32>
    %c0_50 = arith.constant 0 : index
    %c0_51 = arith.constant 0 : index
    %82 = vector.load %arg5[%c0_50, %c0_51] : memref<4x128xf32, #tpu.memory_space<vmem>>, vector<4x128xf32>
    tpu.vector_store %arg5[%c0_50, %c0_51], %81 {strides = array<i32>} : memref<4x128xf32, #tpu.memory_space<vmem>>, vector<4x128xf32>,
    return
  }
  func.func @transform_0(%arg0: i32) -> (i32, i32, i32) {
    %c0_i32 = arith.constant 0 : i32
    %c0_i32_0 = arith.constant 0 : i32
    %c0_i32_1 = arith.constant 0 : i32
    return %arg0, %c0_i32, %c0_i32_0 : i32, i32, i32
  }
  func.func @transform_1(%arg0: i32) -> (i32, i32) {
    %c0_i32 = arith.constant 0 : i32
    %c0_i32_0 = arith.constant 0 : i32
    %c0_i32_1 = arith.constant 0 : i32
    return %c0_i32, %c0_i32_0 : i32, i32
  }
  func.func @transform_2(%arg0: i32) -> (i32, i32) {
    %c0_i32 = arith.constant 0 : i32
    %c0_i32_0 = arith.constant 0 : i32
    %c0_i32_1 = arith.constant 0 : i32
    return %c0_i32, %c0_i32_0 : i32, i32
  }
  func.func @transform_3(%arg0: i32) -> (i32, i32) {
    %c0_i32 = arith.constant 0 : i32
    %c0_i32_0 = arith.constant 0 : i32
    %c0_i32_1 = arith.constant 0 : i32
    return %c0_i32, %c0_i32_0 : i32, i32
  }
  func.func @transform_4(%arg0: i32) -> (i32, i32) {
    %c0_i32 = arith.constant 0 : i32
    %c0_i32_0 = arith.constant 0 : i32
    return %arg0, %c0_i32 : i32, i32
  }
}

</mosaic_0001>

<llo_original>
// kernel: tpu_custom_call.1
$region0: #{tpu_custom_call.1}
  #allocation0 [shape = 'u32[]', space=smem, size = 0x4, offset = 0x4, fixed_abs, tag = 'smem constant byte address 0x4 - core index']
  #allocation1 [shape = 'u32[144,128]{1,0:T(1,128)}', space=vmem, size = 0x12000, scoped, tag = 'internal scratch']
  %s0 = inlined_call_operand.hbm [shape: f32[4,16,1024], index: 0, kind: input, shape index: {}]
  %s1 = inlined_call_operand.hbm [shape: bf16[1024,1024], index: 1, kind: input, shape index: {}]
  %s2 = inlined_call_operand.hbm [shape: f32[1024,128], index: 2, kind: input, shape index: {}]
  %s3 = inlined_call_operand.hbm [shape: f32[4,1024], index: 3, kind: input, shape index: {}]
  %s4 = inlined_call_operand.hbm [shape: f32[4,128], index: 4, kind: output, shape index: {}]
  %s5 = sld [smem:[#allocation0]]
  $region42: #{tpu_custom_call.1} parent=0
    _
  %s7 = ssub.s32 1, %s5
  %s8 = scalar_select 0, %s7, %s5
  $region1: #{tpu_custom_call.1} parent=0
    #allocation2 [shape = 'u8[262144]{0}', space=vmem, size = 0x40000, scoped, tag = 'input window, operand 0, single buffered']
    #allocation3 [shape = 's32[1]{0}', space=sflag, size = 0x4, scoped, tag = 'scoped memory for tpu_custom_call.1']
    #allocation4 [shape = 's32[1]{0}', space=sflag, size = 0x4, scoped, tag = 'scoped memory for tpu_custom_call.1']
    #allocation5 [shape = 'u8[2097152]{0}', space=vmem, size = 0x200000, scoped, tag = 'input window, operand 1, single buffered']
    #allocation6 [shape = 's32[1]{0}', space=sflag, size = 0x4, scoped, tag = 'scoped memory for tpu_custom_call.1']
    #allocation7 [shape = 'u8[524288]{0}', space=vmem, size = 0x80000, scoped, tag = 'input window, operand 2, single buffered']
    #allocation8 [shape = 'u8[16384]{0}', space=vmem, size = 0x4000, scoped, tag = 'input window, operand 3, single buffered']
    #allocation9 [shape = 's32[1]{0}', space=sflag, size = 0x4, scoped, tag = 'scoped memory for tpu_custom_call.1']
    #allocation10 [shape = 'u8[2048]{0}', space=vmem, size = 0x800, scoped, tag = 'output window, operand 0, single buffered']
    %9 = vsyncpa [#allocation3], 0
    %10 = vsyncpa [#allocation6], 0
    %11 = vsyncpa [#allocation9], 0
    %12 = vsyncpa [#allocation4], 0
    // Predicated region
    $region2: #{tpu_custom_call.1} parent=1 // pred_check
      _
    $region3: #{tpu_custom_call.1} parent=1 // pred_check_branch
      %14 = sbr.rel (0) target = $region5
    $region4: #{tpu_custom_call.1} parent=1 // pred_region
      %s16 = ssub.s32 8192, 8192
      %17 = vsyncadd [#allocation3], %s16
      %s18 = sshll.u32 [#allocation2], 4
      %s19 = int_to_ptr.vmem [resolvable:$true] %s18
      %24 = dma.hbm_to_vmem [thread:$0]  %s0, 8192, %s19, [#allocation3], 1024, 1024, 64
    $region5: #{tpu_custom_call.1} parent=1 // pred_fallthru
      _
    // Predicated region
    $region6: #{tpu_custom_call.1} parent=1 // pred_check
      _
    $region7: #{tpu_custom_call.1} parent=1 // pred_check_branch
      %26 = sbr.rel (0) target = $region9
    $region8: #{tpu_custom_call.1} parent=1 // pred_region
      %s28 = ssub.s32 65536, 65536
      %29 = vsyncadd [#allocation6], %s28
      %s30 = sshll.u32 [#allocation5], 4
      %s31 = int_to_ptr.vmem [resolvable:$true] %s30
      %36 = dma.hbm_to_vmem [thread:$0]  %s1, 65536, %s31, [#allocation6], 512, 512, 32
    $region9: #{tpu_custom_call.1} parent=1 // pred_fallthru
      _
    // Predicated region
    $region10: #{tpu_custom_call.1} parent=1 // pred_check
      _
    $region11: #{tpu_custom_call.1} parent=1 // pred_check_branch
      %38 = sbr.rel (0) target = $region13
    $region12: #{tpu_custom_call.1} parent=1 // pred_region
      %s40 = ssub.s32 16384, 16384
      %41 = vsyncadd [#allocation6], %s40
      %s42 = sshll.u32 [#allocation7], 4
      %s43 = int_to_ptr.vmem [resolvable:$true] %s42
      %48 = dma.hbm_to_vmem [thread:$0]  %s2, 16384, %s43, [#allocation6], 128, 128, 8
    $region13: #{tpu_custom_call.1} parent=1 // pred_fallthru
      _
    // Predicated region
    $region14: #{tpu_custom_call.1} parent=1 // pred_check
      _
    $region15: #{tpu_custom_call.1} parent=1 // pred_check_branch
      %50 = sbr.rel (0) target = $region17
    $region16: #{tpu_custom_call.1} parent=1 // pred_region
      %s52 = ssub.s32 512, 512
      %53 = vsyncadd [#allocation9], %s52
      %s55 = sshll.u32 [#allocation8], 4
      %s56 = int_to_ptr.vmem [resolvable:$true] %s55
      %58 = dma.hbm_to_vmem [thread:$0]  %s3, 512, %s56, [#allocation9]
    $region17: #{tpu_custom_call.1} parent=1 // pred_fallthru
      _
    // Predicated region
    $region18: #{tpu_custom_call.1} parent=1 // pred_check
      _
    $region19: #{tpu_custom_call.1} parent=1 // pred_check_branch
      %60 = sbr.rel (0) target = $region21
    $region20: #{tpu_custom_call.1} parent=1 // pred_region
      %61 = dma.done [#allocation3], 8192
    $region21: #{tpu_custom_call.1} parent=1 // pred_fallthru
      _
    // Predicated region
    $region22: #{tpu_custom_call.1} parent=1 // pred_check
      _
    $region23: #{tpu_custom_call.1} parent=1 // pred_check_branch
      %63 = sbr.rel (0) target = $region25
    $region24: #{tpu_custom_call.1} parent=1 // pred_region
      %64 = dma.done [#allocation6], 65536
    $region25: #{tpu_custom_call.1} parent=1 // pred_fallthru
      _
    // Predicated region
    $region26: #{tpu_custom_call.1} parent=1 // pred_check
      _
    $region27: #{tpu_custom_call.1} parent=1 // pred_check_branch
      %66 = sbr.rel (0) target = $region29
    $region28: #{tpu_custom_call.1} parent=1 // pred_region
      %67 = dma.done [#allocation6], 16384
    $region29: #{tpu_custom_call.1} parent=1 // pred_fallthru
      _
    // Predicated region
    $region30: #{tpu_custom_call.1} parent=1 // pred_check
      _
    $region31: #{tpu_custom_call.1} parent=1 // pred_check_branch
      %69 = sbr.rel (0) target = $region33
    $region32: #{tpu_custom_call.1} parent=1 // pred_region
      %70 = dma.done [#allocation9], 512
    $region33: #{tpu_custom_call.1} parent=1 // pred_fallthru
      _
    %v71 = vld [vmem:[#allocation2] ss:$8 sm:$0xf]
    %v72 = vld [vmem:[#allocation2] ss:$8 sm:$0xf0]
    %v73 = vor.u32 %v71, %v72
    %s74 = scalar_lea.vmem [#allocation2], 128
    %v75 = vld [vmem:[%s74] ss:$8 sm:$0xf]
    %v76 = vld [vmem:[%s74] ss:$8 sm:$0xf0]
    %v77 = vor.u32 %v75, %v76
    %s78 = scalar_lea.vmem [#allocation2], 256
    %v79 = vld [vmem:[%s78] ss:$8 sm:$0xf]
    %v80 = vld [vmem:[%s78] ss:$8 sm:$0xf0]
    %v81 = vor.u32 %v79, %v80
    %s82 = scalar_lea.vmem [#allocation2], 384
    %v83 = vld [vmem:[%s82] ss:$8 sm:$0xf]
    %v84 = vld [vmem:[%s82] ss:$8 sm:$0xf0]
    %v85 = vor.u32 %v83, %v84
    %s86 = scalar_lea.vmem [#allocation2], 1
    %v87 = vld [vmem:[%s86] ss:$8 sm:$0xf]
    %v88 = vld [vmem:[%s86] ss:$8 sm:$0xf0]
    %v89 = vor.u32 %v87, %v88
    %s90 = scalar_lea.vmem [#allocation2], 129
    %v91 = vld [vmem:[%s90] ss:$8 sm:$0xf]
    %v92 = vld [vmem:[%s90] ss:$8 sm:$0xf0]
    %v93 = vor.u32 %v91, %v92
    %s94 = scalar_lea.vmem [#allocation2], 257
    %v95 = vld [vmem:[%s94] ss:$8 sm:$0xf]
    %v96 = vld [vmem:[%s94] ss:$8 sm:$0xf0]
    %v97 = vor.u32 %v95, %v96
    %s98 = scalar_lea.vmem [#allocation2], 385
    %v99 = vld [vmem:[%s98] ss:$8 sm:$0xf]
    %v100 = vld [vmem:[%s98] ss:$8 sm:$0xf0]
    %v101 = vor.u32 %v99, %v100
    %v102 = vadd.f32 %v73, %v89
    %v103 = vadd.f32 %v77, %v93
    %v104 = vadd.f32 %v81, %v97
    %v105 = vadd.f32 %v85, %v101
    %s106 = scalar_lea.vmem [#allocation2], 2
    %v107 = vld [vmem:[%s106] ss:$8 sm:$0xf]
    %v108 = vld [vmem:[%s106] ss:$8 sm:$0xf0]
    %v109 = vor.u32 %v107, %v108
    %s110 = scalar_lea.vmem [#allocation2], 130
    %v111 = vld [vmem:[%s110] ss:$8 sm:$0xf]
    %v112 = vld [vmem:[%s110] ss:$8 sm:$0xf0]
    %v113 = vor.u32 %v111, %v112
    %s114 = scalar_lea.vmem [#allocation2], 258
    %v115 = vld [vmem:[%s114] ss:$8 sm:$0xf]
    %v116 = vld [vmem:[%s114] ss:$8 sm:$0xf0]
    %v117 = vor.u32 %v115, %v116
    %s118 = scalar_lea.vmem [#allocation2], 386
    %v119 = vld [vmem:[%s118] ss:$8 sm:$0xf]
    %v120 = vld [vmem:[%s118] ss:$8 sm:$0xf0]
    %v121 = vor.u32 %v119, %v120
    %v122 = vadd.f32 %v102, %v109
    %v123 = vadd.f32 %v103, %v113
    %v124 = vadd.f32 %v104, %v117
    %v125 = vadd.f32 %v105, %v121
    %s126 = scalar_lea.vmem [#allocation2], 3
    %v127 = vld [vmem:[%s126] ss:$8 sm:$0xf]
    %v128 = vld [vmem:[%s126] ss:$8 sm:$0xf0]
    %v129 = vor.u32 %v127, %v128
    %s130 = scalar_lea.vmem [#allocation2], 131
    %v131 = vld [vmem:[%s130] ss:$8 sm:$0xf]
    %v132 = vld [vmem:[%s130] ss:$8 sm:$0xf0]
    %v133 = vor.u32 %v131, %v132
    %s134 = scalar_lea.vmem [#allocation2], 259
    %v135 = vld [vmem:[%s134] ss:$8 sm:$0xf]
    %v136 = vld [vmem:[%s134] ss:$8 sm:$0xf0]
    %v137 = vor.u32 %v135, %v136
    %s138 = scalar_lea.vmem [#allocation2], 387
    %v139 = vld [vmem:[%s138] ss:$8 sm:$0xf]
    %v140 = vld [vmem:[%s138] ss:$8 sm:$0xf0]
    %v141 = vor.u32 %v139, %v140
    %v142 = vadd.f32 %v122, %v129
    %v143 = vadd.f32 %v123, %v133
    %v144 = vadd.f32 %v124, %v137
    %v145 = vadd.f32 %v125, %v141
    %s146 = scalar_lea.vmem [#allocation2], 4
    %v147 = vld [vmem:[%s146] ss:$8 sm:$0xf]
    %v148 = vld [vmem:[%s146] ss:$8 sm:$0xf0]
    %v149 = vor.u32 %v147, %v148
    %s150 = scalar_lea.vmem [#allocation2], 132
    %v151 = vld [vmem:[%s150] ss:$8 sm:$0xf]
    %v152 = vld [vmem:[%s150] ss:$8 sm:$0xf0]
    %v153 = vor.u32 %v151, %v152
    %s154 = scalar_lea.vmem [#allocation2], 260
    %v155 = vld [vmem:[%s154] ss:$8 sm:$0xf]
    %v156 = vld [vmem:[%s154] ss:$8 sm:$0xf0]
    %v157 = vor.u32 %v155, %v156
    %s158 = scalar_lea.vmem [#allocation2], 388
    %v159 = vld [vmem:[%s158] ss:$8 sm:$0xf]
    %v160 = vld [vmem:[%s158] ss:$8 sm:$0xf0]
    %v161 = vor.u32 %v159, %v160
    %v162 = vadd.f32 %v142, %v149
    %v163 = vadd.f32 %v143, %v153
    %v164 = vadd.f32 %v144, %v157
    %v165 = vadd.f32 %v145, %v161
    %s166 = scalar_lea.vmem [#allocation2], 5
    %v167 = vld [vmem:[%s166] ss:$8 sm:$0xf]
    %v168 = vld [vmem:[%s166] ss:$8 sm:$0xf0]
    %v169 = vor.u32 %v167, %v168
    %s170 = scalar_lea.vmem [#allocation2], 133
    %v171 = vld [vmem:[%s170] ss:$8 sm:$0xf]
    %v172 = vld [vmem:[%s170] ss:$8 sm:$0xf0]
    %v173 = vor.u32 %v171, %v172
    %s174 = scalar_lea.vmem [#allocation2], 261
    %v175 = vld [vmem:[%s174] ss:$8 sm:$0xf]
    %v176 = vld [vmem:[%s174] ss:$8 sm:$0xf0]
    %v177 = vor.u32 %v175, %v176
    %s178 = scalar_lea.vmem [#allocation2], 389
    %v179 = vld [vmem:[%s178] ss:$8 sm:$0xf]
    %v180 = vld [vmem:[%s178] ss:$8 sm:$0xf0]
    %v181 = vor.u32 %v179, %v180
    %v182 = vadd.f32 %v162, %v169
    %v183 = vadd.f32 %v163, %v173
    %v184 = vadd.f32 %v164, %v177
    %v185 = vadd.f32 %v165, %v181
    %s186 = scalar_lea.vmem [#allocation2], 6
    %v187 = vld [vmem:[%s186] ss:$8 sm:$0xf]
    %v188 = vld [vmem:[%s186] ss:$8 sm:$0xf0]
    %v189 = vor.u32 %v187, %v188
    %s190 = scalar_lea.vmem [#allocation2], 134
    %v191 = vld [vmem:[%s190] ss:$8 sm:$0xf]
    %v192 = vld [vmem:[%s190] ss:$8 sm:$0xf0]
    %v193 = vor.u32 %v191, %v192
    %s194 = scalar_lea.vmem [#allocation2], 262
    %v195 = vld [vmem:[%s194] ss:$8 sm:$0xf]
    %v196 = vld [vmem:[%s194] ss:$8 sm:$0xf0]
    %v197 = vor.u32 %v195, %v196
    %s198 = scalar_lea.vmem [#allocation2], 390
    %v199 = vld [vmem:[%s198] ss:$8 sm:$0xf]
    %v200 = vld [vmem:[%s198] ss:$8 sm:$0xf0]
    %v201 = vor.u32 %v199, %v200
    %v202 = vadd.f32 %v182, %v189
    %v203 = vadd.f32 %v183, %v193
    %v204 = vadd.f32 %v184, %v197
    %v205 = vadd.f32 %v185, %v201
    %s206 = scalar_lea.vmem [#allocation2], 7
    %v207 = vld [vmem:[%s206] ss:$8 sm:$0xf]
    %v208 = vld [vmem:[%s206] ss:$8 sm:$0xf0]
    %v209 = vor.u32 %v207, %v208
    %s210 = scalar_lea.vmem [#allocation2], 135
    %v211 = vld [vmem:[%s210] ss:$8 sm:$0xf]
    %v212 = vld [vmem:[%s210] ss:$8 sm:$0xf0]
    %v213 = vor.u32 %v211, %v212
    %s214 = scalar_lea.vmem [#allocation2], 263
    %v215 = vld [vmem:[%s214] ss:$8 sm:$0xf]
    %v216 = vld [vmem:[%s214] ss:$8 sm:$0xf0]
    %v217 = vor.u32 %v215, %v216
    %s218 = scalar_lea.vmem [#allocation2], 391
    %v219 = vld [vmem:[%s218] ss:$8 sm:$0xf]
    %v220 = vld [vmem:[%s218] ss:$8 sm:$0xf0]
    %v221 = vor.u32 %v219, %v220
    %v222 = vadd.f32 %v202, %v209
    %v223 = vadd.f32 %v203, %v213
    %v224 = vadd.f32 %v204, %v217
    %v225 = vadd.f32 %v205, %v221
    %s226 = scalar_lea.vmem [#allocation2], 64
    %v227 = vld [vmem:[%s226] ss:$8 sm:$0xf]
    %v228 = vld [vmem:[%s226] ss:$8 sm:$0xf0]
    %v229 = vor.u32 %v227, %v228
    %s230 = scalar_lea.vmem [#allocation2], 192
    %v231 = vld [vmem:[%s230] ss:$8 sm:$0xf]
    %v232 = vld [vmem:[%s230] ss:$8 sm:$0xf0]
    %v233 = vor.u32 %v231, %v232
    %s234 = scalar_lea.vmem [#allocation2], 320
    %v235 = vld [vmem:[%s234] ss:$8 sm:$0xf]
    %v236 = vld [vmem:[%s234] ss:$8 sm:$0xf0]
    %v237 = vor.u32 %v235, %v236
    %s238 = scalar_lea.vmem [#allocation2], 448
    %v239 = vld [vmem:[%s238] ss:$8 sm:$0xf]
    %v240 = vld [vmem:[%s238] ss:$8 sm:$0xf0]
    %v241 = vor.u32 %v239, %v240
    %v242 = vadd.f32 %v222, %v229
    %v243 = vadd.f32 %v223, %v233
    %v244 = vadd.f32 %v224, %v237
    %v245 = vadd.f32 %v225, %v241
    %s246 = scalar_lea.vmem [#allocation2], 65
    %v247 = vld [vmem:[%s246] ss:$8 sm:$0xf]
    %v248 = vld [vmem:[%s246] ss:$8 sm:$0xf0]
    %v249 = vor.u32 %v247, %v248
    %s250 = scalar_lea.vmem [#allocation2], 193
    %v251 = vld [vmem:[%s250] ss:$8 sm:$0xf]
    %v252 = vld [vmem:[%s250] ss:$8 sm:$0xf0]
    %v253 = vor.u32 %v251, %v252
    %s254 = scalar_lea.vmem [#allocation2], 321
    %v255 = vld [vmem:[%s254] ss:$8 sm:$0xf]
    %v256 = vld [vmem:[%s254] ss:$8 sm:$0xf0]
    %v257 = vor.u32 %v255, %v256
    %s258 = scalar_lea.vmem [#allocation2], 449
    %v259 = vld [vmem:[%s258] ss:$8 sm:$0xf]
    %v260 = vld [vmem:[%s258] ss:$8 sm:$0xf0]
    %v261 = vor.u32 %v259, %v260
    %v262 = vadd.f32 %v242, %v249
    %v263 = vadd.f32 %v243, %v253
    %v264 = vadd.f32 %v244, %v257
    %v265 = vadd.f32 %v245, %v261
    %s266 = scalar_lea.vmem [#allocation2], 66
    %v267 = vld [vmem:[%s266] ss:$8 sm:$0xf]
    %v268 = vld [vmem:[%s266] ss:$8 sm:$0xf0]
    %v269 = vor.u32 %v267, %v268
    %s270 = scalar_lea.vmem [#allocation2], 194
    %v271 = vld [vmem:[%s270] ss:$8 sm:$0xf]
    %v272 = vld [vmem:[%s270] ss:$8 sm:$0xf0]
    %v273 = vor.u32 %v271, %v272
    %s274 = scalar_lea.vmem [#allocation2], 322
    %v275 = vld [vmem:[%s274] ss:$8 sm:$0xf]
    %v276 = vld [vmem:[%s274] ss:$8 sm:$0xf0]
    %v277 = vor.u32 %v275, %v276
    %s278 = scalar_lea.vmem [#allocation2], 450
    %v279 = vld [vmem:[%s278] ss:$8 sm:$0xf]
    %v280 = vld [vmem:[%s278] ss:$8 sm:$0xf0]
    %v281 = vor.u32 %v279, %v280
    %v282 = vadd.f32 %v262, %v269
    %v283 = vadd.f32 %v263, %v273
    %v284 = vadd.f32 %v264, %v277
    %v285 = vadd.f32 %v265, %v281
    %s286 = scalar_lea.vmem [#allocation2], 67
    %v287 = vld [vmem:[%s286] ss:$8 sm:$0xf]
    %v288 = vld [vmem:[%s286] ss:$8 sm:$0xf0]
    %v289 = vor.u32 %v287, %v288
    %s290 = scalar_lea.vmem [#allocation2], 195
    %v291 = vld [vmem:[%s290] ss:$8 sm:$0xf]
    %v292 = vld [vmem:[%s290] ss:$8 sm:$0xf0]
    %v293 = vor.u32 %v291, %v292
    %s294 = scalar_lea.vmem [#allocation2], 323
    %v295 = vld [vmem:[%s294] ss:$8 sm:$0xf]
    %v296 = vld [vmem:[%s294] ss:$8 sm:$0xf0]
    %v297 = vor.u32 %v295, %v296
    %s298 = scalar_lea.vmem [#allocation2], 451
    %v299 = vld [vmem:[%s298] ss:$8 sm:$0xf]
    %v300 = vld [vmem:[%s298] ss:$8 sm:$0xf0]
    %v301 = vor.u32 %v299, %v300
    %v302 = vadd.f32 %v282, %v289
    %v303 = vadd.f32 %v283, %v293
    %v304 = vadd.f32 %v284, %v297
    %v305 = vadd.f32 %v285, %v301
    %s306 = scalar_lea.vmem [#allocation2], 68
    %v307 = vld [vmem:[%s306] ss:$8 sm:$0xf]
    %v308 = vld [vmem:[%s306] ss:$8 sm:$0xf0]
    %v309 = vor.u32 %v307, %v308
    %s310 = scalar_lea.vmem [#allocation2], 196
    %v311 = vld [vmem:[%s310] ss:$8 sm:$0xf]
    %v312 = vld [vmem:[%s310] ss:$8 sm:$0xf0]
    %v313 = vor.u32 %v311, %v312
    %s314 = scalar_lea.vmem [#allocation2], 324
    %v315 = vld [vmem:[%s314] ss:$8 sm:$0xf]
    %v316 = vld [vmem:[%s314] ss:$8 sm:$0xf0]
    %v317 = vor.u32 %v315, %v316
    %s318 = scalar_lea.vmem [#allocation2], 452
    %v319 = vld [vmem:[%s318] ss:$8 sm:$0xf]
    %v320 = vld [vmem:[%s318] ss:$8 sm:$0xf0]
    %v321 = vor.u32 %v319, %v320
    %v322 = vadd.f32 %v302, %v309
    %v323 = vadd.f32 %v303, %v313
    %v324 = vadd.f32 %v304, %v317
    %v325 = vadd.f32 %v305, %v321
    %s326 = scalar_lea.vmem [#allocation2], 69
    %v327 = vld [vmem:[%s326] ss:$8 sm:$0xf]
    %v328 = vld [vmem:[%s326] ss:$8 sm:$0xf0]
    %v329 = vor.u32 %v327, %v328
    %s330 = scalar_lea.vmem [#allocation2], 197
    %v331 = vld [vmem:[%s330] ss:$8 sm:$0xf]
    %v332 = vld [vmem:[%s330] ss:$8 sm:$0xf0]
    %v333 = vor.u32 %v331, %v332
    %s334 = scalar_lea.vmem [#allocation2], 325
    %v335 = vld [vmem:[%s334] ss:$8 sm:$0xf]
    %v336 = vld [vmem:[%s334] ss:$8 sm:$0xf0]
    %v337 = vor.u32 %v335, %v336
    %s338 = scalar_lea.vmem [#allocation2], 453
    %v339 = vld [vmem:[%s338] ss:$8 sm:$0xf]
    %v340 = vld [vmem:[%s338] ss:$8 sm:$0xf0]
    %v341 = vor.u32 %v339, %v340
    %v342 = vadd.f32 %v322, %v329
    %v343 = vadd.f32 %v323, %v333
    %v344 = vadd.f32 %v324, %v337
    %v345 = vadd.f32 %v325, %v341
    %s346 = scalar_lea.vmem [#allocation2], 70
    %v347 = vld [vmem:[%s346] ss:$8 sm:$0xf]
    %v348 = vld [vmem:[%s346] ss:$8 sm:$0xf0]
    %v349 = vor.u32 %v347, %v348
    %s350 = scalar_lea.vmem [#allocation2], 198
    %v351 = vld [vmem:[%s350] ss:$8 sm:$0xf]
    %v352 = vld [vmem:[%s350] ss:$8 sm:$0xf0]
    %v353 = vor.u32 %v351, %v352
    %s354 = scalar_lea.vmem [#allocation2], 326
    %v355 = vld [vmem:[%s354] ss:$8 sm:$0xf]
    %v356 = vld [vmem:[%s354] ss:$8 sm:$0xf0]
    %v357 = vor.u32 %v355, %v356
    %s358 = scalar_lea.vmem [#allocation2], 454
    %v359 = vld [vmem:[%s358] ss:$8 sm:$0xf]
    %v360 = vld [vmem:[%s358] ss:$8 sm:$0xf0]
    %v361 = vor.u32 %v359, %v360
    %v362 = vadd.f32 %v342, %v349
    %v363 = vadd.f32 %v343, %v353
    %v364 = vadd.f32 %v344, %v357
    %v365 = vadd.f32 %v345, %v361
    %s366 = scalar_lea.vmem [#allocation2], 71
    %v367 = vld [vmem:[%s366] ss:$8 sm:$0xf]
    %v368 = vld [vmem:[%s366] ss:$8 sm:$0xf0]
    %v369 = vor.u32 %v367, %v368
    %s370 = scalar_lea.vmem [#allocation2], 199
    %v371 = vld [vmem:[%s370] ss:$8 sm:$0xf]
    %v372 = vld [vmem:[%s370] ss:$8 sm:$0xf0]
    %v373 = vor.u32 %v371, %v372
    %s374 = scalar_lea.vmem [#allocation2], 327
    %v375 = vld [vmem:[%s374] ss:$8 sm:$0xf]
    %v376 = vld [vmem:[%s374] ss:$8 sm:$0xf0]
    %v377 = vor.u32 %v375, %v376
    %s378 = scalar_lea.vmem [#allocation2], 455
    %v379 = vld [vmem:[%s378] ss:$8 sm:$0xf]
    %v380 = vld [vmem:[%s378] ss:$8 sm:$0xf0]
    %v381 = vor.u32 %v379, %v380
    %v382 = vadd.f32 %v362, %v369
    %v383 = vadd.f32 %v363, %v373
    %v384 = vadd.f32 %v364, %v377
    %v385 = vadd.f32 %v365, %v381
    %v390 = vlaneseq
    %v391 = vshrl.u32 %v390, 7
    %v392 = vsub.s32 0, %v391
    %v393 = vrot.slane %v382, %v392
    %v394 = vlaneseq
    %v395 = vshrl.u32 %v394, 7
    %v396 = vsub.s32 1, %v395
    %v397 = vrot.slane %v382, %v396
    %v398 = vlaneseq
    %v399 = vshrl.u32 %v398, 7
    %v400 = vsub.s32 2, %v399
    %v401 = vrot.slane %v382, %v400
    %v402 = vlaneseq
    %v403 = vshrl.u32 %v402, 7
    %v404 = vsub.s32 3, %v403
    %v405 = vrot.slane %v382, %v404
    %v406 = vlaneseq
    %v407 = vshrl.u32 %v406, 7
    %v408 = vsub.s32 4, %v407
    %v409 = vrot.slane %v382, %v408
    %v410 = vlaneseq
    %v411 = vshrl.u32 %v410, 7
    %v412 = vsub.s32 5, %v411
    %v413 = vrot.slane %v382, %v412
    %v414 = vlaneseq
    %v415 = vshrl.u32 %v414, 7
    %v416 = vsub.s32 6, %v415
    %v417 = vrot.slane %v382, %v416
    %v418 = vlaneseq
    %v419 = vshrl.u32 %v418, 7
    %v420 = vsub.s32 7, %v419
    %v421 = vrot.slane %v382, %v420
    %v422 = vlaneseq
    %v423 = vshrl.u32 %v422, 7
    %v424 = vsub.s32 0, %v423
    %v425 = vrot.slane %v383, %v424
    %v426 = vlaneseq
    %v427 = vshrl.u32 %v426, 7
    %v428 = vsub.s32 1, %v427
    %v429 = vrot.slane %v383, %v428
    %v430 = vlaneseq
    %v431 = vshrl.u32 %v430, 7
    %v432 = vsub.s32 2, %v431
    %v433 = vrot.slane %v383, %v432
    %v434 = vlaneseq
    %v435 = vshrl.u32 %v434, 7
    %v436 = vsub.s32 3, %v435
    %v437 = vrot.slane %v383, %v436
    %v438 = vlaneseq
    %v439 = vshrl.u32 %v438, 7
    %v440 = vsub.s32 4, %v439
    %v441 = vrot.slane %v383, %v440
    %v442 = vlaneseq
    %v443 = vshrl.u32 %v442, 7
    %v444 = vsub.s32 5, %v443
    %v445 = vrot.slane %v383, %v444
    %v446 = vlaneseq
    %v447 = vshrl.u32 %v446, 7
    %v448 = vsub.s32 6, %v447
    %v449 = vrot.slane %v383, %v448
    %v450 = vlaneseq
    %v451 = vshrl.u32 %v450, 7
    %v452 = vsub.s32 7, %v451
    %v453 = vrot.slane %v383, %v452
    %v454 = vlaneseq
    %v455 = vshrl.u32 %v454, 7
    %v456 = vsub.s32 0, %v455
    %v457 = vrot.slane %v384, %v456
    %v458 = vlaneseq
    %v459 = vshrl.u32 %v458, 7
    %v460 = vsub.s32 1, %v459
    %v461 = vrot.slane %v384, %v460
    %v462 = vlaneseq
    %v463 = vshrl.u32 %v462, 7
    %v464 = vsub.s32 2, %v463
    %v465 = vrot.slane %v384, %v464
    %v466 = vlaneseq
    %v467 = vshrl.u32 %v466, 7
    %v468 = vsub.s32 3, %v467
    %v469 = vrot.slane %v384, %v468
    %v470 = vlaneseq
    %v471 = vshrl.u32 %v470, 7
    %v472 = vsub.s32 4, %v471
    %v473 = vrot.slane %v384, %v472
    %v474 = vlaneseq
    %v475 = vshrl.u32 %v474, 7
    %v476 = vsub.s32 5, %v475
    %v477 = vrot.slane %v384, %v476
    %v478 = vlaneseq
    %v479 = vshrl.u32 %v478, 7
    %v480 = vsub.s32 6, %v479
    %v481 = vrot.slane %v384, %v480
    %v482 = vlaneseq
    %v483 = vshrl.u32 %v482, 7
    %v484 = vsub.s32 7, %v483
    %v485 = vrot.slane %v384, %v484
    %v486 = vlaneseq
    %v487 = vshrl.u32 %v486, 7
    %v488 = vsub.s32 0, %v487
    %v489 = vrot.slane %v385, %v488
    %v490 = vlaneseq
    %v491 = vshrl.u32 %v490, 7
    %v492 = vsub.s32 1, %v491
    %v493 = vrot.slane %v385, %v492
    %v494 = vlaneseq
    %v495 = vshrl.u32 %v494, 7
    %v496 = vsub.s32 2, %v495
    %v497 = vrot.slane %v385, %v496
    %v498 = vlaneseq
    %v499 = vshrl.u32 %v498, 7
    %v500 = vsub.s32 3, %v499
    %v501 = vrot.slane %v385, %v500
    %v502 = vlaneseq
    %v503 = vshrl.u32 %v502, 7
    %v504 = vsub.s32 4, %v503
    %v505 = vrot.slane %v385, %v504
    %v506 = vlaneseq
    %v507 = vshrl.u32 %v506, 7
    %v508 = vsub.s32 5, %v507
    %v509 = vrot.slane %v385, %v508
    %v510 = vlaneseq
    %v511 = vshrl.u32 %v510, 7
    %v512 = vsub.s32 6, %v511
    %v513 = vrot.slane %v385, %v512
    %v514 = vlaneseq
    %v515 = vshrl.u32 %v514, 7
    %v516 = vsub.s32 7, %v515
    %v517 = vrot.slane %v385, %v516
    %v550 = vpack.c.bf16 %v393, %v393
    %v551 = vpack.c.bf16 %v397, %v397
    %v552 = vpack.c.bf16 %v401, %v401
    %v553 = vpack.c.bf16 %v405, %v405
    %v554 = vpack.c.bf16 %v409, %v409
    %v555 = vpack.c.bf16 %v413, %v413
    %v556 = vpack.c.bf16 %v417, %v417
    %v557 = vpack.c.bf16 %v421, %v421
    %v558 = vpack.c.bf16 %v425, %v425
    %v559 = vpack.c.bf16 %v429, %v429
    %v560 = vpack.c.bf16 %v433, %v433
    %v561 = vpack.c.bf16 %v437, %v437
    %v562 = vpack.c.bf16 %v441, %v441
    %v563 = vpack.c.bf16 %v445, %v445
    %v564 = vpack.c.bf16 %v449, %v449
    %v565 = vpack.c.bf16 %v453, %v453
    %v566 = vpack.c.bf16 %v457, %v457
    %v567 = vpack.c.bf16 %v461, %v461
    %v568 = vpack.c.bf16 %v465, %v465
    %v569 = vpack.c.bf16 %v469, %v469
    %v570 = vpack.c.bf16 %v473, %v473
    %v571 = vpack.c.bf16 %v477, %v477
    %v572 = vpack.c.bf16 %v481, %v481
    %v573 = vpack.c.bf16 %v485, %v485
    %v574 = vpack.c.bf16 %v489, %v489
    %v575 = vpack.c.bf16 %v493, %v493
    %v576 = vpack.c.bf16 %v497, %v497
    %v577 = vpack.c.bf16 %v501, %v501
    %v578 = vpack.c.bf16 %v505, %v505
    %v579 = vpack.c.bf16 %v509, %v509
    %v580 = vpack.c.bf16 %v513, %v513
    %v581 = vpack.c.bf16 %v517, %v517
    %v582 = vld [vmem:[#allocation5] sm:$0xff]
    %v583 = vld [vmem:[#allocation5 + $0x8] sm:$0xff]
    %v584 = vld [vmem:[#allocation5 + $0x10] sm:$0xff]
    %v585 = vld [vmem:[#allocation5 + $0x18] sm:$0xff]
    %v586 = vld [vmem:[#allocation5 + $0x20] sm:$0xff]
    %v587 = vld [vmem:[#allocation5 + $0x28] sm:$0xff]
    %v588 = vld [vmem:[#allocation5 + $0x30] sm:$0xff]
    %v589 = vld [vmem:[#allocation5 + $0x38] sm:$0xff]
    %v590 = vld [vmem:[#allocation5 + $0x40] sm:$0xff]
    %v591 = vld [vmem:[#allocation5 + $0x48] sm:$0xff]
    %v592 = vld [vmem:[#allocation5 + $0x50] sm:$0xff]
    %v593 = vld [vmem:[#allocation5 + $0x58] sm:$0xff]
    %v594 = vld [vmem:[#allocation5 + $0x60] sm:$0xff]
    %v595 = vld [vmem:[#allocation5 + $0x68] sm:$0xff]
    %v596 = vld [vmem:[#allocation5 + $0x70] sm:$0xff]
    %v597 = vld [vmem:[#allocation5 + $0x78] sm:$0xff]
    %v598 = vld [vmem:[#allocation5 + $0x80] sm:$0xff]
    %v599 = vld [vmem:[#allocation5 + $0x88] sm:$0xff]
    %v600 = vld [vmem:[#allocation5 + $0x90] sm:$0xff]
    %v601 = vld [vmem:[#allocation5 + $0x98] sm:$0xff]
    %v602 = vld [vmem:[#allocation5 + $0xa0] sm:$0xff]
    %v603 = vld [vmem:[#allocation5 + $0xa8] sm:$0xff]
    %v604 = vld [vmem:[#allocation5 + $0xb0] sm:$0xff]
    %v605 = vld [vmem:[#allocation5 + $0xb8] sm:$0xff]
    %v606 = vld [vmem:[#allocation5 + $0xc0] sm:$0xff]
    %v607 = vld [vmem:[#allocation5 + $0xc8] sm:$0xff]
    %v608 = vld [vmem:[#allocation5 + $0xd0] sm:$0xff]
    %v609 = vld [vmem:[#allocation5 + $0xd8] sm:$0xff]
    %v610 = vld [vmem:[#allocation5 + $0xe0] sm:$0xff]
    %v611 = vld [vmem:[#allocation5 + $0xe8] sm:$0xff]
    %v612 = vld [vmem:[#allocation5 + $0xf0] sm:$0xff]
    %v613 = vld [vmem:[#allocation5 + $0xf8] sm:$0xff]
    %v614 = vld [vmem:[#allocation5 + $0x100] sm:$0xff]
    %v615 = vld [vmem:[#allocation5 + $0x108] sm:$0xff]
    %v616 = vld [vmem:[#allocation5 + $0x110] sm:$0xff]
    %v617 = vld [vmem:[#allocation5 + $0x118] sm:$0xff]
    %v618 = vld [vmem:[#allocation5 + $0x120] sm:$0xff]
    %v619 = vld [vmem:[#allocation5 + $0x128] sm:$0xff]
    %v620 = vld [vmem:[#allocation5 + $0x130] sm:$0xff]
    %v621 = vld [vmem:[#allocation5 + $0x138] sm:$0xff]
    %v622 = vld [vmem:[#allocation5 + $0x140] sm:$0xff]
    %v623 = vld [vmem:[#allocation5 + $0x148] sm:$0xff]
    %v624 = vld [vmem:[#allocation5 + $0x150] sm:$0xff]
    %v625 = vld [vmem:[#allocation5 + $0x158] sm:$0xff]
    %v626 = vld [vmem:[#allocation5 + $0x160] sm:$0xff]
    %v627 = vld [vmem:[#allocation5 + $0x168] sm:$0xff]
    %v628 = vld [vmem:[#allocation5 + $0x170] sm:$0xff]
    %v629 = vld [vmem:[#allocation5 + $0x178] sm:$0xff]
    %v630 = vld [vmem:[#allocation5 + $0x180] sm:$0xff]
    %v631 = vld [vmem:[#allocation5 + $0x188] sm:$0xff]
    %v632 = vld [vmem:[#allocation5 + $0x190] sm:$0xff]
    %v633 = vld [vmem:[#allocation5 + $0x198] sm:$0xff]
    %v634 = vld [vmem:[#allocation5 + $0x1a0] sm:$0xff]
    %v635 = vld [vmem:[#allocation5 + $0x1a8] sm:$0xff]
    %v636 = vld [vmem:[#allocation5 + $0x1b0] sm:$0xff]
    %v637 = vld [vmem:[#allocation5 + $0x1b8] sm:$0xff]
    %v638 = vld [vmem:[#allocation5 + $0x1c0] sm:$0xff]
    %v639 = vld [vmem:[#allocation5 + $0x1c8] sm:$0xff]
    %v640 = vld [vmem:[#allocation5 + $0x1d0] sm:$0xff]
    %v641 = vld [vmem:[#allocation5 + $0x1d8] sm:$0xff]
    %v642 = vld [vmem:[#allocation5 + $0x1e0] sm:$0xff]
    %v643 = vld [vmem:[#allocation5 + $0x1e8] sm:$0xff]
    %v644 = vld [vmem:[#allocation5 + $0x1f0] sm:$0xff]
    %v645 = vld [vmem:[#allocation5 + $0x1f8] sm:$0xff]
    %v646 = vld [vmem:[#allocation5 + $0x200] sm:$0xff]
    %v647 = vld [vmem:[#allocation5 + $0x208] sm:$0xff]
    %v648 = vld [vmem:[#allocation5 + $0x210] sm:$0xff]
    %v649 = vld [vmem:[#allocation5 + $0x218] sm:$0xff]
    %v650 = vld [vmem:[#allocation5 + $0x220] sm:$0xff]
    %v651 = vld [vmem:[#allocation5 + $0x228] sm:$0xff]
    %v652 = vld [vmem:[#allocation5 + $0x230] sm:$0xff]
    %v653 = vld [vmem:[#allocation5 + $0x238] sm:$0xff]
    %v654 = vld [vmem:[#allocation5 + $0x240] sm:$0xff]
    %v655 = vld [vmem:[#allocation5 + $0x248] sm:$0xff]
    %v656 = vld [vmem:[#allocation5 + $0x250] sm:$0xff]
    %v657 = vld [vmem:[#allocation5 + $0x258] sm:$0xff]
    %v658 = vld [vmem:[#allocation5 + $0x260] sm:$0xff]
    %v659 = vld [vmem:[#allocation5 + $0x268] sm:$0xff]
    %v660 = vld [vmem:[#allocation5 + $0x270] sm:$0xff]
    %v661 = vld [vmem:[#allocation5 + $0x278] sm:$0xff]
    %v662 = vld [vmem:[#allocation5 + $0x280] sm:$0xff]
    %v663 = vld [vmem:[#allocation5 + $0x288] sm:$0xff]
    %v664 = vld [vmem:[#allocation5 + $0x290] sm:$0xff]
    %v665 = vld [vmem:[#allocation5 + $0x298] sm:$0xff]
    %v666 = vld [vmem:[#allocation5 + $0x2a0] sm:$0xff]
    %v667 = vld [vmem:[#allocation5 + $0x2a8] sm:$0xff]
    %v668 = vld [vmem:[#allocation5 + $0x2b0] sm:$0xff]
    %v669 = vld [vmem:[#allocation5 + $0x2b8] sm:$0xff]
    %v670 = vld [vmem:[#allocation5 + $0x2c0] sm:$0xff]
    %v671 = vld [vmem:[#allocation5 + $0x2c8] sm:$0xff]
    %v672 = vld [vmem:[#allocation5 + $0x2d0] sm:$0xff]
    %v673 = vld [vmem:[#allocation5 + $0x2d8] sm:$0xff]
    %v674 = vld [vmem:[#allocation5 + $0x2e0] sm:$0xff]
    %v675 = vld [vmem:[#allocation5 + $0x2e8] sm:$0xff]
    %v676 = vld [vmem:[#allocation5 + $0x2f0] sm:$0xff]
    %v677 = vld [vmem:[#allocation5 + $0x2f8] sm:$0xff]
    %v678 = vld [vmem:[#allocation5 + $0x300] sm:$0xff]
    %v679 = vld [vmem:[#allocation5 + $0x308] sm:$0xff]
    %v680 = vld [vmem:[#allocation5 + $0x310] sm:$0xff]
    %v681 = vld [vmem:[#allocation5 + $0x318] sm:$0xff]
    %v682 = vld [vmem:[#allocation5 + $0x320] sm:$0xff]
    %v683 = vld [vmem:[#allocation5 + $0x328] sm:$0xff]
    %v684 = vld [vmem:[#allocation5 + $0x330] sm:$0xff]
    %v685 = vld [vmem:[#allocation5 + $0x338] sm:$0xff]
    %v686 = vld [vmem:[#allocation5 + $0x340] sm:$0xff]
    %v687 = vld [vmem:[#allocation5 + $0x348] sm:$0xff]
    %v688 = vld [vmem:[#allocation5 + $0x350] sm:$0xff]
    %v689 = vld [vmem:[#allocation5 + $0x358] sm:$0xff]
    %v690 = vld [vmem:[#allocation5 + $0x360] sm:$0xff]
    %v691 = vld [vmem:[#allocation5 + $0x368] sm:$0xff]
    %v692 = vld [vmem:[#allocation5 + $0x370] sm:$0xff]
    %v693 = vld [vmem:[#allocation5 + $0x378] sm:$0xff]
    %v694 = vld [vmem:[#allocation5 + $0x380] sm:$0xff]
    %v695 = vld [vmem:[#allocation5 + $0x388] sm:$0xff]
    %v696 = vld [vmem:[#allocation5 + $0x390] sm:$0xff]
    %v697 = vld [vmem:[#allocation5 + $0x398] sm:$0xff]
    %v698 = vld [vmem:[#allocation5 + $0x3a0] sm:$0xff]
    %v699 = vld [vmem:[#allocation5 + $0x3a8] sm:$0xff]
    %v700 = vld [vmem:[#allocation5 + $0x3b0] sm:$0xff]
    %v701 = vld [vmem:[#allocation5 + $0x3b8] sm:$0xff]
    %v702 = vld [vmem:[#allocation5 + $0x3c0] sm:$0xff]
    %v703 = vld [vmem:[#allocation5 + $0x3c8] sm:$0xff]
    %v704 = vld [vmem:[#allocation5 + $0x3d0] sm:$0xff]
    %v705 = vld [vmem:[#allocation5 + $0x3d8] sm:$0xff]
    %v706 = vld [vmem:[#allocation5 + $0x3e0] sm:$0xff]
    %v707 = vld [vmem:[#allocation5 + $0x3e8] sm:$0xff]
    %v708 = vld [vmem:[#allocation5 + $0x3f0] sm:$0xff]
    %v709 = vld [vmem:[#allocation5 + $0x3f8] sm:$0xff]
    %v710 = vld [vmem:[#allocation5 + $0x400] sm:$0xff]
    %v711 = vld [vmem:[#allocation5 + $0x408] sm:$0xff]
    %v712 = vld [vmem:[#allocation5 + $0x410] sm:$0xff]
    %v713 = vld [vmem:[#allocation5 + $0x418] sm:$0xff]
    %v714 = vld [vmem:[#allocation5 + $0x420] sm:$0xff]
    %v715 = vld [vmem:[#allocation5 + $0x428] sm:$0xff]
    %v716 = vld [vmem:[#allocation5 + $0x430] sm:$0xff]
    %v717 = vld [vmem:[#allocation5 + $0x438] sm:$0xff]
    %v718 = vld [vmem:[#allocation5 + $0x440] sm:$0xff]
    %v719 = vld [vmem:[#allocation5 + $0x448] sm:$0xff]
    %v720 = vld [vmem:[#allocation5 + $0x450] sm:$0xff]
    %v721 = vld [vmem:[#allocation5 + $0x458] sm:$0xff]
    %v722 = vld [vmem:[#allocation5 + $0x460] sm:$0xff]
    %v723 = vld [vmem:[#allocation5 + $0x468] sm:$0xff]
    %v724 = vld [vmem:[#allocation5 + $0x470] sm:$0xff]
    %v725 = vld [vmem:[#allocation5 + $0x478] sm:$0xff]
    %v726 = vld [vmem:[#allocation5 + $0x480] sm:$0xff]
    %v727 = vld [vmem:[#allocation5 + $0x488] sm:$0xff]
    %v728 = vld [vmem:[#allocation5 + $0x490] sm:$0xff]
    %v729 = vld [vmem:[#allocation5 + $0x498] sm:$0xff]
    %v730 = vld [vmem:[#allocation5 + $0x4a0] sm:$0xff]
    %v731 = vld [vmem:[#allocation5 + $0x4a8] sm:$0xff]
    %v732 = vld [vmem:[#allocation5 + $0x4b0] sm:$0xff]
    %v733 = vld [vmem:[#allocation5 + $0x4b8] sm:$0xff]
    %v734 = vld [vmem:[#allocation5 + $0x4c0] sm:$0xff]
    %v735 = vld [vmem:[#allocation5 + $0x4c8] sm:$0xff]
    %v736 = vld [vmem:[#allocation5 + $0x4d0] sm:$0xff]
    %v737 = vld [vmem:[#allocation5 + $0x4d8] sm:$0xff]
    %v738 = vld [vmem:[#allocation5 + $0x4e0] sm:$0xff]
    %v739 = vld [vmem:[#allocation5 + $0x4e8] sm:$0xff]
    %v740 = vld [vmem:[#allocation5 + $0x4f0] sm:$0xff]
    %v741 = vld [vmem:[#allocation5 + $0x4f8] sm:$0xff]
    %v742 = vld [vmem:[#allocation5 + $0x500] sm:$0xff]
    %v743 = vld [vmem:[#allocation5 + $0x508] sm:$0xff]
    %v744 = vld [vmem:[#allocation5 + $0x510] sm:$0xff]
    %v745 = vld [vmem:[#allocation5 + $0x518] sm:$0xff]
    %v746 = vld [vmem:[#allocation5 + $0x520] sm:$0xff]
    %v747 = vld [vmem:[#allocation5 + $0x528] sm:$0xff]
    %v748 = vld [vmem:[#allocation5 + $0x530] sm:$0xff]
    %v749 = vld [vmem:[#allocation5 + $0x538] sm:$0xff]
    %v750 = vld [vmem:[#allocation5 + $0x540] sm:$0xff]
    %v751 = vld [vmem:[#allocation5 + $0x548] sm:$0xff]
    %v752 = vld [vmem:[#allocation5 + $0x550] sm:$0xff]
    %v753 = vld [vmem:[#allocation5 + $0x558] sm:$0xff]
    %v754 = vld [vmem:[#allocation5 + $0x560] sm:$0xff]
    %v755 = vld [vmem:[#allocation5 + $0x568] sm:$0xff]
    %v756 = vld [vmem:[#allocation5 + $0x570] sm:$0xff]
    %v757 = vld [vmem:[#allocation5 + $0x578] sm:$0xff]
    %v758 = vld [vmem:[#allocation5 + $0x580] sm:$0xff]
    %v759 = vld [vmem:[#allocation5 + $0x588] sm:$0xff]
    %v760 = vld [vmem:[#allocation5 + $0x590] sm:$0xff]
    %v761 = vld [vmem:[#allocation5 + $0x598] sm:$0xff]
    %v762 = vld [vmem:[#allocation5 + $0x5a0] sm:$0xff]
    %v763 = vld [vmem:[#allocation5 + $0x5a8] sm:$0xff]
    %v764 = vld [vmem:[#allocation5 + $0x5b0] sm:$0xff]
    %v765 = vld [vmem:[#allocation5 + $0x5b8] sm:$0xff]
    %v766 = vld [vmem:[#allocation5 + $0x5c0] sm:$0xff]
    %v767 = vld [vmem:[#allocation5 + $0x5c8] sm:$0xff]
    %v768 = vld [vmem:[#allocation5 + $0x5d0] sm:$0xff]
    %v769 = vld [vmem:[#allocation5 + $0x5d8] sm:$0xff]
    %v770 = vld [vmem:[#allocation5 + $0x5e0] sm:$0xff]
    %v771 = vld [vmem:[#allocation5 + $0x5e8] sm:$0xff]
    %v772 = vld [vmem:[#allocation5 + $0x5f0] sm:$0xff]
    %v773 = vld [vmem:[#allocation5 + $0x5f8] sm:$0xff]
    %v774 = vld [vmem:[#allocation5 + $0x600] sm:$0xff]
    %v775 = vld [vmem:[#allocation5 + $0x608] sm:$0xff]
    %v776 = vld [vmem:[#allocation5 + $0x610] sm:$0xff]
    %v777 = vld [vmem:[#allocation5 + $0x618] sm:$0xff]
    %v778 = vld [vmem:[#allocation5 + $0x620] sm:$0xff]
    %v779 = vld [vmem:[#allocation5 + $0x628] sm:$0xff]
    %v780 = vld [vmem:[#allocation5 + $0x630] sm:$0xff]
    %v781 = vld [vmem:[#allocation5 + $0x638] sm:$0xff]
    %v782 = vld [vmem:[#allocation5 + $0x640] sm:$0xff]
    %v783 = vld [vmem:[#allocation5 + $0x648] sm:$0xff]
    %v784 = vld [vmem:[#allocation5 + $0x650] sm:$0xff]
    %v785 = vld [vmem:[#allocation5 + $0x658] sm:$0xff]
    %v786 = vld [vmem:[#allocation5 + $0x660] sm:$0xff]
    %v787 = vld [vmem:[#allocation5 + $0x668] sm:$0xff]
    %v788 = vld [vmem:[#allocation5 + $0x670] sm:$0xff]
    %v789 = vld [vmem:[#allocation5 + $0x678] sm:$0xff]
    %v790 = vld [vmem:[#allocation5 + $0x680] sm:$0xff]
    %v791 = vld [vmem:[#allocation5 + $0x688] sm:$0xff]
    %v792 = vld [vmem:[#allocation5 + $0x690] sm:$0xff]
    %v793 = vld [vmem:[#allocation5 + $0x698] sm:$0xff]
    %v794 = vld [vmem:[#allocation5 + $0x6a0] sm:$0xff]
    %v795 = vld [vmem:[#allocation5 + $0x6a8] sm:$0xff]
    %v796 = vld [vmem:[#allocation5 + $0x6b0] sm:$0xff]
    %v797 = vld [vmem:[#allocation5 + $0x6b8] sm:$0xff]
    %v798 = vld [vmem:[#allocation5 + $0x6c0] sm:$0xff]
    %v799 = vld [vmem:[#allocation5 + $0x6c8] sm:$0xff]
    %v800 = vld [vmem:[#allocation5 + $0x6d0] sm:$0xff]
    %v801 = vld [vmem:[#allocation5 + $0x6d8] sm:$0xff]
    %v802 = vld [vmem:[#allocation5 + $0x6e0] sm:$0xff]
    %v803 = vld [vmem:[#allocation5 + $0x6e8] sm:$0xff]
    %v804 = vld [vmem:[#allocation5 + $0x6f0] sm:$0xff]
    %v805 = vld [vmem:[#allocation5 + $0x6f8] sm:$0xff]
    %v806 = vld [vmem:[#allocation5 + $0x700] sm:$0xff]
    %v807 = vld [vmem:[#allocation5 + $0x708] sm:$0xff]
    %v808 = vld [vmem:[#allocation5 + $0x710] sm:$0xff]
    %v809 = vld [vmem:[#allocation5 + $0x718] sm:$0xff]
    %v810 = vld [vmem:[#allocation5 + $0x720] sm:$0xff]
    %v811 = vld [vmem:[#allocation5 + $0x728] sm:$0xff]
    %v812 = vld [vmem:[#allocation5 + $0x730] sm:$0xff]
    %v813 = vld [vmem:[#allocation5 + $0x738] sm:$0xff]
    %v814 = vld [vmem:[#allocation5 + $0x740] sm:$0xff]
    %v815 = vld [vmem:[#allocation5 + $0x748] sm:$0xff]
    %v816 = vld [vmem:[#allocation5 + $0x750] sm:$0xff]
    %v817 = vld [vmem:[#allocation5 + $0x758] sm:$0xff]
    %v818 = vld [vmem:[#allocation5 + $0x760] sm:$0xff]
    %v819 = vld [vmem:[#allocation5 + $0x768] sm:$0xff]
    %v820 = vld [vmem:[#allocation5 + $0x770] sm:$0xff]
    %v821 = vld [vmem:[#allocation5 + $0x778] sm:$0xff]
    %v822 = vld [vmem:[#allocation5 + $0x780] sm:$0xff]
    %v823 = vld [vmem:[#allocation5 + $0x788] sm:$0xff]
    %v824 = vld [vmem:[#allocation5 + $0x790] sm:$0xff]
    %v825 = vld [vmem:[#allocation5 + $0x798] sm:$0xff]
    %v826 = vld [vmem:[#allocation5 + $0x7a0] sm:$0xff]
    %v827 = vld [vmem:[#allocation5 + $0x7a8] sm:$0xff]
    %v828 = vld [vmem:[#allocation5 + $0x7b0] sm:$0xff]
    %v829 = vld [vmem:[#allocation5 + $0x7b8] sm:$0xff]
    %v830 = vld [vmem:[#allocation5 + $0x7c0] sm:$0xff]
    %v831 = vld [vmem:[#allocation5 + $0x7c8] sm:$0xff]
    %v832 = vld [vmem:[#allocation5 + $0x7d0] sm:$0xff]
    %v833 = vld [vmem:[#allocation5 + $0x7d8] sm:$0xff]
    %v834 = vld [vmem:[#allocation5 + $0x7e0] sm:$0xff]
    %v835 = vld [vmem:[#allocation5 + $0x7e8] sm:$0xff]
    %v836 = vld [vmem:[#allocation5 + $0x7f0] sm:$0xff]
    %v837 = vld [vmem:[#allocation5 + $0x7f8] sm:$0xff]
    %v838 = vld [vmem:[#allocation5 + $0x800] sm:$0xff]
    %v839 = vld [vmem:[#allocation5 + $0x808] sm:$0xff]
    %v840 = vld [vmem:[#allocation5 + $0x810] sm:$0xff]
    %v841 = vld [vmem:[#allocation5 + $0x818] sm:$0xff]
    %v842 = vld [vmem:[#allocation5 + $0x820] sm:$0xff]
    %v843 = vld [vmem:[#allocation5 + $0x828] sm:$0xff]
    %v844 = vld [vmem:[#allocation5 + $0x830] sm:$0xff]
    %v845 = vld [vmem:[#allocation5 + $0x838] sm:$0xff]
    %v846 = vld [vmem:[#allocation5 + $0x840] sm:$0xff]
    %v847 = vld [vmem:[#allocation5 + $0x848] sm:$0xff]
    %v848 = vld [vmem:[#allocation5 + $0x850] sm:$0xff]
    %v849 = vld [vmem:[#allocation5 + $0x858] sm:$0xff]
    %v850 = vld [vmem:[#allocation5 + $0x860] sm:$0xff]
    %v851 = vld [vmem:[#allocation5 + $0x868] sm:$0xff]
    %v852 = vld [vmem:[#allocation5 + $0x870] sm:$0xff]
    %v853 = vld [vmem:[#allocation5 + $0x878] sm:$0xff]
    %v854 = vld [vmem:[#allocation5 + $0x880] sm:$0xff]
    %v855 = vld [vmem:[#allocation5 + $0x888] sm:$0xff]
    %v856 = vld [vmem:[#allocation5 + $0x890] sm:$0xff]
    %v857 = vld [vmem:[#allocation5 + $0x898] sm:$0xff]
    %v858 = vld [vmem:[#allocation5 + $0x8a0] sm:$0xff]
    %v859 = vld [vmem:[#allocation5 + $0x8a8] sm:$0xff]
    %v860 = vld [vmem:[#allocation5 + $0x8b0] sm:$0xff]
    %v861 = vld [vmem:[#allocation5 + $0x8b8] sm:$0xff]
    %v862 = vld [vmem:[#allocation5 + $0x8c0] sm:$0xff]
    %v863 = vld [vmem:[#allocation5 + $0x8c8] sm:$0xff]
    %v864 = vld [vmem:[#allocation5 + $0x8d0] sm:$0xff]
    %v865 = vld [vmem:[#allocation5 + $0x8d8] sm:$0xff]
    %v866 = vld [vmem:[#allocation5 + $0x8e0] sm:$0xff]
    %v867 = vld [vmem:[#allocation5 + $0x8e8] sm:$0xff]
    %v868 = vld [vmem:[#allocation5 + $0x8f0] sm:$0xff]
    %v869 = vld [vmem:[#allocation5 + $0x8f8] sm:$0xff]
    %v870 = vld [vmem:[#allocation5 + $0x900] sm:$0xff]
    %v871 = vld [vmem:[#allocation5 + $0x908] sm:$0xff]
    %v872 = vld [vmem:[#allocation5 + $0x910] sm:$0xff]
    %v873 = vld [vmem:[#allocation5 + $0x918] sm:$0xff]
    %v874 = vld [vmem:[#allocation5 + $0x920] sm:$0xff]
    %v875 = vld [vmem:[#allocation5 + $0x928] sm:$0xff]
    %v876 = vld [vmem:[#allocation5 + $0x930] sm:$0xff]
    %v877 = vld [vmem:[#allocation5 + $0x938] sm:$0xff]
    %v878 = vld [vmem:[#allocation5 + $0x940] sm:$0xff]
    %v879 = vld [vmem:[#allocation5 + $0x948] sm:$0xff]
    %v880 = vld [vmem:[#allocation5 + $0x950] sm:$0xff]
    %v881 = vld [vmem:[#allocation5 + $0x958] sm:$0xff]
    %v882 = vld [vmem:[#allocation5 + $0x960] sm:$0xff]
    %v883 = vld [vmem:[#allocation5 + $0x968] sm:$0xff]
    %v884 = vld [vmem:[#allocation5 + $0x970] sm:$0xff]
    %v885 = vld [vmem:[#allocation5 + $0x978] sm:$0xff]
    %v886 = vld [vmem:[#allocation5 + $0x980] sm:$0xff]
    %v887 = vld [vmem:[#allocation5 + $0x988] sm:$0xff]
    %v888 = vld [vmem:[#allocation5 + $0x990] sm:$0xff]
    %v889 = vld [vmem:[#allocation5 + $0x998] sm:$0xff]
    %v890 = vld [vmem:[#allocation5 + $0x9a0] sm:$0xff]
    %v891 = vld [vmem:[#allocation5 + $0x9a8] sm:$0xff]
    %v892 = vld [vmem:[#allocation5 + $0x9b0] sm:$0xff]
    %v893 = vld [vmem:[#allocation5 + $0x9b8] sm:$0xff]
    %v894 = vld [vmem:[#allocation5 + $0x9c0] sm:$0xff]
    %v895 = vld [vmem:[#allocation5 + $0x9c8] sm:$0xff]
    %v896 = vld [vmem:[#allocation5 + $0x9d0] sm:$0xff]
    %v897 = vld [vmem:[#allocation5 + $0x9d8] sm:$0xff]
    %v898 = vld [vmem:[#allocation5 + $0x9e0] sm:$0xff]
    %v899 = vld [vmem:[#allocation5 + $0x9e8] sm:$0xff]
    %v900 = vld [vmem:[#allocation5 + $0x9f0] sm:$0xff]
    %v901 = vld [vmem:[#allocation5 + $0x9f8] sm:$0xff]
    %v902 = vld [vmem:[#allocation5 + $0xa00] sm:$0xff]
    %v903 = vld [vmem:[#allocation5 + $0xa08] sm:$0xff]
    %v904 = vld [vmem:[#allocation5 + $0xa10] sm:$0xff]
    %v905 = vld [vmem:[#allocation5 + $0xa18] sm:$0xff]
    %v906 = vld [vmem:[#allocation5 + $0xa20] sm:$0xff]
    %v907 = vld [vmem:[#allocation5 + $0xa28] sm:$0xff]
    %v908 = vld [vmem:[#allocation5 + $0xa30] sm:$0xff]
    %v909 = vld [vmem:[#allocation5 + $0xa38] sm:$0xff]
    %v910 = vld [vmem:[#allocation5 + $0xa40] sm:$0xff]
    %v911 = vld [vmem:[#allocation5 + $0xa48] sm:$0xff]
    %v912 = vld [vmem:[#allocation5 + $0xa50] sm:$0xff]
    %v913 = vld [vmem:[#allocation5 + $0xa58] sm:$0xff]
    %v914 = vld [vmem:[#allocation5 + $0xa60] sm:$0xff]
    %v915 = vld [vmem:[#allocation5 + $0xa68] sm:$0xff]
    %v916 = vld [vmem:[#allocation5 + $0xa70] sm:$0xff]
    %v917 = vld [vmem:[#allocation5 + $0xa78] sm:$0xff]
    %v918 = vld [vmem:[#allocation5 + $0xa80] sm:$0xff]
    %v919 = vld [vmem:[#allocation5 + $0xa88] sm:$0xff]
    %v920 = vld [vmem:[#allocation5 + $0xa90] sm:$0xff]
    %v921 = vld [vmem:[#allocation5 + $0xa98] sm:$0xff]
    %v922 = vld [vmem:[#allocation5 + $0xaa0] sm:$0xff]
    %v923 = vld [vmem:[#allocation5 + $0xaa8] sm:$0xff]
    %v924 = vld [vmem:[#allocation5 + $0xab0] sm:$0xff]
    %v925 = vld [vmem:[#allocation5 + $0xab8] sm:$0xff]
    %v926 = vld [vmem:[#allocation5 + $0xac0] sm:$0xff]
    %v927 = vld [vmem:[#allocation5 + $0xac8] sm:$0xff]
    %v928 = vld [vmem:[#allocation5 + $0xad0] sm:$0xff]
    %v929 = vld [vmem:[#allocation5 + $0xad8] sm:$0xff]
    %v930 = vld [vmem:[#allocation5 + $0xae0] sm:$0xff]
    %v931 = vld [vmem:[#allocation5 + $0xae8] sm:$0xff]
    %v932 = vld [vmem:[#allocation5 + $0xaf0] sm:$0xff]
    %v933 = vld [vmem:[#allocation5 + $0xaf8] sm:$0xff]
    %v934 = vld [vmem:[#allocation5 + $0xb00] sm:$0xff]
    %v935 = vld [vmem:[#allocation5 + $0xb08] sm:$0xff]
    %v936 = vld [vmem:[#allocation5 + $0xb10] sm:$0xff]
    %v937 = vld [vmem:[#allocation5 + $0xb18] sm:$0xff]
    %v938 = vld [vmem:[#allocation5 + $0xb20] sm:$0xff]
    %v939 = vld [vmem:[#allocation5 + $0xb28] sm:$0xff]
    %v940 = vld [vmem:[#allocation5 + $0xb30] sm:$0xff]
    %v941 = vld [vmem:[#allocation5 + $0xb38] sm:$0xff]
    %v942 = vld [vmem:[#allocation5 + $0xb40] sm:$0xff]
    %v943 = vld [vmem:[#allocation5 + $0xb48] sm:$0xff]
    %v944 = vld [vmem:[#allocation5 + $0xb50] sm:$0xff]
    %v945 = vld [vmem:[#allocation5 + $0xb58] sm:$0xff]
    %v946 = vld [vmem:[#allocation5 + $0xb60] sm:$0xff]
    %v947 = vld [vmem:[#allocation5 + $0xb68] sm:$0xff]
    %v948 = vld [vmem:[#allocation5 + $0xb70] sm:$0xff]
    %v949 = vld [vmem:[#allocation5 + $0xb78] sm:$0xff]
    %v950 = vld [vmem:[#allocation5 + $0xb80] sm:$0xff]
    %v951 = vld [vmem:[#allocation5 + $0xb88] sm:$0xff]
    %v952 = vld [vmem:[#allocation5 + $0xb90] sm:$0xff]
    %v953 = vld [vmem:[#allocation5 + $0xb98] sm:$0xff]
    %v954 = vld [vmem:[#allocation5 + $0xba0] sm:$0xff]
    %v955 = vld [vmem:[#allocation5 + $0xba8] sm:$0xff]
    %v956 = vld [vmem:[#allocation5 + $0xbb0] sm:$0xff]
    %v957 = vld [vmem:[#allocation5 + $0xbb8] sm:$0xff]
    %v958 = vld [vmem:[#allocation5 + $0xbc0] sm:$0xff]
    %v959 = vld [vmem:[#allocation5 + $0xbc8] sm:$0xff]
    %v960 = vld [vmem:[#allocation5 + $0xbd0] sm:$0xff]
    %v961 = vld [vmem:[#allocation5 + $0xbd8] sm:$0xff]
    %v962 = vld [vmem:[#allocation5 + $0xbe0] sm:$0xff]
    %v963 = vld [vmem:[#allocation5 + $0xbe8] sm:$0xff]
    %v964 = vld [vmem:[#allocation5 + $0xbf0] sm:$0xff]
    %v965 = vld [vmem:[#allocation5 + $0xbf8] sm:$0xff]
    %v966 = vld [vmem:[#allocation5 + $0xc00] sm:$0xff]
    %v967 = vld [vmem:[#allocation5 + $0xc08] sm:$0xff]
    %v968 = vld [vmem:[#allocation5 + $0xc10] sm:$0xff]
    %v969 = vld [vmem:[#allocation5 + $0xc18] sm:$0xff]
    %v970 = vld [vmem:[#allocation5 + $0xc20] sm:$0xff]
    %v971 = vld [vmem:[#allocation5 + $0xc28] sm:$0xff]
    %v972 = vld [vmem:[#allocation5 + $0xc30] sm:$0xff]
    %v973 = vld [vmem:[#allocation5 + $0xc38] sm:$0xff]
    %v974 = vld [vmem:[#allocation5 + $0xc40] sm:$0xff]
    %v975 = vld [vmem:[#allocation5 + $0xc48] sm:$0xff]
    %v976 = vld [vmem:[#allocation5 + $0xc50] sm:$0xff]
    %v977 = vld [vmem:[#allocation5 + $0xc58] sm:$0xff]
    %v978 = vld [vmem:[#allocation5 + $0xc60] sm:$0xff]
    %v979 = vld [vmem:[#allocation5 + $0xc68] sm:$0xff]
    %v980 = vld [vmem:[#allocation5 + $0xc70] sm:$0xff]
    %v981 = vld [vmem:[#allocation5 + $0xc78] sm:$0xff]
    %v982 = vld [vmem:[#allocation5 + $0xc80] sm:$0xff]
    %v983 = vld [vmem:[#allocation5 + $0xc88] sm:$0xff]
    %v984 = vld [vmem:[#allocation5 + $0xc90] sm:$0xff]
    %v985 = vld [vmem:[#allocation5 + $0xc98] sm:$0xff]
    %v986 = vld [vmem:[#allocation5 + $0xca0] sm:$0xff]
    %v987 = vld [vmem:[#allocation5 + $0xca8] sm:$0xff]
    %v988 = vld [vmem:[#allocation5 + $0xcb0] sm:$0xff]
    %v989 = vld [vmem:[#allocation5 + $0xcb8] sm:$0xff]
    %v990 = vld [vmem:[#allocation5 + $0xcc0] sm:$0xff]
    %v991 = vld [vmem:[#allocation5 + $0xcc8] sm:$0xff]
    %v992 = vld [vmem:[#allocation5 + $0xcd0] sm:$0xff]
    %v993 = vld [vmem:[#allocation5 + $0xcd8] sm:$0xff]
    %v994 = vld [vmem:[#allocation5 + $0xce0] sm:$0xff]
    %v995 = vld [vmem:[#allocation5 + $0xce8] sm:$0xff]
    %v996 = vld [vmem:[#allocation5 + $0xcf0] sm:$0xff]
    %v997 = vld [vmem:[#allocation5 + $0xcf8] sm:$0xff]
    %v998 = vld [vmem:[#allocation5 + $0xd00] sm:$0xff]
    %v999 = vld [vmem:[#allocation5 + $0xd08] sm:$0xff]
    %v1000 = vld [vmem:[#allocation5 + $0xd10] sm:$0xff]
    %v1001 = vld [vmem:[#allocation5 + $0xd18] sm:$0xff]
    %v1002 = vld [vmem:[#allocation5 + $0xd20] sm:$0xff]
    %v1003 = vld [vmem:[#allocation5 + $0xd28] sm:$0xff]
    %v1004 = vld [vmem:[#allocation5 + $0xd30] sm:$0xff]
    %v1005 = vld [vmem:[#allocation5 + $0xd38] sm:$0xff]
    %v1006 = vld [vmem:[#allocation5 + $0xd40] sm:$0xff]
    %v1007 = vld [vmem:[#allocation5 + $0xd48] sm:$0xff]
    %v1008 = vld [vmem:[#allocation5 + $0xd50] sm:$0xff]
    %v1009 = vld [vmem:[#allocation5 + $0xd58] sm:$0xff]
    %v1010 = vld [vmem:[#allocation5 + $0xd60] sm:$0xff]
    %v1011 = vld [vmem:[#allocation5 + $0xd68] sm:$0xff]
    %v1012 = vld [vmem:[#allocation5 + $0xd70] sm:$0xff]
    %v1013 = vld [vmem:[#allocation5 + $0xd78] sm:$0xff]
    %v1014 = vld [vmem:[#allocation5 + $0xd80] sm:$0xff]
    %v1015 = vld [vmem:[#allocation5 + $0xd88] sm:$0xff]
    %v1016 = vld [vmem:[#allocation5 + $0xd90] sm:$0xff]
    %v1017 = vld [vmem:[#allocation5 + $0xd98] sm:$0xff]
    %v1018 = vld [vmem:[#allocation5 + $0xda0] sm:$0xff]
    %v1019 = vld [vmem:[#allocation5 + $0xda8] sm:$0xff]
    %v1020 = vld [vmem:[#allocation5 + $0xdb0] sm:$0xff]
    %v1021 = vld [vmem:[#allocation5 + $0xdb8] sm:$0xff]
    %v1022 = vld [vmem:[#allocation5 + $0xdc0] sm:$0xff]
    %v1023 = vld [vmem:[#allocation5 + $0xdc8] sm:$0xff]
    %v1024 = vld [vmem:[#allocation5 + $0xdd0] sm:$0xff]
    %v1025 = vld [vmem:[#allocation5 + $0xdd8] sm:$0xff]
    %v1026 = vld [vmem:[#allocation5 + $0xde0] sm:$0xff]
    %v1027 = vld [vmem:[#allocation5 + $0xde8] sm:$0xff]
    %v1028 = vld [vmem:[#allocation5 + $0xdf0] sm:$0xff]
    %v1029 = vld [vmem:[#allocation5 + $0xdf8] sm:$0xff]
    %v1030 = vld [vmem:[#allocation5 + $0xe00] sm:$0xff]
    %v1031 = vld [vmem:[#allocation5 + $0xe08] sm:$0xff]
    %v1032 = vld [vmem:[#allocation5 + $0xe10] sm:$0xff]
    %v1033 = vld [vmem:[#allocation5 + $0xe18] sm:$0xff]
    %v1034 = vld [vmem:[#allocation5 + $0xe20] sm:$0xff]
    %v1035 = vld [vmem:[#allocation5 + $0xe28] sm:$0xff]
    %v1036 = vld [vmem:[#allocation5 + $0xe30] sm:$0xff]
    %v1037 = vld [vmem:[#allocation5 + $0xe38] sm:$0xff]
    %v1038 = vld [vmem:[#allocation5 + $0xe40] sm:$0xff]
    %v1039 = vld [vmem:[#allocation5 + $0xe48] sm:$0xff]
    %v1040 = vld [vmem:[#allocation5 + $0xe50] sm:$0xff]
    %v1041 = vld [vmem:[#allocation5 + $0xe58] sm:$0xff]
    %v1042 = vld [vmem:[#allocation5 + $0xe60] sm:$0xff]
    %v1043 = vld [vmem:[#allocation5 + $0xe68] sm:$0xff]
    %v1044 = vld [vmem:[#allocation5 + $0xe70] sm:$0xff]
    %v1045 = vld [vmem:[#allocation5 + $0xe78] sm:$0xff]
    %v1046 = vld [vmem:[#allocation5 + $0xe80] sm:$0xff]
    %v1047 = vld [vmem:[#allocation5 + $0xe88] sm:$0xff]
    %v1048 = vld [vmem:[#allocation5 + $0xe90] sm:$0xff]
    %v1049 = vld [vmem:[#allocation5 + $0xe98] sm:$0xff]
    %v1050 = vld [vmem:[#allocation5 + $0xea0] sm:$0xff]
    %v1051 = vld [vmem:[#allocation5 + $0xea8] sm:$0xff]
    %v1052 = vld [vmem:[#allocation5 + $0xeb0] sm:$0xff]
    %v1053 = vld [vmem:[#allocation5 + $0xeb8] sm:$0xff]
    %v1054 = vld [vmem:[#allocation5 + $0xec0] sm:$0xff]
    %v1055 = vld [vmem:[#allocation5 + $0xec8] sm:$0xff]
    %v1056 = vld [vmem:[#allocation5 + $0xed0] sm:$0xff]
    %v1057 = vld [vmem:[#allocation5 + $0xed8] sm:$0xff]
    %v1058 = vld [vmem:[#allocation5 + $0xee0] sm:$0xff]
    %v1059 = vld [vmem:[#allocation5 + $0xee8] sm:$0xff]
    %v1060 = vld [vmem:[#allocation5 + $0xef0] sm:$0xff]
    %v1061 = vld [vmem:[#allocation5 + $0xef8] sm:$0xff]
    %v1062 = vld [vmem:[#allocation5 + $0xf00] sm:$0xff]
    %v1063 = vld [vmem:[#allocation5 + $0xf08] sm:$0xff]
    %v1064 = vld [vmem:[#allocation5 + $0xf10] sm:$0xff]
    %v1065 = vld [vmem:[#allocation5 + $0xf18] sm:$0xff]
    %v1066 = vld [vmem:[#allocation5 + $0xf20] sm:$0xff]
    %v1067 = vld [vmem:[#allocation5 + $0xf28] sm:$0xff]
    %v1068 = vld [vmem:[#allocation5 + $0xf30] sm:$0xff]
    %v1069 = vld [vmem:[#allocation5 + $0xf38] sm:$0xff]
    %v1070 = vld [vmem:[#allocation5 + $0xf40] sm:$0xff]
    %v1071 = vld [vmem:[#allocation5 + $0xf48] sm:$0xff]
    %v1072 = vld [vmem:[#allocation5 + $0xf50] sm:$0xff]
    %v1073 = vld [vmem:[#allocation5 + $0xf58] sm:$0xff]
    %v1074 = vld [vmem:[#allocation5 + $0xf60] sm:$0xff]
    %v1075 = vld [vmem:[#allocation5 + $0xf68] sm:$0xff]
    %v1076 = vld [vmem:[#allocation5 + $0xf70] sm:$0xff]
    %v1077 = vld [vmem:[#allocation5 + $0xf78] sm:$0xff]
    %v1078 = vld [vmem:[#allocation5 + $0xf80] sm:$0xff]
    %v1079 = vld [vmem:[#allocation5 + $0xf88] sm:$0xff]
    %v1080 = vld [vmem:[#allocation5 + $0xf90] sm:$0xff]
    %v1081 = vld [vmem:[#allocation5 + $0xf98] sm:$0xff]
    %v1082 = vld [vmem:[#allocation5 + $0xfa0] sm:$0xff]
    %v1083 = vld [vmem:[#allocation5 + $0xfa8] sm:$0xff]
    %v1084 = vld [vmem:[#allocation5 + $0xfb0] sm:$0xff]
    %v1085 = vld [vmem:[#allocation5 + $0xfb8] sm:$0xff]
    %v1086 = vld [vmem:[#allocation5 + $0xfc0] sm:$0xff]
    %v1087 = vld [vmem:[#allocation5 + $0xfc8] sm:$0xff]
    %v1088 = vld [vmem:[#allocation5 + $0xfd0] sm:$0xff]
    %v1089 = vld [vmem:[#allocation5 + $0xfd8] sm:$0xff]
    %v1090 = vld [vmem:[#allocation5 + $0xfe0] sm:$0xff]
    %v1091 = vld [vmem:[#allocation5 + $0xfe8] sm:$0xff]
    %v1092 = vld [vmem:[#allocation5 + $0xff0] sm:$0xff]
    %v1093 = vld [vmem:[#allocation5 + $0xff8] sm:$0xff]
    %v1094 = vld [vmem:[#allocation8] ss:$4 sm:$0xff]
    %v1096 = vlaneseq
    %v1097 = vshrl.u32 %v1096, 7
    %v1098 = vsub.s32 0, %v1097
    %v1099 = vrot.slane %v1094, %v1098
    %v1100 = vlaneseq
    %v1101 = vshrl.u32 %v1100, 7
    %v1102 = vsub.s32 1, %v1101
    %v1103 = vrot.slane %v1094, %v1102
    %v1104 = vlaneseq
    %v1105 = vshrl.u32 %v1104, 7
    %v1106 = vsub.s32 2, %v1105
    %v1107 = vrot.slane %v1094, %v1106
    %v1108 = vlaneseq
    %v1109 = vshrl.u32 %v1108, 7
    %v1110 = vsub.s32 3, %v1109
    %v1111 = vrot.slane %v1094, %v1110
    %v1112 = vlaneseq
    %v1113 = vshrl.u32 %v1112, 7
    %v1114 = vsub.s32 4, %v1113
    %v1115 = vrot.slane %v1094, %v1114
    %v1116 = vlaneseq
    %v1117 = vshrl.u32 %v1116, 7
    %v1118 = vsub.s32 5, %v1117
    %v1119 = vrot.slane %v1094, %v1118
    %v1120 = vlaneseq
    %v1121 = vshrl.u32 %v1120, 7
    %v1122 = vsub.s32 6, %v1121
    %v1123 = vrot.slane %v1094, %v1122
    %v1124 = vlaneseq
    %v1125 = vshrl.u32 %v1124, 7
    %v1126 = vsub.s32 7, %v1125
    %v1127 = vrot.slane %v1094, %v1126
    %v1168 = vunpack.c.l.b16 %v550
    %v1169 = vunpack.c.l.b16 %v551
    %v1170 = vunpack.c.l.b16 %v552
    %v1171 = vunpack.c.l.b16 %v553
    %v1172 = vunpack.c.l.b16 %v554
    %v1173 = vunpack.c.l.b16 %v555
    %v1174 = vunpack.c.l.b16 %v556
    %v1175 = vunpack.c.l.b16 %v557
    %v1176 = vunpack.c.l.b16 %v558
    %v1177 = vunpack.c.l.b16 %v559
    %v1178 = vunpack.c.l.b16 %v560
    %v1179 = vunpack.c.l.b16 %v561
    %v1180 = vunpack.c.l.b16 %v562
    %v1181 = vunpack.c.l.b16 %v563
    %v1182 = vunpack.c.l.b16 %v564
    %v1183 = vunpack.c.l.b16 %v565
    %v1184 = vunpack.c.l.b16 %v566
    %v1185 = vunpack.c.l.b16 %v567
    %v1186 = vunpack.c.l.b16 %v568
    %v1187 = vunpack.c.l.b16 %v569
    %v1188 = vunpack.c.l.b16 %v570
    %v1189 = vunpack.c.l.b16 %v571
    %v1190 = vunpack.c.l.b16 %v572
    %v1191 = vunpack.c.l.b16 %v573
    %v1192 = vunpack.c.l.b16 %v574
    %v1193 = vunpack.c.l.b16 %v575
    %v1194 = vunpack.c.l.b16 %v576
    %v1195 = vunpack.c.l.b16 %v577
    %v1196 = vunpack.c.l.b16 %v578
    %v1197 = vunpack.c.l.b16 %v579
    %v1198 = vunpack.c.l.b16 %v580
    %v1199 = vunpack.c.l.b16 %v581
    %v1200 = vrot.slane %v1176, 7
    %vm1201 = vcmask 1041409
    %v1202 = vsel %vm1201, %v1200, %v1168
    %v1203 = vrot.slane %v1184, 6
    %vm1204 = vcmask 1042434
    %v1205 = vsel %vm1204, %v1203, %v1202
    %v1206 = vrot.slane %v1192, 5
    %vm1207 = vcmask 1043459
    %v1208 = vsel %vm1207, %v1206, %v1205
    %v1209 = vrot.slane %v1177, 7
    %v1210 = vsel %vm1201, %v1209, %v1169
    %v1211 = vrot.slane %v1185, 6
    %v1212 = vsel %vm1204, %v1211, %v1210
    %v1213 = vrot.slane %v1193, 5
    %v1214 = vsel %vm1207, %v1213, %v1212
    %v1215 = vrot.slane %v1178, 7
    %v1216 = vsel %vm1201, %v1215, %v1170
    %v1217 = vrot.slane %v1186, 6
    %v1218 = vsel %vm1204, %v1217, %v1216
    %v1219 = vrot.slane %v1194, 5
    %v1220 = vsel %vm1207, %v1219, %v1218
    %v1221 = vrot.slane %v1179, 7
    %v1222 = vsel %vm1201, %v1221, %v1171
    %v1223 = vrot.slane %v1187, 6
    %v1224 = vsel %vm1204, %v1223, %v1222
    %v1225 = vrot.slane %v1195, 5
    %v1226 = vsel %vm1207, %v1225, %v1224
    %v1227 = vrot.slane %v1180, 7
    %v1228 = vsel %vm1201, %v1227, %v1172
    %v1229 = vrot.slane %v1188, 6
    %v1230 = vsel %vm1204, %v1229, %v1228
    %v1231 = vrot.slane %v1196, 5
    %v1232 = vsel %vm1207, %v1231, %v1230
    %v1233 = vrot.slane %v1181, 7
    %v1234 = vsel %vm1201, %v1233, %v1173
    %v1235 = vrot.slane %v1189, 6
    %v1236 = vsel %vm1204, %v1235, %v1234
    %v1237 = vrot.slane %v1197, 5
    %v1238 = vsel %vm1207, %v1237, %v1236
    %v1239 = vrot.slane %v1182, 7
    %v1240 = vsel %vm1201, %v1239, %v1174
    %v1241 = vrot.slane %v1190, 6
    %v1242 = vsel %vm1204, %v1241, %v1240
    %v1243 = vrot.slane %v1198, 5
    %v1244 = vsel %vm1207, %v1243, %v1242
    %v1245 = vrot.slane %v1183, 7
    %v1246 = vsel %vm1201, %v1245, %v1175
    %v1247 = vrot.slane %v1191, 6
    %v1248 = vsel %vm1204, %v1247, %v1246
    %v1249 = vrot.slane %v1199, 5
    %v1250 = vsel %vm1207, %v1249, %v1248
    %v1251 = vpack.c.b16 %v1208, %v1208
    %v1252 = vpack.c.b16 %v1214, %v1214
    %v1253 = vpack.c.b16 %v1220, %v1220
    %v1254 = vpack.c.b16 %v1226, %v1226
    %v1255 = vpack.c.b16 %v1232, %v1232
    %v1256 = vpack.c.b16 %v1238, %v1238
    %v1257 = vpack.c.b16 %v1244, %v1244
    %v1258 = vpack.c.b16 %v1250, %v1250
    %v1779 = vunpack.c.l.b16 %v582
    %v1780 = vunpack.c.h.b16 %v582
    %v1781 = vunpack.c.l.b16 %v583
    %v1782 = vunpack.c.h.b16 %v583
    %v1783 = vunpack.c.l.b16 %v584
    %v1784 = vunpack.c.h.b16 %v584
    %v1785 = vunpack.c.l.b16 %v585
    %v1786 = vunpack.c.h.b16 %v585
    %v1787 = vunpack.c.l.b16 %v586
    %v1788 = vunpack.c.h.b16 %v586
    %v1789 = vunpack.c.l.b16 %v587
    %v1790 = vunpack.c.h.b16 %v587
    %v1791 = vunpack.c.l.b16 %v588
    %v1792 = vunpack.c.h.b16 %v588
    %v1793 = vunpack.c.l.b16 %v589
    %v1794 = vunpack.c.h.b16 %v589
    %v1795 = vunpack.c.l.b16 %v590
    %v1796 = vunpack.c.h.b16 %v590
    %v1797 = vunpack.c.l.b16 %v591
    %v1798 = vunpack.c.h.b16 %v591
    %v1799 = vunpack.c.l.b16 %v592
    %v1800 = vunpack.c.h.b16 %v592
    %v1801 = vunpack.c.l.b16 %v593
    %v1802 = vunpack.c.h.b16 %v593
    %v1803 = vunpack.c.l.b16 %v594
    %v1804 = vunpack.c.h.b16 %v594
    %v1805 = vunpack.c.l.b16 %v595
    %v1806 = vunpack.c.h.b16 %v595
    %v1807 = vunpack.c.l.b16 %v596
    %v1808 = vunpack.c.h.b16 %v596
    %v1809 = vunpack.c.l.b16 %v597
    %v1810 = vunpack.c.h.b16 %v597
    %v1811 = vunpack.c.l.b16 %v598
    %v1812 = vunpack.c.h.b16 %v598
    %v1813 = vunpack.c.l.b16 %v599
    %v1814 = vunpack.c.h.b16 %v599
    %v1815 = vunpack.c.l.b16 %v600
    %v1816 = vunpack.c.h.b16 %v600
    %v1817 = vunpack.c.l.b16 %v601
    %v1818 = vunpack.c.h.b16 %v601
    %v1819 = vunpack.c.l.b16 %v602
    %v1820 = vunpack.c.h.b16 %v602
    %v1821 = vunpack.c.l.b16 %v603
    %v1822 = vunpack.c.h.b16 %v603
    %v1823 = vunpack.c.l.b16 %v604
    %v1824 = vunpack.c.h.b16 %v604
    %v1825 = vunpack.c.l.b16 %v605
    %v1826 = vunpack.c.h.b16 %v605
    %v1827 = vunpack.c.l.b16 %v606
    %v1828 = vunpack.c.h.b16 %v606
    %v1829 = vunpack.c.l.b16 %v607
    %v1830 = vunpack.c.h.b16 %v607
    %v1831 = vunpack.c.l.b16 %v608
    %v1832 = vunpack.c.h.b16 %v608
    %v1833 = vunpack.c.l.b16 %v609
    %v1834 = vunpack.c.h.b16 %v609
    %v1835 = vunpack.c.l.b16 %v610
    %v1836 = vunpack.c.h.b16 %v610
    %v1837 = vunpack.c.l.b16 %v611
    %v1838 = vunpack.c.h.b16 %v611
    %v1839 = vunpack.c.l.b16 %v612
    %v1840 = vunpack.c.h.b16 %v612
    %v1841 = vunpack.c.l.b16 %v613
    %v1842 = vunpack.c.h.b16 %v613
    %v1843 = vunpack.c.l.b16 %v614
    %v1844 = vunpack.c.h.b16 %v614
    %v1845 = vunpack.c.l.b16 %v615
    %v1846 = vunpack.c.h.b16 %v615
    %v1847 = vunpack.c.l.b16 %v616
    %v1848 = vunpack.c.h.b16 %v616
    %v1849 = vunpack.c.l.b16 %v617
    %v1850 = vunpack.c.h.b16 %v617
    %v1851 = vunpack.c.l.b16 %v618
    %v1852 = vunpack.c.h.b16 %v618
    %v1853 = vunpack.c.l.b16 %v619
    %v1854 = vunpack.c.h.b16 %v619
    %v1855 = vunpack.c.l.b16 %v620
    %v1856 = vunpack.c.h.b16 %v620
    %v1857 = vunpack.c.l.b16 %v621
    %v1858 = vunpack.c.h.b16 %v621
    %v1859 = vunpack.c.l.b16 %v622
    %v1860 = vunpack.c.h.b16 %v622
    %v1861 = vunpack.c.l.b16 %v623
    %v1862 = vunpack.c.h.b16 %v623
    %v1863 = vunpack.c.l.b16 %v624
    %v1864 = vunpack.c.h.b16 %v624
    %v1865 = vunpack.c.l.b16 %v625
    %v1866 = vunpack.c.h.b16 %v625
    %v1867 = vunpack.c.l.b16 %v626
    %v1868 = vunpack.c.h.b16 %v626
    %v1869 = vunpack.c.l.b16 %v627
    %v1870 = vunpack.c.h.b16 %v627
    %v1871 = vunpack.c.l.b16 %v628
    %v1872 = vunpack.c.h.b16 %v628
    %v1873 = vunpack.c.l.b16 %v629
    %v1874 = vunpack.c.h.b16 %v629
    %v1875 = vunpack.c.l.b16 %v630
    %v1876 = vunpack.c.h.b16 %v630
    %v1877 = vunpack.c.l.b16 %v631
    %v1878 = vunpack.c.h.b16 %v631
    %v1879 = vunpack.c.l.b16 %v632
    %v1880 = vunpack.c.h.b16 %v632
    %v1881 = vunpack.c.l.b16 %v633
    %v1882 = vunpack.c.h.b16 %v633
    %v1883 = vunpack.c.l.b16 %v634
    %v1884 = vunpack.c.h.b16 %v634
    %v1885 = vunpack.c.l.b16 %v635
    %v1886 = vunpack.c.h.b16 %v635
    %v1887 = vunpack.c.l.b16 %v636
    %v1888 = vunpack.c.h.b16 %v636
    %v1889 = vunpack.c.l.b16 %v637
    %v1890 = vunpack.c.h.b16 %v637
    %v1891 = vunpack.c.l.b16 %v638
    %v1892 = vunpack.c.h.b16 %v638
    %v1893 = vunpack.c.l.b16 %v639
    %v1894 = vunpack.c.h.b16 %v639
    %v1895 = vunpack.c.l.b16 %v640
    %v1896 = vunpack.c.h.b16 %v640
    %v1897 = vunpack.c.l.b16 %v641
    %v1898 = vunpack.c.h.b16 %v641
    %v1899 = vunpack.c.l.b16 %v642
    %v1900 = vunpack.c.h.b16 %v642
    %v1901 = vunpack.c.l.b16 %v643
    %v1902 = vunpack.c.h.b16 %v643
    %v1903 = vunpack.c.l.b16 %v644
    %v1904 = vunpack.c.h.b16 %v644
    %v1905 = vunpack.c.l.b16 %v645
    %v1906 = vunpack.c.h.b16 %v645
    %v1907 = vunpack.c.l.b16 %v646
    %v1908 = vunpack.c.h.b16 %v646
    %v1909 = vunpack.c.l.b16 %v647
    %v1910 = vunpack.c.h.b16 %v647
    %v1911 = vunpack.c.l.b16 %v648
    %v1912 = vunpack.c.h.b16 %v648
    %v1913 = vunpack.c.l.b16 %v649
    %v1914 = vunpack.c.h.b16 %v649
    %v1915 = vunpack.c.l.b16 %v650
    %v1916 = vunpack.c.h.b16 %v650
    %v1917 = vunpack.c.l.b16 %v651
    %v1918 = vunpack.c.h.b16 %v651
    %v1919 = vunpack.c.l.b16 %v652
    %v1920 = vunpack.c.h.b16 %v652
    %v1921 = vunpack.c.l.b16 %v653
    %v1922 = vunpack.c.h.b16 %v653
    %v1923 = vunpack.c.l.b16 %v654
    %v1924 = vunpack.c.h.b16 %v654
    %v1925 = vunpack.c.l.b16 %v655
    %v1926 = vunpack.c.h.b16 %v655
    %v1927 = vunpack.c.l.b16 %v656
    %v1928 = vunpack.c.h.b16 %v656
    %v1929 = vunpack.c.l.b16 %v657
    %v1930 = vunpack.c.h.b16 %v657
    %v1931 = vunpack.c.l.b16 %v658
    %v1932 = vunpack.c.h.b16 %v658
    %v1933 = vunpack.c.l.b16 %v659
    %v1934 = vunpack.c.h.b16 %v659
    %v1935 = vunpack.c.l.b16 %v660
    %v1936 = vunpack.c.h.b16 %v660
    %v1937 = vunpack.c.l.b16 %v661
    %v1938 = vunpack.c.h.b16 %v661
    %v1939 = vunpack.c.l.b16 %v662
    %v1940 = vunpack.c.h.b16 %v662
    %v1941 = vunpack.c.l.b16 %v663
    %v1942 = vunpack.c.h.b16 %v663
    %v1943 = vunpack.c.l.b16 %v664
    %v1944 = vunpack.c.h.b16 %v664
    %v1945 = vunpack.c.l.b16 %v665
    %v1946 = vunpack.c.h.b16 %v665
    %v1947 = vunpack.c.l.b16 %v666
    %v1948 = vunpack.c.h.b16 %v666
    %v1949 = vunpack.c.l.b16 %v667
    %v1950 = vunpack.c.h.b16 %v667
    %v1951 = vunpack.c.l.b16 %v668
    %v1952 = vunpack.c.h.b16 %v668
    %v1953 = vunpack.c.l.b16 %v669
    %v1954 = vunpack.c.h.b16 %v669
    %v1955 = vunpack.c.l.b16 %v670
    %v1956 = vunpack.c.h.b16 %v670
    %v1957 = vunpack.c.l.b16 %v671
    %v1958 = vunpack.c.h.b16 %v671
    %v1959 = vunpack.c.l.b16 %v672
    %v1960 = vunpack.c.h.b16 %v672
    %v1961 = vunpack.c.l.b16 %v673
    %v1962 = vunpack.c.h.b16 %v673
    %v1963 = vunpack.c.l.b16 %v674
    %v1964 = vunpack.c.h.b16 %v674
    %v1965 = vunpack.c.l.b16 %v675
    %v1966 = vunpack.c.h.b16 %v675
    %v1967 = vunpack.c.l.b16 %v676
    %v1968 = vunpack.c.h.b16 %v676
    %v1969 = vunpack.c.l.b16 %v677
    %v1970 = vunpack.c.h.b16 %v677
    %v1971 = vunpack.c.l.b16 %v678
    %v1972 = vunpack.c.h.b16 %v678
    %v1973 = vunpack.c.l.b16 %v679
    %v1974 = vunpack.c.h.b16 %v679
    %v1975 = vunpack.c.l.b16 %v680
    %v1976 = vunpack.c.h.b16 %v680
    %v1977 = vunpack.c.l.b16 %v681
    %v1978 = vunpack.c.h.b16 %v681
    %v1979 = vunpack.c.l.b16 %v682
    %v1980 = vunpack.c.h.b16 %v682
    %v1981 = vunpack.c.l.b16 %v683
    %v1982 = vunpack.c.h.b16 %v683
    %v1983 = vunpack.c.l.b16 %v684
    %v1984 = vunpack.c.h.b16 %v684
    %v1985 = vunpack.c.l.b16 %v685
    %v1986 = vunpack.c.h.b16 %v685
    %v1987 = vunpack.c.l.b16 %v686
    %v1988 = vunpack.c.h.b16 %v686
    %v1989 = vunpack.c.l.b16 %v687
    %v1990 = vunpack.c.h.b16 %v687
    %v1991 = vunpack.c.l.b16 %v688
    %v1992 = vunpack.c.h.b16 %v688
    %v1993 = vunpack.c.l.b16 %v689
    %v1994 = vunpack.c.h.b16 %v689
    %v1995 = vunpack.c.l.b16 %v690
    %v1996 = vunpack.c.h.b16 %v690
    %v1997 = vunpack.c.l.b16 %v691
    %v1998 = vunpack.c.h.b16 %v691
    %v1999 = vunpack.c.l.b16 %v692
    %v2000 = vunpack.c.h.b16 %v692
    %v2001 = vunpack.c.l.b16 %v693
    %v2002 = vunpack.c.h.b16 %v693
    %v2003 = vunpack.c.l.b16 %v694
    %v2004 = vunpack.c.h.b16 %v694
    %v2005 = vunpack.c.l.b16 %v695
    %v2006 = vunpack.c.h.b16 %v695
    %v2007 = vunpack.c.l.b16 %v696
    %v2008 = vunpack.c.h.b16 %v696
    %v2009 = vunpack.c.l.b16 %v697
    %v2010 = vunpack.c.h.b16 %v697
    %v2011 = vunpack.c.l.b16 %v698
    %v2012 = vunpack.c.h.b16 %v698
    %v2013 = vunpack.c.l.b16 %v699
    %v2014 = vunpack.c.h.b16 %v699
    %v2015 = vunpack.c.l.b16 %v700
    %v2016 = vunpack.c.h.b16 %v700
    %v2017 = vunpack.c.l.b16 %v701
    %v2018 = vunpack.c.h.b16 %v701
    %v2019 = vunpack.c.l.b16 %v702
    %v2020 = vunpack.c.h.b16 %v702
    %v2021 = vunpack.c.l.b16 %v703
    %v2022 = vunpack.c.h.b16 %v703
    %v2023 = vunpack.c.l.b16 %v704
    %v2024 = vunpack.c.h.b16 %v704
    %v2025 = vunpack.c.l.b16 %v705
    %v2026 = vunpack.c.h.b16 %v705
    %v2027 = vunpack.c.l.b16 %v706
    %v2028 = vunpack.c.h.b16 %v706
    %v2029 = vunpack.c.l.b16 %v707
    %v2030 = vunpack.c.h.b16 %v707
    %v2031 = vunpack.c.l.b16 %v708
    %v2032 = vunpack.c.h.b16 %v708
    %v2033 = vunpack.c.l.b16 %v709
    %v2034 = vunpack.c.h.b16 %v709
    %v2035 = vunpack.c.l.b16 %v710
    %v2036 = vunpack.c.h.b16 %v710
    %v2037 = vunpack.c.l.b16 %v711
    %v2038 = vunpack.c.h.b16 %v711
    %v2039 = vunpack.c.l.b16 %v712
    %v2040 = vunpack.c.h.b16 %v712
    %v2041 = vunpack.c.l.b16 %v713
    %v2042 = vunpack.c.h.b16 %v713
    %v2043 = vunpack.c.l.b16 %v714
    %v2044 = vunpack.c.h.b16 %v714
    %v2045 = vunpack.c.l.b16 %v715
    %v2046 = vunpack.c.h.b16 %v715
    %v2047 = vunpack.c.l.b16 %v716
    %v2048 = vunpack.c.h.b16 %v716
    %v2049 = vunpack.c.l.b16 %v717
    %v2050 = vunpack.c.h.b16 %v717
    %v2051 = vunpack.c.l.b16 %v718
    %v2052 = vunpack.c.h.b16 %v718
    %v2053 = vunpack.c.l.b16 %v719
    %v2054 = vunpack.c.h.b16 %v719
    %v2055 = vunpack.c.l.b16 %v720
    %v2056 = vunpack.c.h.b16 %v720
    %v2057 = vunpack.c.l.b16 %v721
    %v2058 = vunpack.c.h.b16 %v721
    %v2059 = vunpack.c.l.b16 %v722
    %v2060 = vunpack.c.h.b16 %v722
    %v2061 = vunpack.c.l.b16 %v723
    %v2062 = vunpack.c.h.b16 %v723
    %v2063 = vunpack.c.l.b16 %v724
    %v2064 = vunpack.c.h.b16 %v724
    %v2065 = vunpack.c.l.b16 %v725
    %v2066 = vunpack.c.h.b16 %v725
    %v2067 = vunpack.c.l.b16 %v726
    %v2068 = vunpack.c.h.b16 %v726
    %v2069 = vunpack.c.l.b16 %v727
    %v2070 = vunpack.c.h.b16 %v727
    %v2071 = vunpack.c.l.b16 %v728
    %v2072 = vunpack.c.h.b16 %v728
    %v2073 = vunpack.c.l.b16 %v729
    %v2074 = vunpack.c.h.b16 %v729
    %v2075 = vunpack.c.l.b16 %v730
    %v2076 = vunpack.c.h.b16 %v730
    %v2077 = vunpack.c.l.b16 %v731
    %v2078 = vunpack.c.h.b16 %v731
    %v2079 = vunpack.c.l.b16 %v732
    %v2080 = vunpack.c.h.b16 %v732
    %v2081 = vunpack.c.l.b16 %v733
    %v2082 = vunpack.c.h.b16 %v733
    %v2083 = vunpack.c.l.b16 %v734
    %v2084 = vunpack.c.h.b16 %v734
    %v2085 = vunpack.c.l.b16 %v735
    %v2086 = vunpack.c.h.b16 %v735
    %v2087 = vunpack.c.l.b16 %v736
    %v2088 = vunpack.c.h.b16 %v736
    %v2089 = vunpack.c.l.b16 %v737
    %v2090 = vunpack.c.h.b16 %v737
    %v2091 = vunpack.c.l.b16 %v738
    %v2092 = vunpack.c.h.b16 %v738
    %v2093 = vunpack.c.l.b16 %v739
    %v2094 = vunpack.c.h.b16 %v739
    %v2095 = vunpack.c.l.b16 %v740
    %v2096 = vunpack.c.h.b16 %v740
    %v2097 = vunpack.c.l.b16 %v741
    %v2098 = vunpack.c.h.b16 %v741
    %v2099 = vunpack.c.l.b16 %v742
    %v2100 = vunpack.c.h.b16 %v742
    %v2101 = vunpack.c.l.b16 %v743
    %v2102 = vunpack.c.h.b16 %v743
    %v2103 = vunpack.c.l.b16 %v744
    %v2104 = vunpack.c.h.b16 %v744
    %v2105 = vunpack.c.l.b16 %v745
    %v2106 = vunpack.c.h.b16 %v745
    %v2107 = vunpack.c.l.b16 %v746
    %v2108 = vunpack.c.h.b16 %v746
    %v2109 = vunpack.c.l.b16 %v747
    %v2110 = vunpack.c.h.b16 %v747
    %v2111 = vunpack.c.l.b16 %v748
    %v2112 = vunpack.c.h.b16 %v748
    %v2113 = vunpack.c.l.b16 %v749
    %v2114 = vunpack.c.h.b16 %v749
    %v2115 = vunpack.c.l.b16 %v750
    %v2116 = vunpack.c.h.b16 %v750
    %v2117 = vunpack.c.l.b16 %v751
    %v2118 = vunpack.c.h.b16 %v751
    %v2119 = vunpack.c.l.b16 %v752
    %v2120 = vunpack.c.h.b16 %v752
    %v2121 = vunpack.c.l.b16 %v753
    %v2122 = vunpack.c.h.b16 %v753
    %v2123 = vunpack.c.l.b16 %v754
    %v2124 = vunpack.c.h.b16 %v754
    %v2125 = vunpack.c.l.b16 %v755
    %v2126 = vunpack.c.h.b16 %v755
    %v2127 = vunpack.c.l.b16 %v756
    %v2128 = vunpack.c.h.b16 %v756
    %v2129 = vunpack.c.l.b16 %v757
    %v2130 = vunpack.c.h.b16 %v757
    %v2131 = vunpack.c.l.b16 %v758
    %v2132 = vunpack.c.h.b16 %v758
    %v2133 = vunpack.c.l.b16 %v759
    %v2134 = vunpack.c.h.b16 %v759
    %v2135 = vunpack.c.l.b16 %v760
    %v2136 = vunpack.c.h.b16 %v760
    %v2137 = vunpack.c.l.b16 %v761
    %v2138 = vunpack.c.h.b16 %v761
    %v2139 = vunpack.c.l.b16 %v762
    %v2140 = vunpack.c.h.b16 %v762
    %v2141 = vunpack.c.l.b16 %v763
    %v2142 = vunpack.c.h.b16 %v763
    %v2143 = vunpack.c.l.b16 %v764
    %v2144 = vunpack.c.h.b16 %v764
    %v2145 = vunpack.c.l.b16 %v765
    %v2146 = vunpack.c.h.b16 %v765
    %v2147 = vunpack.c.l.b16 %v766
    %v2148 = vunpack.c.h.b16 %v766
    %v2149 = vunpack.c.l.b16 %v767
    %v2150 = vunpack.c.h.b16 %v767
    %v2151 = vunpack.c.l.b16 %v768
    %v2152 = vunpack.c.h.b16 %v768
    %v2153 = vunpack.c.l.b16 %v769
    %v2154 = vunpack.c.h.b16 %v769
    %v2155 = vunpack.c.l.b16 %v770
    %v2156 = vunpack.c.h.b16 %v770
    %v2157 = vunpack.c.l.b16 %v771
    %v2158 = vunpack.c.h.b16 %v771
    %v2159 = vunpack.c.l.b16 %v772
    %v2160 = vunpack.c.h.b16 %v772
    %v2161 = vunpack.c.l.b16 %v773
    %v2162 = vunpack.c.h.b16 %v773
    %v2163 = vunpack.c.l.b16 %v774
    %v2164 = vunpack.c.h.b16 %v774
    %v2165 = vunpack.c.l.b16 %v775
    %v2166 = vunpack.c.h.b16 %v775
    %v2167 = vunpack.c.l.b16 %v776
    %v2168 = vunpack.c.h.b16 %v776
    %v2169 = vunpack.c.l.b16 %v777
    %v2170 = vunpack.c.h.b16 %v777
    %v2171 = vunpack.c.l.b16 %v778
    %v2172 = vunpack.c.h.b16 %v778
    %v2173 = vunpack.c.l.b16 %v779
    %v2174 = vunpack.c.h.b16 %v779
    %v2175 = vunpack.c.l.b16 %v780
    %v2176 = vunpack.c.h.b16 %v780
    %v2177 = vunpack.c.l.b16 %v781
    %v2178 = vunpack.c.h.b16 %v781
    %v2179 = vunpack.c.l.b16 %v782
    %v2180 = vunpack.c.h.b16 %v782
    %v2181 = vunpack.c.l.b16 %v783
    %v2182 = vunpack.c.h.b16 %v783
    %v2183 = vunpack.c.l.b16 %v784
    %v2184 = vunpack.c.h.b16 %v784
    %v2185 = vunpack.c.l.b16 %v785
    %v2186 = vunpack.c.h.b16 %v785
    %v2187 = vunpack.c.l.b16 %v786
    %v2188 = vunpack.c.h.b16 %v786
    %v2189 = vunpack.c.l.b16 %v787
    %v2190 = vunpack.c.h.b16 %v787
    %v2191 = vunpack.c.l.b16 %v788
    %v2192 = vunpack.c.h.b16 %v788
    %v2193 = vunpack.c.l.b16 %v789
    %v2194 = vunpack.c.h.b16 %v789
    %v2195 = vunpack.c.l.b16 %v790
    %v2196 = vunpack.c.h.b16 %v790
    %v2197 = vunpack.c.l.b16 %v791
    %v2198 = vunpack.c.h.b16 %v791
    %v2199 = vunpack.c.l.b16 %v792
    %v2200 = vunpack.c.h.b16 %v792
    %v2201 = vunpack.c.l.b16 %v793
    %v2202 = vunpack.c.h.b16 %v793
    %v2203 = vunpack.c.l.b16 %v794
    %v2204 = vunpack.c.h.b16 %v794
    %v2205 = vunpack.c.l.b16 %v795
    %v2206 = vunpack.c.h.b16 %v795
    %v2207 = vunpack.c.l.b16 %v796
    %v2208 = vunpack.c.h.b16 %v796
    %v2209 = vunpack.c.l.b16 %v797
    %v2210 = vunpack.c.h.b16 %v797
    %v2211 = vunpack.c.l.b16 %v798
    %v2212 = vunpack.c.h.b16 %v798
    %v2213 = vunpack.c.l.b16 %v799
    %v2214 = vunpack.c.h.b16 %v799
    %v2215 = vunpack.c.l.b16 %v800
    %v2216 = vunpack.c.h.b16 %v800
    %v2217 = vunpack.c.l.b16 %v801
    %v2218 = vunpack.c.h.b16 %v801
    %v2219 = vunpack.c.l.b16 %v802
    %v2220 = vunpack.c.h.b16 %v802
    %v2221 = vunpack.c.l.b16 %v803
    %v2222 = vunpack.c.h.b16 %v803
    %v2223 = vunpack.c.l.b16 %v804
    %v2224 = vunpack.c.h.b16 %v804
    %v2225 = vunpack.c.l.b16 %v805
    %v2226 = vunpack.c.h.b16 %v805
    %v2227 = vunpack.c.l.b16 %v806
    %v2228 = vunpack.c.h.b16 %v806
    %v2229 = vunpack.c.l.b16 %v807
    %v2230 = vunpack.c.h.b16 %v807
    %v2231 = vunpack.c.l.b16 %v808
    %v2232 = vunpack.c.h.b16 %v808
    %v2233 = vunpack.c.l.b16 %v809
    %v2234 = vunpack.c.h.b16 %v809
    %v2235 = vunpack.c.l.b16 %v810
    %v2236 = vunpack.c.h.b16 %v810
    %v2237 = vunpack.c.l.b16 %v811
    %v2238 = vunpack.c.h.b16 %v811
    %v2239 = vunpack.c.l.b16 %v812
    %v2240 = vunpack.c.h.b16 %v812
    %v2241 = vunpack.c.l.b16 %v813
    %v2242 = vunpack.c.h.b16 %v813
    %v2243 = vunpack.c.l.b16 %v814
    %v2244 = vunpack.c.h.b16 %v814
    %v2245 = vunpack.c.l.b16 %v815
    %v2246 = vunpack.c.h.b16 %v815
    %v2247 = vunpack.c.l.b16 %v816
    %v2248 = vunpack.c.h.b16 %v816
    %v2249 = vunpack.c.l.b16 %v817
    %v2250 = vunpack.c.h.b16 %v817
    %v2251 = vunpack.c.l.b16 %v818
    %v2252 = vunpack.c.h.b16 %v818
    %v2253 = vunpack.c.l.b16 %v819
    %v2254 = vunpack.c.h.b16 %v819
    %v2255 = vunpack.c.l.b16 %v820
    %v2256 = vunpack.c.h.b16 %v820
    %v2257 = vunpack.c.l.b16 %v821
    %v2258 = vunpack.c.h.b16 %v821
    %v2259 = vunpack.c.l.b16 %v822
    %v2260 = vunpack.c.h.b16 %v822
    %v2261 = vunpack.c.l.b16 %v823
    %v2262 = vunpack.c.h.b16 %v823
    %v2263 = vunpack.c.l.b16 %v824
    %v2264 = vunpack.c.h.b16 %v824
    %v2265 = vunpack.c.l.b16 %v825
    %v2266 = vunpack.c.h.b16 %v825
    %v2267 = vunpack.c.l.b16 %v826
    %v2268 = vunpack.c.h.b16 %v826
    %v2269 = vunpack.c.l.b16 %v827
    %v2270 = vunpack.c.h.b16 %v827
    %v2271 = vunpack.c.l.b16 %v828
    %v2272 = vunpack.c.h.b16 %v828
    %v2273 = vunpack.c.l.b16 %v829
    %v2274 = vunpack.c.h.b16 %v829
    %v2275 = vunpack.c.l.b16 %v830
    %v2276 = vunpack.c.h.b16 %v830
    %v2277 = vunpack.c.l.b16 %v831
    %v2278 = vunpack.c.h.b16 %v831
    %v2279 = vunpack.c.l.b16 %v832
    %v2280 = vunpack.c.h.b16 %v832
    %v2281 = vunpack.c.l.b16 %v833
    %v2282 = vunpack.c.h.b16 %v833
    %v2283 = vunpack.c.l.b16 %v834
    %v2284 = vunpack.c.h.b16 %v834
    %v2285 = vunpack.c.l.b16 %v835
    %v2286 = vunpack.c.h.b16 %v835
    %v2287 = vunpack.c.l.b16 %v836
    %v2288 = vunpack.c.h.b16 %v836
    %v2289 = vunpack.c.l.b16 %v837
    %v2290 = vunpack.c.h.b16 %v837
    %v2291 = vunpack.c.l.b16 %v838
    %v2292 = vunpack.c.h.b16 %v838
    %v2293 = vunpack.c.l.b16 %v839
    %v2294 = vunpack.c.h.b16 %v839
    %v2295 = vunpack.c.l.b16 %v840
    %v2296 = vunpack.c.h.b16 %v840
    %v2297 = vunpack.c.l.b16 %v841
    %v2298 = vunpack.c.h.b16 %v841
    %v2299 = vunpack.c.l.b16 %v842
    %v2300 = vunpack.c.h.b16 %v842
    %v2301 = vunpack.c.l.b16 %v843
    %v2302 = vunpack.c.h.b16 %v843
    %v2303 = vunpack.c.l.b16 %v844
    %v2304 = vunpack.c.h.b16 %v844
    %v2305 = vunpack.c.l.b16 %v845
    %v2306 = vunpack.c.h.b16 %v845
    %v2307 = vunpack.c.l.b16 %v846
    %v2308 = vunpack.c.h.b16 %v846
    %v2309 = vunpack.c.l.b16 %v847
    %v2310 = vunpack.c.h.b16 %v847
    %v2311 = vunpack.c.l.b16 %v848
    %v2312 = vunpack.c.h.b16 %v848
    %v2313 = vunpack.c.l.b16 %v849
    %v2314 = vunpack.c.h.b16 %v849
    %v2315 = vunpack.c.l.b16 %v850
    %v2316 = vunpack.c.h.b16 %v850
    %v2317 = vunpack.c.l.b16 %v851
    %v2318 = vunpack.c.h.b16 %v851
    %v2319 = vunpack.c.l.b16 %v852
    %v2320 = vunpack.c.h.b16 %v852
    %v2321 = vunpack.c.l.b16 %v853
    %v2322 = vunpack.c.h.b16 %v853
    %v2323 = vunpack.c.l.b16 %v854
    %v2324 = vunpack.c.h.b16 %v854
    %v2325 = vunpack.c.l.b16 %v855
    %v2326 = vunpack.c.h.b16 %v855
    %v2327 = vunpack.c.l.b16 %v856
    %v2328 = vunpack.c.h.b16 %v856
    %v2329 = vunpack.c.l.b16 %v857
    %v2330 = vunpack.c.h.b16 %v857
    %v2331 = vunpack.c.l.b16 %v858
    %v2332 = vunpack.c.h.b16 %v858
    %v2333 = vunpack.c.l.b16 %v859
    %v2334 = vunpack.c.h.b16 %v859
    %v2335 = vunpack.c.l.b16 %v860
    %v2336 = vunpack.c.h.b16 %v860
    %v2337 = vunpack.c.l.b16 %v861
    %v2338 = vunpack.c.h.b16 %v861
    %v2339 = vunpack.c.l.b16 %v862
    %v2340 = vunpack.c.h.b16 %v862
    %v2341 = vunpack.c.l.b16 %v863
    %v2342 = vunpack.c.h.b16 %v863
    %v2343 = vunpack.c.l.b16 %v864
    %v2344 = vunpack.c.h.b16 %v864
    %v2345 = vunpack.c.l.b16 %v865
    %v2346 = vunpack.c.h.b16 %v865
    %v2347 = vunpack.c.l.b16 %v866
    %v2348 = vunpack.c.h.b16 %v866
    %v2349 = vunpack.c.l.b16 %v867
    %v2350 = vunpack.c.h.b16 %v867
    %v2351 = vunpack.c.l.b16 %v868
    %v2352 = vunpack.c.h.b16 %v868
    %v2353 = vunpack.c.l.b16 %v869
    %v2354 = vunpack.c.h.b16 %v869
    %v2355 = vunpack.c.l.b16 %v870
    %v2356 = vunpack.c.h.b16 %v870
    %v2357 = vunpack.c.l.b16 %v871
    %v2358 = vunpack.c.h.b16 %v871
    %v2359 = vunpack.c.l.b16 %v872
    %v2360 = vunpack.c.h.b16 %v872
    %v2361 = vunpack.c.l.b16 %v873
    %v2362 = vunpack.c.h.b16 %v873
    %v2363 = vunpack.c.l.b16 %v874
    %v2364 = vunpack.c.h.b16 %v874
    %v2365 = vunpack.c.l.b16 %v875
    %v2366 = vunpack.c.h.b16 %v875
    %v2367 = vunpack.c.l.b16 %v876
    %v2368 = vunpack.c.h.b16 %v876
    %v2369 = vunpack.c.l.b16 %v877
    %v2370 = vunpack.c.h.b16 %v877
    %v2371 = vunpack.c.l.b16 %v878
    %v2372 = vunpack.c.h.b16 %v878
    %v2373 = vunpack.c.l.b16 %v879
    %v2374 = vunpack.c.h.b16 %v879
    %v2375 = vunpack.c.l.b16 %v880
    %v2376 = vunpack.c.h.b16 %v880
    %v2377 = vunpack.c.l.b16 %v881
    %v2378 = vunpack.c.h.b16 %v881
    %v2379 = vunpack.c.l.b16 %v882
    %v2380 = vunpack.c.h.b16 %v882
    %v2381 = vunpack.c.l.b16 %v883
    %v2382 = vunpack.c.h.b16 %v883
    %v2383 = vunpack.c.l.b16 %v884
    %v2384 = vunpack.c.h.b16 %v884
    %v2385 = vunpack.c.l.b16 %v885
    %v2386 = vunpack.c.h.b16 %v885
    %v2387 = vunpack.c.l.b16 %v886
    %v2388 = vunpack.c.h.b16 %v886
    %v2389 = vunpack.c.l.b16 %v887
    %v2390 = vunpack.c.h.b16 %v887
    %v2391 = vunpack.c.l.b16 %v888
    %v2392 = vunpack.c.h.b16 %v888
    %v2393 = vunpack.c.l.b16 %v889
    %v2394 = vunpack.c.h.b16 %v889
    %v2395 = vunpack.c.l.b16 %v890
    %v2396 = vunpack.c.h.b16 %v890
    %v2397 = vunpack.c.l.b16 %v891
    %v2398 = vunpack.c.h.b16 %v891
    %v2399 = vunpack.c.l.b16 %v892
    %v2400 = vunpack.c.h.b16 %v892
    %v2401 = vunpack.c.l.b16 %v893
    %v2402 = vunpack.c.h.b16 %v893
    %v2403 = vunpack.c.l.b16 %v894
    %v2404 = vunpack.c.h.b16 %v894
    %v2405 = vunpack.c.l.b16 %v895
    %v2406 = vunpack.c.h.b16 %v895
    %v2407 = vunpack.c.l.b16 %v896
    %v2408 = vunpack.c.h.b16 %v896
    %v2409 = vunpack.c.l.b16 %v897
    %v2410 = vunpack.c.h.b16 %v897
    %v2411 = vunpack.c.l.b16 %v898
    %v2412 = vunpack.c.h.b16 %v898
    %v2413 = vunpack.c.l.b16 %v899
    %v2414 = vunpack.c.h.b16 %v899
    %v2415 = vunpack.c.l.b16 %v900
    %v2416 = vunpack.c.h.b16 %v900
    %v2417 = vunpack.c.l.b16 %v901
    %v2418 = vunpack.c.h.b16 %v901
    %v2419 = vunpack.c.l.b16 %v902
    %v2420 = vunpack.c.h.b16 %v902
    %v2421 = vunpack.c.l.b16 %v903
    %v2422 = vunpack.c.h.b16 %v903
    %v2423 = vunpack.c.l.b16 %v904
    %v2424 = vunpack.c.h.b16 %v904
    %v2425 = vunpack.c.l.b16 %v905
    %v2426 = vunpack.c.h.b16 %v905
    %v2427 = vunpack.c.l.b16 %v906
    %v2428 = vunpack.c.h.b16 %v906
    %v2429 = vunpack.c.l.b16 %v907
    %v2430 = vunpack.c.h.b16 %v907
    %v2431 = vunpack.c.l.b16 %v908
    %v2432 = vunpack.c.h.b16 %v908
    %v2433 = vunpack.c.l.b16 %v909
    %v2434 = vunpack.c.h.b16 %v909
    %v2435 = vunpack.c.l.b16 %v910
    %v2436 = vunpack.c.h.b16 %v910
    %v2437 = vunpack.c.l.b16 %v911
    %v2438 = vunpack.c.h.b16 %v911
    %v2439 = vunpack.c.l.b16 %v912
    %v2440 = vunpack.c.h.b16 %v912
    %v2441 = vunpack.c.l.b16 %v913
    %v2442 = vunpack.c.h.b16 %v913
    %v2443 = vunpack.c.l.b16 %v914
    %v2444 = vunpack.c.h.b16 %v914
    %v2445 = vunpack.c.l.b16 %v915
    %v2446 = vunpack.c.h.b16 %v915
    %v2447 = vunpack.c.l.b16 %v916
    %v2448 = vunpack.c.h.b16 %v916
    %v2449 = vunpack.c.l.b16 %v917
    %v2450 = vunpack.c.h.b16 %v917
    %v2451 = vunpack.c.l.b16 %v918
    %v2452 = vunpack.c.h.b16 %v918
    %v2453 = vunpack.c.l.b16 %v919
    %v2454 = vunpack.c.h.b16 %v919
    %v2455 = vunpack.c.l.b16 %v920
    %v2456 = vunpack.c.h.b16 %v920
    %v2457 = vunpack.c.l.b16 %v921
    %v2458 = vunpack.c.h.b16 %v921
    %v2459 = vunpack.c.l.b16 %v922
    %v2460 = vunpack.c.h.b16 %v922
    %v2461 = vunpack.c.l.b16 %v923
    %v2462 = vunpack.c.h.b16 %v923
    %v2463 = vunpack.c.l.b16 %v924
    %v2464 = vunpack.c.h.b16 %v924
    %v2465 = vunpack.c.l.b16 %v925
    %v2466 = vunpack.c.h.b16 %v925
    %v2467 = vunpack.c.l.b16 %v926
    %v2468 = vunpack.c.h.b16 %v926
    %v2469 = vunpack.c.l.b16 %v927
    %v2470 = vunpack.c.h.b16 %v927
    %v2471 = vunpack.c.l.b16 %v928
    %v2472 = vunpack.c.h.b16 %v928
    %v2473 = vunpack.c.l.b16 %v929
    %v2474 = vunpack.c.h.b16 %v929
    %v2475 = vunpack.c.l.b16 %v930
    %v2476 = vunpack.c.h.b16 %v930
    %v2477 = vunpack.c.l.b16 %v931
    %v2478 = vunpack.c.h.b16 %v931
    %v2479 = vunpack.c.l.b16 %v932
    %v2480 = vunpack.c.h.b16 %v932
    %v2481 = vunpack.c.l.b16 %v933
    %v2482 = vunpack.c.h.b16 %v933
    %v2483 = vunpack.c.l.b16 %v934
    %v2484 = vunpack.c.h.b16 %v934
    %v2485 = vunpack.c.l.b16 %v935
    %v2486 = vunpack.c.h.b16 %v935
    %v2487 = vunpack.c.l.b16 %v936
    %v2488 = vunpack.c.h.b16 %v936
    %v2489 = vunpack.c.l.b16 %v937
    %v2490 = vunpack.c.h.b16 %v937
    %v2491 = vunpack.c.l.b16 %v938
    %v2492 = vunpack.c.h.b16 %v938
    %v2493 = vunpack.c.l.b16 %v939
    %v2494 = vunpack.c.h.b16 %v939
    %v2495 = vunpack.c.l.b16 %v940
    %v2496 = vunpack.c.h.b16 %v940
    %v2497 = vunpack.c.l.b16 %v941
    %v2498 = vunpack.c.h.b16 %v941
    %v2499 = vunpack.c.l.b16 %v942
    %v2500 = vunpack.c.h.b16 %v942
    %v2501 = vunpack.c.l.b16 %v943
    %v2502 = vunpack.c.h.b16 %v943
    %v2503 = vunpack.c.l.b16 %v944
    %v2504 = vunpack.c.h.b16 %v944
    %v2505 = vunpack.c.l.b16 %v945
    %v2506 = vunpack.c.h.b16 %v945
    %v2507 = vunpack.c.l.b16 %v946
    %v2508 = vunpack.c.h.b16 %v946
    %v2509 = vunpack.c.l.b16 %v947
    %v2510 = vunpack.c.h.b16 %v947
    %v2511 = vunpack.c.l.b16 %v948
    %v2512 = vunpack.c.h.b16 %v948
    %v2513 = vunpack.c.l.b16 %v949
    %v2514 = vunpack.c.h.b16 %v949
    %v2515 = vunpack.c.l.b16 %v950
    %v2516 = vunpack.c.h.b16 %v950
    %v2517 = vunpack.c.l.b16 %v951
    %v2518 = vunpack.c.h.b16 %v951
    %v2519 = vunpack.c.l.b16 %v952
    %v2520 = vunpack.c.h.b16 %v952
    %v2521 = vunpack.c.l.b16 %v953
    %v2522 = vunpack.c.h.b16 %v953
    %v2523 = vunpack.c.l.b16 %v954
    %v2524 = vunpack.c.h.b16 %v954
    %v2525 = vunpack.c.l.b16 %v955
    %v2526 = vunpack.c.h.b16 %v955
    %v2527 = vunpack.c.l.b16 %v956
    %v2528 = vunpack.c.h.b16 %v956
    %v2529 = vunpack.c.l.b16 %v957
    %v2530 = vunpack.c.h.b16 %v957
    %v2531 = vunpack.c.l.b16 %v958
    %v2532 = vunpack.c.h.b16 %v958
    %v2533 = vunpack.c.l.b16 %v959
    %v2534 = vunpack.c.h.b16 %v959
    %v2535 = vunpack.c.l.b16 %v960
    %v2536 = vunpack.c.h.b16 %v960
    %v2537 = vunpack.c.l.b16 %v961
    %v2538 = vunpack.c.h.b16 %v961
    %v2539 = vunpack.c.l.b16 %v962
    %v2540 = vunpack.c.h.b16 %v962
    %v2541 = vunpack.c.l.b16 %v963
    %v2542 = vunpack.c.h.b16 %v963
    %v2543 = vunpack.c.l.b16 %v964
    %v2544 = vunpack.c.h.b16 %v964
    %v2545 = vunpack.c.l.b16 %v965
    %v2546 = vunpack.c.h.b16 %v965
    %v2547 = vunpack.c.l.b16 %v966
    %v2548 = vunpack.c.h.b16 %v966
    %v2549 = vunpack.c.l.b16 %v967
    %v2550 = vunpack.c.h.b16 %v967
    %v2551 = vunpack.c.l.b16 %v968
    %v2552 = vunpack.c.h.b16 %v968
    %v2553 = vunpack.c.l.b16 %v969
    %v2554 = vunpack.c.h.b16 %v969
    %v2555 = vunpack.c.l.b16 %v970
    %v2556 = vunpack.c.h.b16 %v970
    %v2557 = vunpack.c.l.b16 %v971
    %v2558 = vunpack.c.h.b16 %v971
    %v2559 = vunpack.c.l.b16 %v972
    %v2560 = vunpack.c.h.b16 %v972
    %v2561 = vunpack.c.l.b16 %v973
    %v2562 = vunpack.c.h.b16 %v973
    %v2563 = vunpack.c.l.b16 %v974
    %v2564 = vunpack.c.h.b16 %v974
    %v2565 = vunpack.c.l.b16 %v975
    %v2566 = vunpack.c.h.b16 %v975
    %v2567 = vunpack.c.l.b16 %v976
    %v2568 = vunpack.c.h.b16 %v976
    %v2569 = vunpack.c.l.b16 %v977
    %v2570 = vunpack.c.h.b16 %v977
    %v2571 = vunpack.c.l.b16 %v978
    %v2572 = vunpack.c.h.b16 %v978
    %v2573 = vunpack.c.l.b16 %v979
    %v2574 = vunpack.c.h.b16 %v979
    %v2575 = vunpack.c.l.b16 %v980
    %v2576 = vunpack.c.h.b16 %v980
    %v2577 = vunpack.c.l.b16 %v981
    %v2578 = vunpack.c.h.b16 %v981
    %v2579 = vunpack.c.l.b16 %v982
    %v2580 = vunpack.c.h.b16 %v982
    %v2581 = vunpack.c.l.b16 %v983
    %v2582 = vunpack.c.h.b16 %v983
    %v2583 = vunpack.c.l.b16 %v984
    %v2584 = vunpack.c.h.b16 %v984
    %v2585 = vunpack.c.l.b16 %v985
    %v2586 = vunpack.c.h.b16 %v985
    %v2587 = vunpack.c.l.b16 %v986
    %v2588 = vunpack.c.h.b16 %v986
    %v2589 = vunpack.c.l.b16 %v987
    %v2590 = vunpack.c.h.b16 %v987
    %v2591 = vunpack.c.l.b16 %v988
    %v2592 = vunpack.c.h.b16 %v988
    %v2593 = vunpack.c.l.b16 %v989
    %v2594 = vunpack.c.h.b16 %v989
    %v2595 = vunpack.c.l.b16 %v990
    %v2596 = vunpack.c.h.b16 %v990
    %v2597 = vunpack.c.l.b16 %v991
    %v2598 = vunpack.c.h.b16 %v991
    %v2599 = vunpack.c.l.b16 %v992
    %v2600 = vunpack.c.h.b16 %v992
    %v2601 = vunpack.c.l.b16 %v993
    %v2602 = vunpack.c.h.b16 %v993
    %v2603 = vunpack.c.l.b16 %v994
    %v2604 = vunpack.c.h.b16 %v994
    %v2605 = vunpack.c.l.b16 %v995
    %v2606 = vunpack.c.h.b16 %v995
    %v2607 = vunpack.c.l.b16 %v996
    %v2608 = vunpack.c.h.b16 %v996
    %v2609 = vunpack.c.l.b16 %v997
    %v2610 = vunpack.c.h.b16 %v997
    %v2611 = vunpack.c.l.b16 %v998
    %v2612 = vunpack.c.h.b16 %v998
    %v2613 = vunpack.c.l.b16 %v999
    %v2614 = vunpack.c.h.b16 %v999
    %v2615 = vunpack.c.l.b16 %v1000
    %v2616 = vunpack.c.h.b16 %v1000
    %v2617 = vunpack.c.l.b16 %v1001
    %v2618 = vunpack.c.h.b16 %v1001
    %v2619 = vunpack.c.l.b16 %v1002
    %v2620 = vunpack.c.h.b16 %v1002
    %v2621 = vunpack.c.l.b16 %v1003
    %v2622 = vunpack.c.h.b16 %v1003
    %v2623 = vunpack.c.l.b16 %v1004
    %v2624 = vunpack.c.h.b16 %v1004
    %v2625 = vunpack.c.l.b16 %v1005
    %v2626 = vunpack.c.h.b16 %v1005
    %v2627 = vunpack.c.l.b16 %v1006
    %v2628 = vunpack.c.h.b16 %v1006
    %v2629 = vunpack.c.l.b16 %v1007
    %v2630 = vunpack.c.h.b16 %v1007
    %v2631 = vunpack.c.l.b16 %v1008
    %v2632 = vunpack.c.h.b16 %v1008
    %v2633 = vunpack.c.l.b16 %v1009
    %v2634 = vunpack.c.h.b16 %v1009
    %v2635 = vunpack.c.l.b16 %v1010
    %v2636 = vunpack.c.h.b16 %v1010
    %v2637 = vunpack.c.l.b16 %v1011
    %v2638 = vunpack.c.h.b16 %v1011
    %v2639 = vunpack.c.l.b16 %v1012
    %v2640 = vunpack.c.h.b16 %v1012
    %v2641 = vunpack.c.l.b16 %v1013
    %v2642 = vunpack.c.h.b16 %v1013
    %v2643 = vunpack.c.l.b16 %v1014
    %v2644 = vunpack.c.h.b16 %v1014
    %v2645 = vunpack.c.l.b16 %v1015
    %v2646 = vunpack.c.h.b16 %v1015
    %v2647 = vunpack.c.l.b16 %v1016
    %v2648 = vunpack.c.h.b16 %v1016
    %v2649 = vunpack.c.l.b16 %v1017
    %v2650 = vunpack.c.h.b16 %v1017
    %v2651 = vunpack.c.l.b16 %v1018
    %v2652 = vunpack.c.h.b16 %v1018
    %v2653 = vunpack.c.l.b16 %v1019
    %v2654 = vunpack.c.h.b16 %v1019
    %v2655 = vunpack.c.l.b16 %v1020
    %v2656 = vunpack.c.h.b16 %v1020
    %v2657 = vunpack.c.l.b16 %v1021
    %v2658 = vunpack.c.h.b16 %v1021
    %v2659 = vunpack.c.l.b16 %v1022
    %v2660 = vunpack.c.h.b16 %v1022
    %v2661 = vunpack.c.l.b16 %v1023
    %v2662 = vunpack.c.h.b16 %v1023
    %v2663 = vunpack.c.l.b16 %v1024
    %v2664 = vunpack.c.h.b16 %v1024
    %v2665 = vunpack.c.l.b16 %v1025
    %v2666 = vunpack.c.h.b16 %v1025
    %v2667 = vunpack.c.l.b16 %v1026
    %v2668 = vunpack.c.h.b16 %v1026
    %v2669 = vunpack.c.l.b16 %v1027
    %v2670 = vunpack.c.h.b16 %v1027
    %v2671 = vunpack.c.l.b16 %v1028
    %v2672 = vunpack.c.h.b16 %v1028
    %v2673 = vunpack.c.l.b16 %v1029
    %v2674 = vunpack.c.h.b16 %v1029
    %v2675 = vunpack.c.l.b16 %v1030
    %v2676 = vunpack.c.h.b16 %v1030
    %v2677 = vunpack.c.l.b16 %v1031
    %v2678 = vunpack.c.h.b16 %v1031
    %v2679 = vunpack.c.l.b16 %v1032
    %v2680 = vunpack.c.h.b16 %v1032
    %v2681 = vunpack.c.l.b16 %v1033
    %v2682 = vunpack.c.h.b16 %v1033
    %v2683 = vunpack.c.l.b16 %v1034
    %v2684 = vunpack.c.h.b16 %v1034
    %v2685 = vunpack.c.l.b16 %v1035
    %v2686 = vunpack.c.h.b16 %v1035
    %v2687 = vunpack.c.l.b16 %v1036
    %v2688 = vunpack.c.h.b16 %v1036
    %v2689 = vunpack.c.l.b16 %v1037
    %v2690 = vunpack.c.h.b16 %v1037
    %v2691 = vunpack.c.l.b16 %v1038
    %v2692 = vunpack.c.h.b16 %v1038
    %v2693 = vunpack.c.l.b16 %v1039
    %v2694 = vunpack.c.h.b16 %v1039
    %v2695 = vunpack.c.l.b16 %v1040
    %v2696 = vunpack.c.h.b16 %v1040
    %v2697 = vunpack.c.l.b16 %v1041
    %v2698 = vunpack.c.h.b16 %v1041
    %v2699 = vunpack.c.l.b16 %v1042
    %v2700 = vunpack.c.h.b16 %v1042
    %v2701 = vunpack.c.l.b16 %v1043
    %v2702 = vunpack.c.h.b16 %v1043
    %v2703 = vunpack.c.l.b16 %v1044
    %v2704 = vunpack.c.h.b16 %v1044
    %v2705 = vunpack.c.l.b16 %v1045
    %v2706 = vunpack.c.h.b16 %v1045
    %v2707 = vunpack.c.l.b16 %v1046
    %v2708 = vunpack.c.h.b16 %v1046
    %v2709 = vunpack.c.l.b16 %v1047
    %v2710 = vunpack.c.h.b16 %v1047
    %v2711 = vunpack.c.l.b16 %v1048
    %v2712 = vunpack.c.h.b16 %v1048
    %v2713 = vunpack.c.l.b16 %v1049
    %v2714 = vunpack.c.h.b16 %v1049
    %v2715 = vunpack.c.l.b16 %v1050
    %v2716 = vunpack.c.h.b16 %v1050
    %v2717 = vunpack.c.l.b16 %v1051
    %v2718 = vunpack.c.h.b16 %v1051
    %v2719 = vunpack.c.l.b16 %v1052
    %v2720 = vunpack.c.h.b16 %v1052
    %v2721 = vunpack.c.l.b16 %v1053
    %v2722 = vunpack.c.h.b16 %v1053
    %v2723 = vunpack.c.l.b16 %v1054
    %v2724 = vunpack.c.h.b16 %v1054
    %v2725 = vunpack.c.l.b16 %v1055
    %v2726 = vunpack.c.h.b16 %v1055
    %v2727 = vunpack.c.l.b16 %v1056
    %v2728 = vunpack.c.h.b16 %v1056
    %v2729 = vunpack.c.l.b16 %v1057
    %v2730 = vunpack.c.h.b16 %v1057
    %v2731 = vunpack.c.l.b16 %v1058
    %v2732 = vunpack.c.h.b16 %v1058
    %v2733 = vunpack.c.l.b16 %v1059
    %v2734 = vunpack.c.h.b16 %v1059
    %v2735 = vunpack.c.l.b16 %v1060
    %v2736 = vunpack.c.h.b16 %v1060
    %v2737 = vunpack.c.l.b16 %v1061
    %v2738 = vunpack.c.h.b16 %v1061
    %v2739 = vunpack.c.l.b16 %v1062
    %v2740 = vunpack.c.h.b16 %v1062
    %v2741 = vunpack.c.l.b16 %v1063
    %v2742 = vunpack.c.h.b16 %v1063
    %v2743 = vunpack.c.l.b16 %v1064
    %v2744 = vunpack.c.h.b16 %v1064
    %v2745 = vunpack.c.l.b16 %v1065
    %v2746 = vunpack.c.h.b16 %v1065
    %v2747 = vunpack.c.l.b16 %v1066
    %v2748 = vunpack.c.h.b16 %v1066
    %v2749 = vunpack.c.l.b16 %v1067
    %v2750 = vunpack.c.h.b16 %v1067
    %v2751 = vunpack.c.l.b16 %v1068
    %v2752 = vunpack.c.h.b16 %v1068
    %v2753 = vunpack.c.l.b16 %v1069
    %v2754 = vunpack.c.h.b16 %v1069
    %v2755 = vunpack.c.l.b16 %v1070
    %v2756 = vunpack.c.h.b16 %v1070
    %v2757 = vunpack.c.l.b16 %v1071
    %v2758 = vunpack.c.h.b16 %v1071
    %v2759 = vunpack.c.l.b16 %v1072
    %v2760 = vunpack.c.h.b16 %v1072
    %v2761 = vunpack.c.l.b16 %v1073
    %v2762 = vunpack.c.h.b16 %v1073
    %v2763 = vunpack.c.l.b16 %v1074
    %v2764 = vunpack.c.h.b16 %v1074
    %v2765 = vunpack.c.l.b16 %v1075
    %v2766 = vunpack.c.h.b16 %v1075
    %v2767 = vunpack.c.l.b16 %v1076
    %v2768 = vunpack.c.h.b16 %v1076
    %v2769 = vunpack.c.l.b16 %v1077
    %v2770 = vunpack.c.h.b16 %v1077
    %v2771 = vunpack.c.l.b16 %v1078
    %v2772 = vunpack.c.h.b16 %v1078
    %v2773 = vunpack.c.l.b16 %v1079
    %v2774 = vunpack.c.h.b16 %v1079
    %v2775 = vunpack.c.l.b16 %v1080
    %v2776 = vunpack.c.h.b16 %v1080
    %v2777 = vunpack.c.l.b16 %v1081
    %v2778 = vunpack.c.h.b16 %v1081
    %v2779 = vunpack.c.l.b16 %v1082
    %v2780 = vunpack.c.h.b16 %v1082
    %v2781 = vunpack.c.l.b16 %v1083
    %v2782 = vunpack.c.h.b16 %v1083
    %v2783 = vunpack.c.l.b16 %v1084
    %v2784 = vunpack.c.h.b16 %v1084
    %v2785 = vunpack.c.l.b16 %v1085
    %v2786 = vunpack.c.h.b16 %v1085
    %v2787 = vunpack.c.l.b16 %v1086
    %v2788 = vunpack.c.h.b16 %v1086
    %v2789 = vunpack.c.l.b16 %v1087
    %v2790 = vunpack.c.h.b16 %v1087
    %v2791 = vunpack.c.l.b16 %v1088
    %v2792 = vunpack.c.h.b16 %v1088
    %v2793 = vunpack.c.l.b16 %v1089
    %v2794 = vunpack.c.h.b16 %v1089
    %v2795 = vunpack.c.l.b16 %v1090
    %v2796 = vunpack.c.h.b16 %v1090
    %v2797 = vunpack.c.l.b16 %v1091
    %v2798 = vunpack.c.h.b16 %v1091
    %v2799 = vunpack.c.l.b16 %v1092
    %v2800 = vunpack.c.h.b16 %v1092
    %v2801 = vunpack.c.l.b16 %v1093
    %v2802 = vunpack.c.h.b16 %v1093
    %v2803 = vpack.c.b16 %v1787, %v1779
    %v2804 = vpack.c.b16 %v1788, %v1780
    %v2805 = vpack.c.b16 %v1789, %v1781
    %v2806 = vpack.c.b16 %v1790, %v1782
    %v2807 = vpack.c.b16 %v1791, %v1783
    %v2808 = vpack.c.b16 %v1792, %v1784
    %v2809 = vpack.c.b16 %v1793, %v1785
    %v2810 = vpack.c.b16 %v1794, %v1786
    %v2811 = vpack.c.b16 %v1803, %v1795
    %v2812 = vpack.c.b16 %v1804, %v1796
    %v2813 = vpack.c.b16 %v1805, %v1797
    %v2814 = vpack.c.b16 %v1806, %v1798
    %v2815 = vpack.c.b16 %v1807, %v1799
    %v2816 = vpack.c.b16 %v1808, %v1800
    %v2817 = vpack.c.b16 %v1809, %v1801
    %v2818 = vpack.c.b16 %v1810, %v1802
    %v2819 = vpack.c.b16 %v1819, %v1811
    %v2820 = vpack.c.b16 %v1820, %v1812
    %v2821 = vpack.c.b16 %v1821, %v1813
    %v2822 = vpack.c.b16 %v1822, %v1814
    %v2823 = vpack.c.b16 %v1823, %v1815
    %v2824 = vpack.c.b16 %v1824, %v1816
    %v2825 = vpack.c.b16 %v1825, %v1817
    %v2826 = vpack.c.b16 %v1826, %v1818
    %v2827 = vpack.c.b16 %v1835, %v1827
    %v2828 = vpack.c.b16 %v1836, %v1828
    %v2829 = vpack.c.b16 %v1837, %v1829
    %v2830 = vpack.c.b16 %v1838, %v1830
    %v2831 = vpack.c.b16 %v1839, %v1831
    %v2832 = vpack.c.b16 %v1840, %v1832
    %v2833 = vpack.c.b16 %v1841, %v1833
    %v2834 = vpack.c.b16 %v1842, %v1834
    %v2835 = vpack.c.b16 %v1851, %v1843
    %v2836 = vpack.c.b16 %v1852, %v1844
    %v2837 = vpack.c.b16 %v1853, %v1845
    %v2838 = vpack.c.b16 %v1854, %v1846
    %v2839 = vpack.c.b16 %v1855, %v1847
    %v2840 = vpack.c.b16 %v1856, %v1848
    %v2841 = vpack.c.b16 %v1857, %v1849
    %v2842 = vpack.c.b16 %v1858, %v1850
    %v2843 = vpack.c.b16 %v1867, %v1859
    %v2844 = vpack.c.b16 %v1868, %v1860
    %v2845 = vpack.c.b16 %v1869, %v1861
    %v2846 = vpack.c.b16 %v1870, %v1862
    %v2847 = vpack.c.b16 %v1871, %v1863
    %v2848 = vpack.c.b16 %v1872, %v1864
    %v2849 = vpack.c.b16 %v1873, %v1865
    %v2850 = vpack.c.b16 %v1874, %v1866
    %v2851 = vpack.c.b16 %v1883, %v1875
    %v2852 = vpack.c.b16 %v1884, %v1876
    %v2853 = vpack.c.b16 %v1885, %v1877
    %v2854 = vpack.c.b16 %v1886, %v1878
    %v2855 = vpack.c.b16 %v1887, %v1879
    %v2856 = vpack.c.b16 %v1888, %v1880
    %v2857 = vpack.c.b16 %v1889, %v1881
    %v2858 = vpack.c.b16 %v1890, %v1882
    %v2859 = vpack.c.b16 %v1899, %v1891
    %v2860 = vpack.c.b16 %v1900, %v1892
    %v2861 = vpack.c.b16 %v1901, %v1893
    %v2862 = vpack.c.b16 %v1902, %v1894
    %v2863 = vpack.c.b16 %v1903, %v1895
    %v2864 = vpack.c.b16 %v1904, %v1896
    %v2865 = vpack.c.b16 %v1905, %v1897
    %v2866 = vpack.c.b16 %v1906, %v1898
    %v2867 = vpack.c.b16 %v1915, %v1907
    %v2868 = vpack.c.b16 %v1916, %v1908
    %v2869 = vpack.c.b16 %v1917, %v1909
    %v2870 = vpack.c.b16 %v1918, %v1910
    %v2871 = vpack.c.b16 %v1919, %v1911
    %v2872 = vpack.c.b16 %v1920, %v1912
    %v2873 = vpack.c.b16 %v1921, %v1913
    %v2874 = vpack.c.b16 %v1922, %v1914
    %v2875 = vpack.c.b16 %v1931, %v1923
    %v2876 = vpack.c.b16 %v1932, %v1924
    %v2877 = vpack.c.b16 %v1933, %v1925
    %v2878 = vpack.c.b16 %v1934, %v1926
    %v2879 = vpack.c.b16 %v1935, %v1927
    %v2880 = vpack.c.b16 %v1936, %v1928
    %v2881 = vpack.c.b16 %v1937, %v1929
    %v2882 = vpack.c.b16 %v1938, %v1930
    %v2883 = vpack.c.b16 %v1947, %v1939
    %v2884 = vpack.c.b16 %v1948, %v1940
    %v2885 = vpack.c.b16 %v1949, %v1941
    %v2886 = vpack.c.b16 %v1950, %v1942
    %v2887 = vpack.c.b16 %v1951, %v1943
    %v2888 = vpack.c.b16 %v1952, %v1944
    %v2889 = vpack.c.b16 %v1953, %v1945
    %v2890 = vpack.c.b16 %v1954, %v1946
    %v2891 = vpack.c.b16 %v1963, %v1955
    %v2892 = vpack.c.b16 %v1964, %v1956
    %v2893 = vpack.c.b16 %v1965, %v1957
    %v2894 = vpack.c.b16 %v1966, %v1958
    %v2895 = vpack.c.b16 %v1967, %v1959
    %v2896 = vpack.c.b16 %v1968, %v1960
    %v2897 = vpack.c.b16 %v1969, %v1961
    %v2898 = vpack.c.b16 %v1970, %v1962
    %v2899 = vpack.c.b16 %v1979, %v1971
    %v2900 = vpack.c.b16 %v1980, %v1972
    %v2901 = vpack.c.b16 %v1981, %v1973
    %v2902 = vpack.c.b16 %v1982, %v1974
    %v2903 = vpack.c.b16 %v1983, %v1975
    %v2904 = vpack.c.b16 %v1984, %v1976
    %v2905 = vpack.c.b16 %v1985, %v1977
    %v2906 = vpack.c.b16 %v1986, %v1978
    %v2907 = vpack.c.b16 %v1995, %v1987
    %v2908 = vpack.c.b16 %v1996, %v1988
    %v2909 = vpack.c.b16 %v1997, %v1989
    %v2910 = vpack.c.b16 %v1998, %v1990
    %v2911 = vpack.c.b16 %v1999, %v1991
    %v2912 = vpack.c.b16 %v2000, %v1992
    %v2913 = vpack.c.b16 %v2001, %v1993
    %v2914 = vpack.c.b16 %v2002, %v1994
    %v2915 = vpack.c.b16 %v2011, %v2003
    %v2916 = vpack.c.b16 %v2012, %v2004
    %v2917 = vpack.c.b16 %v2013, %v2005
    %v2918 = vpack.c.b16 %v2014, %v2006
    %v2919 = vpack.c.b16 %v2015, %v2007
    %v2920 = vpack.c.b16 %v2016, %v2008
    %v2921 = vpack.c.b16 %v2017, %v2009
    %v2922 = vpack.c.b16 %v2018, %v2010
    %v2923 = vpack.c.b16 %v2027, %v2019
    %v2924 = vpack.c.b16 %v2028, %v2020
    %v2925 = vpack.c.b16 %v2029, %v2021
    %v2926 = vpack.c.b16 %v2030, %v2022
    %v2927 = vpack.c.b16 %v2031, %v2023
    %v2928 = vpack.c.b16 %v2032, %v2024
    %v2929 = vpack.c.b16 %v2033, %v2025
    %v2930 = vpack.c.b16 %v2034, %v2026
    %v2931 = vpack.c.b16 %v2043, %v2035
    %v2932 = vpack.c.b16 %v2044, %v2036
    %v2933 = vpack.c.b16 %v2045, %v2037
    %v2934 = vpack.c.b16 %v2046, %v2038
    %v2935 = vpack.c.b16 %v2047, %v2039
    %v2936 = vpack.c.b16 %v2048, %v2040
    %v2937 = vpack.c.b16 %v2049, %v2041
    %v2938 = vpack.c.b16 %v2050, %v2042
    %v2939 = vpack.c.b16 %v2059, %v2051
    %v2940 = vpack.c.b16 %v2060, %v2052
    %v2941 = vpack.c.b16 %v2061, %v2053
    %v2942 = vpack.c.b16 %v2062, %v2054
    %v2943 = vpack.c.b16 %v2063, %v2055
    %v2944 = vpack.c.b16 %v2064, %v2056
    %v2945 = vpack.c.b16 %v2065, %v2057
    %v2946 = vpack.c.b16 %v2066, %v2058
    %v2947 = vpack.c.b16 %v2075, %v2067
    %v2948 = vpack.c.b16 %v2076, %v2068
    %v2949 = vpack.c.b16 %v2077, %v2069
    %v2950 = vpack.c.b16 %v2078, %v2070
    %v2951 = vpack.c.b16 %v2079, %v2071
    %v2952 = vpack.c.b16 %v2080, %v2072
    %v2953 = vpack.c.b16 %v2081, %v2073
    %v2954 = vpack.c.b16 %v2082, %v2074
    %v2955 = vpack.c.b16 %v2091, %v2083
    %v2956 = vpack.c.b16 %v2092, %v2084
    %v2957 = vpack.c.b16 %v2093, %v2085
    %v2958 = vpack.c.b16 %v2094, %v2086
    %v2959 = vpack.c.b16 %v2095, %v2087
    %v2960 = vpack.c.b16 %v2096, %v2088
    %v2961 = vpack.c.b16 %v2097, %v2089
    %v2962 = vpack.c.b16 %v2098, %v2090
    %v2963 = vpack.c.b16 %v2107, %v2099
    %v2964 = vpack.c.b16 %v2108, %v2100
    %v2965 = vpack.c.b16 %v2109, %v2101
    %v2966 = vpack.c.b16 %v2110, %v2102
    %v2967 = vpack.c.b16 %v2111, %v2103
    %v2968 = vpack.c.b16 %v2112, %v2104
    %v2969 = vpack.c.b16 %v2113, %v2105
    %v2970 = vpack.c.b16 %v2114, %v2106
    %v2971 = vpack.c.b16 %v2123, %v2115
    %v2972 = vpack.c.b16 %v2124, %v2116
    %v2973 = vpack.c.b16 %v2125, %v2117
    %v2974 = vpack.c.b16 %v2126, %v2118
    %v2975 = vpack.c.b16 %v2127, %v2119
    %v2976 = vpack.c.b16 %v2128, %v2120
    %v2977 = vpack.c.b16 %v2129, %v2121
    %v2978 = vpack.c.b16 %v2130, %v2122
    %v2979 = vpack.c.b16 %v2139, %v2131
    %v2980 = vpack.c.b16 %v2140, %v2132
    %v2981 = vpack.c.b16 %v2141, %v2133
    %v2982 = vpack.c.b16 %v2142, %v2134
    %v2983 = vpack.c.b16 %v2143, %v2135
    %v2984 = vpack.c.b16 %v2144, %v2136
    %v2985 = vpack.c.b16 %v2145, %v2137
    %v2986 = vpack.c.b16 %v2146, %v2138
    %v2987 = vpack.c.b16 %v2155, %v2147
    %v2988 = vpack.c.b16 %v2156, %v2148
    %v2989 = vpack.c.b16 %v2157, %v2149
    %v2990 = vpack.c.b16 %v2158, %v2150
    %v2991 = vpack.c.b16 %v2159, %v2151
    %v2992 = vpack.c.b16 %v2160, %v2152
    %v2993 = vpack.c.b16 %v2161, %v2153
    %v2994 = vpack.c.b16 %v2162, %v2154
    %v2995 = vpack.c.b16 %v2171, %v2163
    %v2996 = vpack.c.b16 %v2172, %v2164
    %v2997 = vpack.c.b16 %v2173, %v2165
    %v2998 = vpack.c.b16 %v2174, %v2166
    %v2999 = vpack.c.b16 %v2175, %v2167
    %v3000 = vpack.c.b16 %v2176, %v2168
    %v3001 = vpack.c.b16 %v2177, %v2169
    %v3002 = vpack.c.b16 %v2178, %v2170
    %v3003 = vpack.c.b16 %v2187, %v2179
    %v3004 = vpack.c.b16 %v2188, %v2180
    %v3005 = vpack.c.b16 %v2189, %v2181
    %v3006 = vpack.c.b16 %v2190, %v2182
    %v3007 = vpack.c.b16 %v2191, %v2183
    %v3008 = vpack.c.b16 %v2192, %v2184
    %v3009 = vpack.c.b16 %v2193, %v2185
    %v3010 = vpack.c.b16 %v2194, %v2186
    %v3011 = vpack.c.b16 %v2203, %v2195
    %v3012 = vpack.c.b16 %v2204, %v2196
    %v3013 = vpack.c.b16 %v2205, %v2197
    %v3014 = vpack.c.b16 %v2206, %v2198
    %v3015 = vpack.c.b16 %v2207, %v2199
    %v3016 = vpack.c.b16 %v2208, %v2200
    %v3017 = vpack.c.b16 %v2209, %v2201
    %v3018 = vpack.c.b16 %v2210, %v2202
    %v3019 = vpack.c.b16 %v2219, %v2211
    %v3020 = vpack.c.b16 %v2220, %v2212
    %v3021 = vpack.c.b16 %v2221, %v2213
    %v3022 = vpack.c.b16 %v2222, %v2214
    %v3023 = vpack.c.b16 %v2223, %v2215
    %v3024 = vpack.c.b16 %v2224, %v2216
    %v3025 = vpack.c.b16 %v2225, %v2217
    %v3026 = vpack.c.b16 %v2226, %v2218
    %v3027 = vpack.c.b16 %v2235, %v2227
    %v3028 = vpack.c.b16 %v2236, %v2228
    %v3029 = vpack.c.b16 %v2237, %v2229
    %v3030 = vpack.c.b16 %v2238, %v2230
    %v3031 = vpack.c.b16 %v2239, %v2231
    %v3032 = vpack.c.b16 %v2240, %v2232
    %v3033 = vpack.c.b16 %v2241, %v2233
    %v3034 = vpack.c.b16 %v2242, %v2234
    %v3035 = vpack.c.b16 %v2251, %v2243
    %v3036 = vpack.c.b16 %v2252, %v2244
    %v3037 = vpack.c.b16 %v2253, %v2245
    %v3038 = vpack.c.b16 %v2254, %v2246
    %v3039 = vpack.c.b16 %v2255, %v2247
    %v3040 = vpack.c.b16 %v2256, %v2248
    %v3041 = vpack.c.b16 %v2257, %v2249
    %v3042 = vpack.c.b16 %v2258, %v2250
    %v3043 = vpack.c.b16 %v2267, %v2259
    %v3044 = vpack.c.b16 %v2268, %v2260
    %v3045 = vpack.c.b16 %v2269, %v2261
    %v3046 = vpack.c.b16 %v2270, %v2262
    %v3047 = vpack.c.b16 %v2271, %v2263
    %v3048 = vpack.c.b16 %v2272, %v2264
    %v3049 = vpack.c.b16 %v2273, %v2265
    %v3050 = vpack.c.b16 %v2274, %v2266
    %v3051 = vpack.c.b16 %v2283, %v2275
    %v3052 = vpack.c.b16 %v2284, %v2276
    %v3053 = vpack.c.b16 %v2285, %v2277
    %v3054 = vpack.c.b16 %v2286, %v2278
    %v3055 = vpack.c.b16 %v2287, %v2279
    %v3056 = vpack.c.b16 %v2288, %v2280
    %v3057 = vpack.c.b16 %v2289, %v2281
    %v3058 = vpack.c.b16 %v2290, %v2282
    %v3059 = vpack.c.b16 %v2299, %v2291
    %v3060 = vpack.c.b16 %v2300, %v2292
    %v3061 = vpack.c.b16 %v2301, %v2293
    %v3062 = vpack.c.b16 %v2302, %v2294
    %v3063 = vpack.c.b16 %v2303, %v2295
    %v3064 = vpack.c.b16 %v2304, %v2296
    %v3065 = vpack.c.b16 %v2305, %v2297
    %v3066 = vpack.c.b16 %v2306, %v2298
    %v3067 = vpack.c.b16 %v2315, %v2307
    %v3068 = vpack.c.b16 %v2316, %v2308
    %v3069 = vpack.c.b16 %v2317, %v2309
    %v3070 = vpack.c.b16 %v2318, %v2310
    %v3071 = vpack.c.b16 %v2319, %v2311
    %v3072 = vpack.c.b16 %v2320, %v2312
    %v3073 = vpack.c.b16 %v2321, %v2313
    %v3074 = vpack.c.b16 %v2322, %v2314
    %v3075 = vpack.c.b16 %v2331, %v2323
    %v3076 = vpack.c.b16 %v2332, %v2324
    %v3077 = vpack.c.b16 %v2333, %v2325
    %v3078 = vpack.c.b16 %v2334, %v2326
    %v3079 = vpack.c.b16 %v2335, %v2327
    %v3080 = vpack.c.b16 %v2336, %v2328
    %v3081 = vpack.c.b16 %v2337, %v2329
    %v3082 = vpack.c.b16 %v2338, %v2330
    %v3083 = vpack.c.b16 %v2347, %v2339
    %v3084 = vpack.c.b16 %v2348, %v2340
    %v3085 = vpack.c.b16 %v2349, %v2341
    %v3086 = vpack.c.b16 %v2350, %v2342
    %v3087 = vpack.c.b16 %v2351, %v2343
    %v3088 = vpack.c.b16 %v2352, %v2344
    %v3089 = vpack.c.b16 %v2353, %v2345
    %v3090 = vpack.c.b16 %v2354, %v2346
    %v3091 = vpack.c.b16 %v2363, %v2355
    %v3092 = vpack.c.b16 %v2364, %v2356
    %v3093 = vpack.c.b16 %v2365, %v2357
    %v3094 = vpack.c.b16 %v2366, %v2358
    %v3095 = vpack.c.b16 %v2367, %v2359
    %v3096 = vpack.c.b16 %v2368, %v2360
    %v3097 = vpack.c.b16 %v2369, %v2361
    %v3098 = vpack.c.b16 %v2370, %v2362
    %v3099 = vpack.c.b16 %v2379, %v2371
    %v3100 = vpack.c.b16 %v2380, %v2372
    %v3101 = vpack.c.b16 %v2381, %v2373
    %v3102 = vpack.c.b16 %v2382, %v2374
    %v3103 = vpack.c.b16 %v2383, %v2375
    %v3104 = vpack.c.b16 %v2384, %v2376
    %v3105 = vpack.c.b16 %v2385, %v2377
    %v3106 = vpack.c.b16 %v2386, %v2378
    %v3107 = vpack.c.b16 %v2395, %v2387
    %v3108 = vpack.c.b16 %v2396, %v2388
    %v3109 = vpack.c.b16 %v2397, %v2389
    %v3110 = vpack.c.b16 %v2398, %v2390
    %v3111 = vpack.c.b16 %v2399, %v2391
    %v3112 = vpack.c.b16 %v2400, %v2392
    %v3113 = vpack.c.b16 %v2401, %v2393
    %v3114 = vpack.c.b16 %v2402, %v2394
    %v3115 = vpack.c.b16 %v2411, %v2403
    %v3116 = vpack.c.b16 %v2412, %v2404
    %v3117 = vpack.c.b16 %v2413, %v2405
    %v3118 = vpack.c.b16 %v2414, %v2406
    %v3119 = vpack.c.b16 %v2415, %v2407
    %v3120 = vpack.c.b16 %v2416, %v2408
    %v3121 = vpack.c.b16 %v2417, %v2409
    %v3122 = vpack.c.b16 %v2418, %v2410
    %v3123 = vpack.c.b16 %v2427, %v2419
    %v3124 = vpack.c.b16 %v2428, %v2420
    %v3125 = vpack.c.b16 %v2429, %v2421
    %v3126 = vpack.c.b16 %v2430, %v2422
    %v3127 = vpack.c.b16 %v2431, %v2423
    %v3128 = vpack.c.b16 %v2432, %v2424
    %v3129 = vpack.c.b16 %v2433, %v2425
    %v3130 = vpack.c.b16 %v2434, %v2426
    %v3131 = vpack.c.b16 %v2443, %v2435
    %v3132 = vpack.c.b16 %v2444, %v2436
    %v3133 = vpack.c.b16 %v2445, %v2437
    %v3134 = vpack.c.b16 %v2446, %v2438
    %v3135 = vpack.c.b16 %v2447, %v2439
    %v3136 = vpack.c.b16 %v2448, %v2440
    %v3137 = vpack.c.b16 %v2449, %v2441
    %v3138 = vpack.c.b16 %v2450, %v2442
    %v3139 = vpack.c.b16 %v2459, %v2451
    %v3140 = vpack.c.b16 %v2460, %v2452
    %v3141 = vpack.c.b16 %v2461, %v2453
    %v3142 = vpack.c.b16 %v2462, %v2454
    %v3143 = vpack.c.b16 %v2463, %v2455
    %v3144 = vpack.c.b16 %v2464, %v2456
    %v3145 = vpack.c.b16 %v2465, %v2457
    %v3146 = vpack.c.b16 %v2466, %v2458
    %v3147 = vpack.c.b16 %v2475, %v2467
    %v3148 = vpack.c.b16 %v2476, %v2468
    %v3149 = vpack.c.b16 %v2477, %v2469
    %v3150 = vpack.c.b16 %v2478, %v2470
    %v3151 = vpack.c.b16 %v2479, %v2471
    %v3152 = vpack.c.b16 %v2480, %v2472
    %v3153 = vpack.c.b16 %v2481, %v2473
    %v3154 = vpack.c.b16 %v2482, %v2474
    %v3155 = vpack.c.b16 %v2491, %v2483
    %v3156 = vpack.c.b16 %v2492, %v2484
    %v3157 = vpack.c.b16 %v2493, %v2485
    %v3158 = vpack.c.b16 %v2494, %v2486
    %v3159 = vpack.c.b16 %v2495, %v2487
    %v3160 = vpack.c.b16 %v2496, %v2488
    %v3161 = vpack.c.b16 %v2497, %v2489
    %v3162 = vpack.c.b16 %v2498, %v2490
    %v3163 = vpack.c.b16 %v2507, %v2499
    %v3164 = vpack.c.b16 %v2508, %v2500
    %v3165 = vpack.c.b16 %v2509, %v2501
    %v3166 = vpack.c.b16 %v2510, %v2502
    %v3167 = vpack.c.b16 %v2511, %v2503
    %v3168 = vpack.c.b16 %v2512, %v2504
    %v3169 = vpack.c.b16 %v2513, %v2505
    %v3170 = vpack.c.b16 %v2514, %v2506
    %v3171 = vpack.c.b16 %v2523, %v2515
    %v3172 = vpack.c.b16 %v2524, %v2516
    %v3173 = vpack.c.b16 %v2525, %v2517
    %v3174 = vpack.c.b16 %v2526, %v2518
    %v3175 = vpack.c.b16 %v2527, %v2519
    %v3176 = vpack.c.b16 %v2528, %v2520
    %v3177 = vpack.c.b16 %v2529, %v2521
    %v3178 = vpack.c.b16 %v2530, %v2522
    %v3179 = vpack.c.b16 %v2539, %v2531
    %v3180 = vpack.c.b16 %v2540, %v2532
    %v3181 = vpack.c.b16 %v2541, %v2533
    %v3182 = vpack.c.b16 %v2542, %v2534
    %v3183 = vpack.c.b16 %v2543, %v2535
    %v3184 = vpack.c.b16 %v2544, %v2536
    %v3185 = vpack.c.b16 %v2545, %v2537
    %v3186 = vpack.c.b16 %v2546, %v2538
    %v3187 = vpack.c.b16 %v2555, %v2547
    %v3188 = vpack.c.b16 %v2556, %v2548
    %v3189 = vpack.c.b16 %v2557, %v2549
    %v3190 = vpack.c.b16 %v2558, %v2550
    %v3191 = vpack.c.b16 %v2559, %v2551
    %v3192 = vpack.c.b16 %v2560, %v2552
    %v3193 = vpack.c.b16 %v2561, %v2553
    %v3194 = vpack.c.b16 %v2562, %v2554
    %v3195 = vpack.c.b16 %v2571, %v2563
    %v3196 = vpack.c.b16 %v2572, %v2564
    %v3197 = vpack.c.b16 %v2573, %v2565
    %v3198 = vpack.c.b16 %v2574, %v2566
    %v3199 = vpack.c.b16 %v2575, %v2567
    %v3200 = vpack.c.b16 %v2576, %v2568
    %v3201 = vpack.c.b16 %v2577, %v2569
    %v3202 = vpack.c.b16 %v2578, %v2570
    %v3203 = vpack.c.b16 %v2587, %v2579
    %v3204 = vpack.c.b16 %v2588, %v2580
    %v3205 = vpack.c.b16 %v2589, %v2581
    %v3206 = vpack.c.b16 %v2590, %v2582
    %v3207 = vpack.c.b16 %v2591, %v2583
    %v3208 = vpack.c.b16 %v2592, %v2584
    %v3209 = vpack.c.b16 %v2593, %v2585
    %v3210 = vpack.c.b16 %v2594, %v2586
    %v3211 = vpack.c.b16 %v2603, %v2595
    %v3212 = vpack.c.b16 %v2604, %v2596
    %v3213 = vpack.c.b16 %v2605, %v2597
    %v3214 = vpack.c.b16 %v2606, %v2598
    %v3215 = vpack.c.b16 %v2607, %v2599
    %v3216 = vpack.c.b16 %v2608, %v2600
    %v3217 = vpack.c.b16 %v2609, %v2601
    %v3218 = vpack.c.b16 %v2610, %v2602
    %v3219 = vpack.c.b16 %v2619, %v2611
    %v3220 = vpack.c.b16 %v2620, %v2612
    %v3221 = vpack.c.b16 %v2621, %v2613
    %v3222 = vpack.c.b16 %v2622, %v2614
    %v3223 = vpack.c.b16 %v2623, %v2615
    %v3224 = vpack.c.b16 %v2624, %v2616
    %v3225 = vpack.c.b16 %v2625, %v2617
    %v3226 = vpack.c.b16 %v2626, %v2618
    %v3227 = vpack.c.b16 %v2635, %v2627
    %v3228 = vpack.c.b16 %v2636, %v2628
    %v3229 = vpack.c.b16 %v2637, %v2629
    %v3230 = vpack.c.b16 %v2638, %v2630
    %v3231 = vpack.c.b16 %v2639, %v2631
    %v3232 = vpack.c.b16 %v2640, %v2632
    %v3233 = vpack.c.b16 %v2641, %v2633
    %v3234 = vpack.c.b16 %v2642, %v2634
    %v3235 = vpack.c.b16 %v2651, %v2643
    %v3236 = vpack.c.b16 %v2652, %v2644
    %v3237 = vpack.c.b16 %v2653, %v2645
    %v3238 = vpack.c.b16 %v2654, %v2646
    %v3239 = vpack.c.b16 %v2655, %v2647
    %v3240 = vpack.c.b16 %v2656, %v2648
    %v3241 = vpack.c.b16 %v2657, %v2649
    %v3242 = vpack.c.b16 %v2658, %v2650
    %v3243 = vpack.c.b16 %v2667, %v2659
    %v3244 = vpack.c.b16 %v2668, %v2660
    %v3245 = vpack.c.b16 %v2669, %v2661
    %v3246 = vpack.c.b16 %v2670, %v2662
    %v3247 = vpack.c.b16 %v2671, %v2663
    %v3248 = vpack.c.b16 %v2672, %v2664
    %v3249 = vpack.c.b16 %v2673, %v2665
    %v3250 = vpack.c.b16 %v2674, %v2666
    %v3251 = vpack.c.b16 %v2683, %v2675
    %v3252 = vpack.c.b16 %v2684, %v2676
    %v3253 = vpack.c.b16 %v2685, %v2677
    %v3254 = vpack.c.b16 %v2686, %v2678
    %v3255 = vpack.c.b16 %v2687, %v2679
    %v3256 = vpack.c.b16 %v2688, %v2680
    %v3257 = vpack.c.b16 %v2689, %v2681
    %v3258 = vpack.c.b16 %v2690, %v2682
    %v3259 = vpack.c.b16 %v2699, %v2691
    %v3260 = vpack.c.b16 %v2700, %v2692
    %v3261 = vpack.c.b16 %v2701, %v2693
    %v3262 = vpack.c.b16 %v2702, %v2694
    %v3263 = vpack.c.b16 %v2703, %v2695
    %v3264 = vpack.c.b16 %v2704, %v2696
    %v3265 = vpack.c.b16 %v2705, %v2697
    %v3266 = vpack.c.b16 %v2706, %v2698
    %v3267 = vpack.c.b16 %v2715, %v2707
    %v3268 = vpack.c.b16 %v2716, %v2708
    %v3269 = vpack.c.b16 %v2717, %v2709
    %v3270 = vpack.c.b16 %v2718, %v2710
    %v3271 = vpack.c.b16 %v2719, %v2711
    %v3272 = vpack.c.b16 %v2720, %v2712
    %v3273 = vpack.c.b16 %v2721, %v2713
    %v3274 = vpack.c.b16 %v2722, %v2714
    %v3275 = vpack.c.b16 %v2731, %v2723
    %v3276 = vpack.c.b16 %v2732, %v2724
    %v3277 = vpack.c.b16 %v2733, %v2725
    %v3278 = vpack.c.b16 %v2734, %v2726
    %v3279 = vpack.c.b16 %v2735, %v2727
    %v3280 = vpack.c.b16 %v2736, %v2728
    %v3281 = vpack.c.b16 %v2737, %v2729
    %v3282 = vpack.c.b16 %v2738, %v2730
    %v3283 = vpack.c.b16 %v2747, %v2739
    %v3284 = vpack.c.b16 %v2748, %v2740
    %v3285 = vpack.c.b16 %v2749, %v2741
    %v3286 = vpack.c.b16 %v2750, %v2742
    %v3287 = vpack.c.b16 %v2751, %v2743
    %v3288 = vpack.c.b16 %v2752, %v2744
    %v3289 = vpack.c.b16 %v2753, %v2745
    %v3290 = vpack.c.b16 %v2754, %v2746
    %v3291 = vpack.c.b16 %v2763, %v2755
    %v3292 = vpack.c.b16 %v2764, %v2756
    %v3293 = vpack.c.b16 %v2765, %v2757
    %v3294 = vpack.c.b16 %v2766, %v2758
    %v3295 = vpack.c.b16 %v2767, %v2759
    %v3296 = vpack.c.b16 %v2768, %v2760
    %v3297 = vpack.c.b16 %v2769, %v2761
    %v3298 = vpack.c.b16 %v2770, %v2762
    %v3299 = vpack.c.b16 %v2779, %v2771
    %v3300 = vpack.c.b16 %v2780, %v2772
    %v3301 = vpack.c.b16 %v2781, %v2773
    %v3302 = vpack.c.b16 %v2782, %v2774
    %v3303 = vpack.c.b16 %v2783, %v2775
    %v3304 = vpack.c.b16 %v2784, %v2776
    %v3305 = vpack.c.b16 %v2785, %v2777
    %v3306 = vpack.c.b16 %v2786, %v2778
    %v3307 = vpack.c.b16 %v2795, %v2787
    %v3308 = vpack.c.b16 %v2796, %v2788
    %v3309 = vpack.c.b16 %v2797, %v2789
    %v3310 = vpack.c.b16 %v2798, %v2790
    %v3311 = vpack.c.b16 %v2799, %v2791
    %v3312 = vpack.c.b16 %v2800, %v2792
    %v3313 = vpack.c.b16 %v2801, %v2793
    %v3314 = vpack.c.b16 %v2802, %v2794
    %3827 = vmatprep.subr.bf16.mxu0 %v2804
    %3828 = vmatpush1.bf16.msra.mxu0 %v2803
    %3829 = vmatprep.subr.bf16.mxu0 %v2812
    %3830 = vmatpush1.bf16.msra.mxu0 %v2811
    %3831 = vmatprep.subr.bf16.mxu0 %v2820
    %3832 = vmatpush1.bf16.msra.mxu0 %v2819
    %3833 = vmatprep.subr.bf16.mxu0 %v2828
    %3834 = vmatpush1.bf16.msra.mxu0 %v2827
    %3835 = vmatprep.subr.bf16.mxu0 %v2836
    %3836 = vmatpush1.bf16.msra.mxu0 %v2835
    %3837 = vmatprep.subr.bf16.mxu0 %v2844
    %3838 = vmatpush1.bf16.msra.mxu0 %v2843
    %3839 = vmatprep.subr.bf16.mxu0 %v2852
    %3840 = vmatpush1.bf16.msra.mxu0 %v2851
    %3841 = vmatprep.subr.bf16.mxu0 %v2860
    %3842 = vmatpush1.bf16.msra.mxu0 %v2859
    %3843 = vmatprep.subr.bf16.mxu0 %v2868
    %3844 = vmatpush1.bf16.msra.mxu0 %v2867
    %3845 = vmatprep.subr.bf16.mxu0 %v2876
    %3846 = vmatpush1.bf16.msra.mxu0 %v2875
    %3847 = vmatprep.subr.bf16.mxu0 %v2884
    %3848 = vmatpush1.bf16.msra.mxu0 %v2883
    %3849 = vmatprep.subr.bf16.mxu0 %v2892
    %3850 = vmatpush1.bf16.msra.mxu0 %v2891
    %3851 = vmatprep.subr.bf16.mxu0 %v2900
    %3852 = vmatpush1.bf16.msra.mxu0 %v2899
    %3853 = vmatprep.subr.bf16.mxu0 %v2908
    %3854 = vmatpush1.bf16.msra.mxu0 %v2907
    %3855 = vmatprep.subr.bf16.mxu0 %v2916
    %3856 = vmatpush1.bf16.msra.mxu0 %v2915
    %3857 = vmatprep.subr.bf16.mxu0 %v2924
    %3858 = vmatpush1.bf16.msra.mxu0 %v2923
    %3859 = vmatprep.mubr.bf16.mxu0 %v1252
    %3860 = vmatmul.mubr.bf16.gmra.mrb[0].mxu0 %v1251
    %v3861 = vpop.f32.mrb[0].mxu0
    %v3862 = vadd.f32 %v1099, %v3861
    %v3863 = vpop.f32.mrb[0].mxu0
    %v3864 = vadd.f32 %v1103, %v3863
    %v3865 = vpop.f32.mrb[0].mxu0
    %v3866 = vpop.f32.mrb[0].mxu0
    %3867 = vdwg.mxu0
    %3868 = vmatprep.subr.bf16.mxu0 %v2932
    %3869 = vmatpush1.bf16.msra.mxu0 %v2931
    %3870 = vmatprep.subr.bf16.mxu0 %v2940
    %3871 = vmatpush1.bf16.msra.mxu0 %v2939
    %3872 = vmatprep.subr.bf16.mxu0 %v2948
    %3873 = vmatpush1.bf16.msra.mxu0 %v2947
    %3874 = vmatprep.subr.bf16.mxu0 %v2956
    %3875 = vmatpush1.bf16.msra.mxu0 %v2955
    %3876 = vmatprep.subr.bf16.mxu0 %v2964
    %3877 = vmatpush1.bf16.msra.mxu0 %v2963
    %3878 = vmatprep.subr.bf16.mxu0 %v2972
    %3879 = vmatpush1.bf16.msra.mxu0 %v2971
    %3880 = vmatprep.subr.bf16.mxu0 %v2980
    %3881 = vmatpush1.bf16.msra.mxu0 %v2979
    %3882 = vmatprep.subr.bf16.mxu0 %v2988
    %3883 = vmatpush1.bf16.msra.mxu0 %v2987
    %3884 = vmatprep.subr.bf16.mxu0 %v2996
    %3885 = vmatpush1.bf16.msra.mxu0 %v2995
    %3886 = vmatprep.subr.bf16.mxu0 %v3004
    %3887 = vmatpush1.bf16.msra.mxu0 %v3003
    %3888 = vmatprep.subr.bf16.mxu0 %v3012
    %3889 = vmatpush1.bf16.msra.mxu0 %v3011
    %3890 = vmatprep.subr.bf16.mxu0 %v3020
    %3891 = vmatpush1.bf16.msra.mxu0 %v3019
    %3892 = vmatprep.subr.bf16.mxu0 %v3028
    %3893 = vmatpush1.bf16.msra.mxu0 %v3027
    %3894 = vmatprep.subr.bf16.mxu0 %v3036
    %3895 = vmatpush1.bf16.msra.mxu0 %v3035
    %3896 = vmatprep.subr.bf16.mxu0 %v3044
    %3897 = vmatpush1.bf16.msra.mxu0 %v3043
    %3898 = vmatprep.subr.bf16.mxu0 %v3052
    %3899 = vmatpush1.bf16.msra.mxu0 %v3051
    %3900 = vmatprep.mubr.bf16.mxu0 %v1254
    %3901 = vmatmul.mubr.bf16.gmra.mrb[0].mxu0 %v1253
    %v3902 = vpop.f32.mrb[0].mxu0
    %v3903 = vadd.f32 %v3862, %v3902
    %v3904 = vpop.f32.mrb[0].mxu0
    %v3905 = vadd.f32 %v3864, %v3904
    %v3906 = vpop.f32.mrb[0].mxu0
    %v3907 = vpop.f32.mrb[0].mxu0
    %3908 = vdwg.mxu0
    %3909 = vmatprep.subr.bf16.mxu0 %v3060
    %3910 = vmatpush1.bf16.msra.mxu0 %v3059
    %3911 = vmatprep.subr.bf16.mxu0 %v3068
    %3912 = vmatpush1.bf16.msra.mxu0 %v3067
    %3913 = vmatprep.subr.bf16.mxu0 %v3076
    %3914 = vmatpush1.bf16.msra.mxu0 %v3075
    %3915 = vmatprep.subr.bf16.mxu0 %v3084
    %3916 = vmatpush1.bf16.msra.mxu0 %v3083
    %3917 = vmatprep.subr.bf16.mxu0 %v3092
    %3918 = vmatpush1.bf16.msra.mxu0 %v3091
    %3919 = vmatprep.subr.bf16.mxu0 %v3100
    %3920 = vmatpush1.bf16.msra.mxu0 %v3099
    %3921 = vmatprep.subr.bf16.mxu0 %v3108
    %3922 = vmatpush1.bf16.msra.mxu0 %v3107
    %3923 = vmatprep.subr.bf16.mxu0 %v3116
    %3924 = vmatpush1.bf16.msra.mxu0 %v3115
    %3925 = vmatprep.subr.bf16.mxu0 %v3124
    %3926 = vmatpush1.bf16.msra.mxu0 %v3123
    %3927 = vmatprep.subr.bf16.mxu0 %v3132
    %3928 = vmatpush1.bf16.msra.mxu0 %v3131
    %3929 = vmatprep.subr.bf16.mxu0 %v3140
    %3930 = vmatpush1.bf16.msra.mxu0 %v3139
    %3931 = vmatprep.subr.bf16.mxu0 %v3148
    %3932 = vmatpush1.bf16.msra.mxu0 %v3147
    %3933 = vmatprep.subr.bf16.mxu0 %v3156
    %3934 = vmatpush1.bf16.msra.mxu0 %v3155
    %3935 = vmatprep.subr.bf16.mxu0 %v3164
    %3936 = vmatpush1.bf16.msra.mxu0 %v3163
    %3937 = vmatprep.subr.bf16.mxu0 %v3172
    %3938 = vmatpush1.bf16.msra.mxu0 %v3171
    %3939 = vmatprep.subr.bf16.mxu0 %v3180
    %3940 = vmatpush1.bf16.msra.mxu0 %v3179
    %3941 = vmatprep.mubr.bf16.mxu0 %v1256
    %3942 = vmatmul.mubr.bf16.gmra.mrb[0].mxu0 %v1255
    %v3943 = vpop.f32.mrb[0].mxu0
    %v3944 = vadd.f32 %v3903, %v3943
    %v3945 = vpop.f32.mrb[0].mxu0
    %v3946 = vadd.f32 %v3905, %v3945
    %v3947 = vpop.f32.mrb[0].mxu0
    %v3948 = vpop.f32.mrb[0].mxu0
    %3949 = vdwg.mxu0
    %3950 = vmatprep.subr.bf16.mxu0 %v3188
    %3951 = vmatpush1.bf16.msra.mxu0 %v3187
    %3952 = vmatprep.subr.bf16.mxu0 %v3196
    %3953 = vmatpush1.bf16.msra.mxu0 %v3195
    %3954 = vmatprep.subr.bf16.mxu0 %v3204
    %3955 = vmatpush1.bf16.msra.mxu0 %v3203
    %3956 = vmatprep.subr.bf16.mxu0 %v3212
    %3957 = vmatpush1.bf16.msra.mxu0 %v3211
    %3958 = vmatprep.subr.bf16.mxu0 %v3220
    %3959 = vmatpush1.bf16.msra.mxu0 %v3219
    %3960 = vmatprep.subr.bf16.mxu0 %v3228
    %3961 = vmatpush1.bf16.msra.mxu0 %v3227
    %3962 = vmatprep.subr.bf16.mxu0 %v3236
    %3963 = vmatpush1.bf16.msra.mxu0 %v3235
    %3964 = vmatprep.subr.bf16.mxu0 %v3244
    %3965 = vmatpush1.bf16.msra.mxu0 %v3243
    %3966 = vmatprep.subr.bf16.mxu0 %v3252
    %3967 = vmatpush1.bf16.msra.mxu0 %v3251
    %3968 = vmatprep.subr.bf16.mxu0 %v3260
    %3969 = vmatpush1.bf16.msra.mxu0 %v3259
    %3970 = vmatprep.subr.bf16.mxu0 %v3268
    %3971 = vmatpush1.bf16.msra.mxu0 %v3267
    %3972 = vmatprep.subr.bf16.mxu0 %v3276
    %3973 = vmatpush1.bf16.msra.mxu0 %v3275
    %3974 = vmatprep.subr.bf16.mxu0 %v3284
    %3975 = vmatpush1.bf16.msra.mxu0 %v3283
    %3976 = vmatprep.subr.bf16.mxu0 %v3292
    %3977 = vmatpush1.bf16.msra.mxu0 %v3291
    %3978 = vmatprep.subr.bf16.mxu0 %v3300
    %3979 = vmatpush1.bf16.msra.mxu0 %v3299
    %3980 = vmatprep.subr.bf16.mxu0 %v3308
    %3981 = vmatpush1.bf16.msra.mxu0 %v3307
    %3982 = vmatprep.mubr.bf16.mxu0 %v1258
    %3983 = vmatmul.mubr.bf16.gmra.mrb[0].mxu0 %v1257
    %v3984 = vpop.f32.mrb[0].mxu0
    %v3985 = vadd.f32 %v3944, %v3984
    %v3986 = vpop.f32.mrb[0].mxu0
    %v3987 = vadd.f32 %v3946, %v3986
    %v3988 = vpop.f32.mrb[0].mxu0
    %v3989 = vpop.f32.mrb[0].mxu0
    %3990 = vdwg.mxu0
    %3991 = vmatprep.subr.bf16.mxu0 %v2806
    %3992 = vmatpush1.bf16.msra.mxu0 %v2805
    %3993 = vmatprep.subr.bf16.mxu0 %v2814
    %3994 = vmatpush1.bf16.msra.mxu0 %v2813
    %3995 = vmatprep.subr.bf16.mxu0 %v2822
    %3996 = vmatpush1.bf16.msra.mxu0 %v2821
    %3997 = vmatprep.subr.bf16.mxu0 %v2830
    %3998 = vmatpush1.bf16.msra.mxu0 %v2829
    %3999 = vmatprep.subr.bf16.mxu0 %v2838
    %4000 = vmatpush1.bf16.msra.mxu0 %v2837
    %4001 = vmatprep.subr.bf16.mxu0 %v2846
    %4002 = vmatpush1.bf16.msra.mxu0 %v2845
    %4003 = vmatprep.subr.bf16.mxu0 %v2854
    %4004 = vmatpush1.bf16.msra.mxu0 %v2853
    %4005 = vmatprep.subr.bf16.mxu0 %v2862
    %4006 = vmatpush1.bf16.msra.mxu0 %v2861
    %4007 = vmatprep.subr.bf16.mxu0 %v2870
    %4008 = vmatpush1.bf16.msra.mxu0 %v2869
    %4009 = vmatprep.subr.bf16.mxu0 %v2878
    %4010 = vmatpush1.bf16.msra.mxu0 %v2877
    %4011 = vmatprep.subr.bf16.mxu0 %v2886
    %4012 = vmatpush1.bf16.msra.mxu0 %v2885
    %4013 = vmatprep.subr.bf16.mxu0 %v2894
    %4014 = vmatpush1.bf16.msra.mxu0 %v2893
    %4015 = vmatprep.subr.bf16.mxu0 %v2902
    %4016 = vmatpush1.bf16.msra.mxu0 %v2901
    %4017 = vmatprep.subr.bf16.mxu0 %v2910
    %4018 = vmatpush1.bf16.msra.mxu0 %v2909
    %4019 = vmatprep.subr.bf16.mxu0 %v2918
    %4020 = vmatpush1.bf16.msra.mxu0 %v2917
    %4021 = vmatprep.subr.bf16.mxu0 %v2926
    %4022 = vmatpush1.bf16.msra.mxu0 %v2925
    %4023 = vmatprep.mubr.bf16.mxu0 %v1252
    %4024 = vmatmul.mubr.bf16.gmra.mrb[0].mxu0 %v1251
    %v4025 = vpop.f32.mrb[0].mxu0
    %v4026 = vadd.f32 %v1107, %v4025
    %v4027 = vpop.f32.mrb[0].mxu0
    %v4028 = vadd.f32 %v1111, %v4027
    %v4029 = vpop.f32.mrb[0].mxu0
    %v4030 = vpop.f32.mrb[0].mxu0
    %4031 = vdwg.mxu0
    %4032 = vmatprep.subr.bf16.mxu0 %v2934
    %4033 = vmatpush1.bf16.msra.mxu0 %v2933
    %4034 = vmatprep.subr.bf16.mxu0 %v2942
    %4035 = vmatpush1.bf16.msra.mxu0 %v2941
    %4036 = vmatprep.subr.bf16.mxu0 %v2950
    %4037 = vmatpush1.bf16.msra.mxu0 %v2949
    %4038 = vmatprep.subr.bf16.mxu0 %v2958
    %4039 = vmatpush1.bf16.msra.mxu0 %v2957
    %4040 = vmatprep.subr.bf16.mxu0 %v2966
    %4041 = vmatpush1.bf16.msra.mxu0 %v2965
    %4042 = vmatprep.subr.bf16.mxu0 %v2974
    %4043 = vmatpush1.bf16.msra.mxu0 %v2973
    %4044 = vmatprep.subr.bf16.mxu0 %v2982
    %4045 = vmatpush1.bf16.msra.mxu0 %v2981
    %4046 = vmatprep.subr.bf16.mxu0 %v2990
    %4047 = vmatpush1.bf16.msra.mxu0 %v2989
    %4048 = vmatprep.subr.bf16.mxu0 %v2998
    %4049 = vmatpush1.bf16.msra.mxu0 %v2997
    %4050 = vmatprep.subr.bf16.mxu0 %v3006
    %4051 = vmatpush1.bf16.msra.mxu0 %v3005
    %4052 = vmatprep.subr.bf16.mxu0 %v3014
    %4053 = vmatpush1.bf16.msra.mxu0 %v3013
    %4054 = vmatprep.subr.bf16.mxu0 %v3022
    %4055 = vmatpush1.bf16.msra.mxu0 %v3021
    %4056 = vmatprep.subr.bf16.mxu0 %v3030
    %4057 = vmatpush1.bf16.msra.mxu0 %v3029
    %4058 = vmatprep.subr.bf16.mxu0 %v3038
    %4059 = vmatpush1.bf16.msra.mxu0 %v3037
    %4060 = vmatprep.subr.bf16.mxu0 %v3046
    %4061 = vmatpush1.bf16.msra.mxu0 %v3045
    %4062 = vmatprep.subr.bf16.mxu0 %v3054
    %4063 = vmatpush1.bf16.msra.mxu0 %v3053
    %4064 = vmatprep.mubr.bf16.mxu0 %v1254
    %4065 = vmatmul.mubr.bf16.gmra.mrb[0].mxu0 %v1253
    %v4066 = vpop.f32.mrb[0].mxu0
    %v4067 = vadd.f32 %v4026, %v4066
    %v4068 = vpop.f32.mrb[0].mxu0
    %v4069 = vadd.f32 %v4028, %v4068
    %v4070 = vpop.f32.mrb[0].mxu0
    %v4071 = vpop.f32.mrb[0].mxu0
    %4072 = vdwg.mxu0
    %4073 = vmatprep.subr.bf16.mxu0 %v3062
    %4074 = vmatpush1.bf16.msra.mxu0 %v3061
    %4075 = vmatprep.subr.bf16.mxu0 %v3070
    %4076 = vmatpush1.bf16.msra.mxu0 %v3069
    %4077 = vmatprep.subr.bf16.mxu0 %v3078
    %4078 = vmatpush1.bf16.msra.mxu0 %v3077
    %4079 = vmatprep.subr.bf16.mxu0 %v3086
    %4080 = vmatpush1.bf16.msra.mxu0 %v3085
    %4081 = vmatprep.subr.bf16.mxu0 %v3094
    %4082 = vmatpush1.bf16.msra.mxu0 %v3093
    %4083 = vmatprep.subr.bf16.mxu0 %v3102
    %4084 = vmatpush1.bf16.msra.mxu0 %v3101
    %4085 = vmatprep.subr.bf16.mxu0 %v3110
    %4086 = vmatpush1.bf16.msra.mxu0 %v3109
    %4087 = vmatprep.subr.bf16.mxu0 %v3118
    %4088 = vmatpush1.bf16.msra.mxu0 %v3117
    %4089 = vmatprep.subr.bf16.mxu0 %v3126
    %4090 = vmatpush1.bf16.msra.mxu0 %v3125
    %4091 = vmatprep.subr.bf16.mxu0 %v3134
    %4092 = vmatpush1.bf16.msra.mxu0 %v3133
    %4093 = vmatprep.subr.bf16.mxu0 %v3142
    %4094 = vmatpush1.bf16.msra.mxu0 %v3141
    %4095 = vmatprep.subr.bf16.mxu0 %v3150
    %4096 = vmatpush1.bf16.msra.mxu0 %v3149
    %4097 = vmatprep.subr.bf16.mxu0 %v3158
    %4098 = vmatpush1.bf16.msra.mxu0 %v3157
    %4099 = vmatprep.subr.bf16.mxu0 %v3166
    %4100 = vmatpush1.bf16.msra.mxu0 %v3165
    %4101 = vmatprep.subr.bf16.mxu0 %v3174
    %4102 = vmatpush1.bf16.msra.mxu0 %v3173
    %4103 = vmatprep.subr.bf16.mxu0 %v3182
    %4104 = vmatpush1.bf16.msra.mxu0 %v3181
    %4105 = vmatprep.mubr.bf16.mxu0 %v1256
    %4106 = vmatmul.mubr.bf16.gmra.mrb[0].mxu0 %v1255
    %v4107 = vpop.f32.mrb[0].mxu0
    %v4108 = vadd.f32 %v4067, %v4107
    %v4109 = vpop.f32.mrb[0].mxu0
    %v4110 = vadd.f32 %v4069, %v4109
    %v4111 = vpop.f32.mrb[0].mxu0
    %v4112 = vpop.f32.mrb[0].mxu0
    %4113 = vdwg.mxu0
    %4114 = vmatprep.subr.bf16.mxu0 %v3190
    %4115 = vmatpush1.bf16.msra.mxu0 %v3189
    %4116 = vmatprep.subr.bf16.mxu0 %v3198
    %4117 = vmatpush1.bf16.msra.mxu0 %v3197
    %4118 = vmatprep.subr.bf16.mxu0 %v3206
    %4119 = vmatpush1.bf16.msra.mxu0 %v3205
    %4120 = vmatprep.subr.bf16.mxu0 %v3214
    %4121 = vmatpush1.bf16.msra.mxu0 %v3213
    %4122 = vmatprep.subr.bf16.mxu0 %v3222
    %4123 = vmatpush1.bf16.msra.mxu0 %v3221
    %4124 = vmatprep.subr.bf16.mxu0 %v3230
    %4125 = vmatpush1.bf16.msra.mxu0 %v3229
    %4126 = vmatprep.subr.bf16.mxu0 %v3238
    %4127 = vmatpush1.bf16.msra.mxu0 %v3237
    %4128 = vmatprep.subr.bf16.mxu0 %v3246
    %4129 = vmatpush1.bf16.msra.mxu0 %v3245
    %4130 = vmatprep.subr.bf16.mxu0 %v3254
    %4131 = vmatpush1.bf16.msra.mxu0 %v3253
    %4132 = vmatprep.subr.bf16.mxu0 %v3262
    %4133 = vmatpush1.bf16.msra.mxu0 %v3261
    %4134 = vmatprep.subr.bf16.mxu0 %v3270
    %4135 = vmatpush1.bf16.msra.mxu0 %v3269
    %4136 = vmatprep.subr.bf16.mxu0 %v3278
    %4137 = vmatpush1.bf16.msra.mxu0 %v3277
    %4138 = vmatprep.subr.bf16.mxu0 %v3286
    %4139 = vmatpush1.bf16.msra.mxu0 %v3285
    %4140 = vmatprep.subr.bf16.mxu0 %v3294
    %4141 = vmatpush1.bf16.msra.mxu0 %v3293
    %4142 = vmatprep.subr.bf16.mxu0 %v3302
    %4143 = vmatpush1.bf16.msra.mxu0 %v3301
    %4144 = vmatprep.subr.bf16.mxu0 %v3310
    %4145 = vmatpush1.bf16.msra.mxu0 %v3309
    %4146 = vmatprep.mubr.bf16.mxu0 %v1258
    %4147 = vmatmul.mubr.bf16.gmra.mrb[0].mxu0 %v1257
    %v4148 = vpop.f32.mrb[0].mxu0
    %v4149 = vadd.f32 %v4108, %v4148
    %v4150 = vpop.f32.mrb[0].mxu0
    %v4151 = vadd.f32 %v4110, %v4150
    %v4152 = vpop.f32.mrb[0].mxu0
    %v4153 = vpop.f32.mrb[0].mxu0
    %4154 = vdwg.mxu0
    %4155 = vmatprep.subr.bf16.mxu0 %v2808
    %4156 = vmatpush1.bf16.msra.mxu0 %v2807
    %4157 = vmatprep.subr.bf16.mxu0 %v2816
    %4158 = vmatpush1.bf16.msra.mxu0 %v2815
    %4159 = vmatprep.subr.bf16.mxu0 %v2824
    %4160 = vmatpush1.bf16.msra.mxu0 %v2823
    %4161 = vmatprep.subr.bf16.mxu0 %v2832
    %4162 = vmatpush1.bf16.msra.mxu0 %v2831
    %4163 = vmatprep.subr.bf16.mxu0 %v2840
    %4164 = vmatpush1.bf16.msra.mxu0 %v2839
    %4165 = vmatprep.subr.bf16.mxu0 %v2848
    %4166 = vmatpush1.bf16.msra.mxu0 %v2847
    %4167 = vmatprep.subr.bf16.mxu0 %v2856
    %4168 = vmatpush1.bf16.msra.mxu0 %v2855
    %4169 = vmatprep.subr.bf16.mxu0 %v2864
    %4170 = vmatpush1.bf16.msra.mxu0 %v2863
    %4171 = vmatprep.subr.bf16.mxu0 %v2872
    %4172 = vmatpush1.bf16.msra.mxu0 %v2871
    %4173 = vmatprep.subr.bf16.mxu0 %v2880
    %4174 = vmatpush1.bf16.msra.mxu0 %v2879
    %4175 = vmatprep.subr.bf16.mxu0 %v2888
    %4176 = vmatpush1.bf16.msra.mxu0 %v2887
    %4177 = vmatprep.subr.bf16.mxu0 %v2896
    %4178 = vmatpush1.bf16.msra.mxu0 %v2895
    %4179 = vmatprep.subr.bf16.mxu0 %v2904
    %4180 = vmatpush1.bf16.msra.mxu0 %v2903
    %4181 = vmatprep.subr.bf16.mxu0 %v2912
    %4182 = vmatpush1.bf16.msra.mxu0 %v2911
    %4183 = vmatprep.subr.bf16.mxu0 %v2920
    %4184 = vmatpush1.bf16.msra.mxu0 %v2919
    %4185 = vmatprep.subr.bf16.mxu0 %v2928
    %4186 = vmatpush1.bf16.msra.mxu0 %v2927
    %4187 = vmatprep.mubr.bf16.mxu0 %v1252
    %4188 = vmatmul.mubr.bf16.gmra.mrb[0].mxu0 %v1251
    %v4189 = vpop.f32.mrb[0].mxu0
    %v4190 = vadd.f32 %v1115, %v4189
    %v4191 = vpop.f32.mrb[0].mxu0
    %v4192 = vadd.f32 %v1119, %v4191
    %v4193 = vpop.f32.mrb[0].mxu0
    %v4194 = vpop.f32.mrb[0].mxu0
    %4195 = vdwg.mxu0
    %4196 = vmatprep.subr.bf16.mxu0 %v2936
    %4197 = vmatpush1.bf16.msra.mxu0 %v2935
    %4198 = vmatprep.subr.bf16.mxu0 %v2944
    %4199 = vmatpush1.bf16.msra.mxu0 %v2943
    %4200 = vmatprep.subr.bf16.mxu0 %v2952
    %4201 = vmatpush1.bf16.msra.mxu0 %v2951
    %4202 = vmatprep.subr.bf16.mxu0 %v2960
    %4203 = vmatpush1.bf16.msra.mxu0 %v2959
    %4204 = vmatprep.subr.bf16.mxu0 %v2968
    %4205 = vmatpush1.bf16.msra.mxu0 %v2967
    %4206 = vmatprep.subr.bf16.mxu0 %v2976
    %4207 = vmatpush1.bf16.msra.mxu0 %v2975
    %4208 = vmatprep.subr.bf16.mxu0 %v2984
    %4209 = vmatpush1.bf16.msra.mxu0 %v2983
    %4210 = vmatprep.subr.bf16.mxu0 %v2992
    %4211 = vmatpush1.bf16.msra.mxu0 %v2991
    %4212 = vmatprep.subr.bf16.mxu0 %v3000
    %4213 = vmatpush1.bf16.msra.mxu0 %v2999
    %4214 = vmatprep.subr.bf16.mxu0 %v3008
    %4215 = vmatpush1.bf16.msra.mxu0 %v3007
    %4216 = vmatprep.subr.bf16.mxu0 %v3016
    %4217 = vmatpush1.bf16.msra.mxu0 %v3015
    %4218 = vmatprep.subr.bf16.mxu0 %v3024
    %4219 = vmatpush1.bf16.msra.mxu0 %v3023
    %4220 = vmatprep.subr.bf16.mxu0 %v3032
    %4221 = vmatpush1.bf16.msra.mxu0 %v3031
    %4222 = vmatprep.subr.bf16.mxu0 %v3040
    %4223 = vmatpush1.bf16.msra.mxu0 %v3039
    %4224 = vmatprep.subr.bf16.mxu0 %v3048
    %4225 = vmatpush1.bf16.msra.mxu0 %v3047
    %4226 = vmatprep.subr.bf16.mxu0 %v3056
    %4227 = vmatpush1.bf16.msra.mxu0 %v3055
    %4228 = vmatprep.mubr.bf16.mxu0 %v1254
    %4229 = vmatmul.mubr.bf16.gmra.mrb[0].mxu0 %v1253
    %v4230 = vpop.f32.mrb[0].mxu0
    %v4231 = vadd.f32 %v4190, %v4230
    %v4232 = vpop.f32.mrb[0].mxu0
    %v4233 = vadd.f32 %v4192, %v4232
    %v4234 = vpop.f32.mrb[0].mxu0
    %v4235 = vpop.f32.mrb[0].mxu0
    %4236 = vdwg.mxu0
    %4237 = vmatprep.subr.bf16.mxu0 %v3064
    %4238 = vmatpush1.bf16.msra.mxu0 %v3063
    %4239 = vmatprep.subr.bf16.mxu0 %v3072
    %4240 = vmatpush1.bf16.msra.mxu0 %v3071
    %4241 = vmatprep.subr.bf16.mxu0 %v3080
    %4242 = vmatpush1.bf16.msra.mxu0 %v3079
    %4243 = vmatprep.subr.bf16.mxu0 %v3088
    %4244 = vmatpush1.bf16.msra.mxu0 %v3087
    %4245 = vmatprep.subr.bf16.mxu0 %v3096
    %4246 = vmatpush1.bf16.msra.mxu0 %v3095
    %4247 = vmatprep.subr.bf16.mxu0 %v3104
    %4248 = vmatpush1.bf16.msra.mxu0 %v3103
    %4249 = vmatprep.subr.bf16.mxu0 %v3112
    %4250 = vmatpush1.bf16.msra.mxu0 %v3111
    %4251 = vmatprep.subr.bf16.mxu0 %v3120
    %4252 = vmatpush1.bf16.msra.mxu0 %v3119
    %4253 = vmatprep.subr.bf16.mxu0 %v3128
    %4254 = vmatpush1.bf16.msra.mxu0 %v3127
    %4255 = vmatprep.subr.bf16.mxu0 %v3136
    %4256 = vmatpush1.bf16.msra.mxu0 %v3135
    %4257 = vmatprep.subr.bf16.mxu0 %v3144
    %4258 = vmatpush1.bf16.msra.mxu0 %v3143
    %4259 = vmatprep.subr.bf16.mxu0 %v3152
    %4260 = vmatpush1.bf16.msra.mxu0 %v3151
    %4261 = vmatprep.subr.bf16.mxu0 %v3160
    %4262 = vmatpush1.bf16.msra.mxu0 %v3159
    %4263 = vmatprep.subr.bf16.mxu0 %v3168
    %4264 = vmatpush1.bf16.msra.mxu0 %v3167
    %4265 = vmatprep.subr.bf16.mxu0 %v3176
    %4266 = vmatpush1.bf16.msra.mxu0 %v3175
    %4267 = vmatprep.subr.bf16.mxu0 %v3184
    %4268 = vmatpush1.bf16.msra.mxu0 %v3183
    %4269 = vmatprep.mubr.bf16.mxu0 %v1256
    %4270 = vmatmul.mubr.bf16.gmra.mrb[0].mxu0 %v1255
    %v4271 = vpop.f32.mrb[0].mxu0
    %v4272 = vadd.f32 %v4231, %v4271
    %v4273 = vpop.f32.mrb[0].mxu0
    %v4274 = vadd.f32 %v4233, %v4273
    %v4275 = vpop.f32.mrb[0].mxu0
    %v4276 = vpop.f32.mrb[0].mxu0
    %4277 = vdwg.mxu0
    %4278 = vmatprep.subr.bf16.mxu0 %v3192
    %4279 = vmatpush1.bf16.msra.mxu0 %v3191
    %4280 = vmatprep.subr.bf16.mxu0 %v3200
    %4281 = vmatpush1.bf16.msra.mxu0 %v3199
    %4282 = vmatprep.subr.bf16.mxu0 %v3208
    %4283 = vmatpush1.bf16.msra.mxu0 %v3207
    %4284 = vmatprep.subr.bf16.mxu0 %v3216
    %4285 = vmatpush1.bf16.msra.mxu0 %v3215
    %4286 = vmatprep.subr.bf16.mxu0 %v3224
    %4287 = vmatpush1.bf16.msra.mxu0 %v3223
    %4288 = vmatprep.subr.bf16.mxu0 %v3232
    %4289 = vmatpush1.bf16.msra.mxu0 %v3231
    %4290 = vmatprep.subr.bf16.mxu0 %v3240
    %4291 = vmatpush1.bf16.msra.mxu0 %v3239
    %4292 = vmatprep.subr.bf16.mxu0 %v3248
    %4293 = vmatpush1.bf16.msra.mxu0 %v3247
    %4294 = vmatprep.subr.bf16.mxu0 %v3256
    %4295 = vmatpush1.bf16.msra.mxu0 %v3255
    %4296 = vmatprep.subr.bf16.mxu0 %v3264
    %4297 = vmatpush1.bf16.msra.mxu0 %v3263
    %4298 = vmatprep.subr.bf16.mxu0 %v3272
    %4299 = vmatpush1.bf16.msra.mxu0 %v3271
    %4300 = vmatprep.subr.bf16.mxu0 %v3280
    %4301 = vmatpush1.bf16.msra.mxu0 %v3279
    %4302 = vmatprep.subr.bf16.mxu0 %v3288
    %4303 = vmatpush1.bf16.msra.mxu0 %v3287
    %4304 = vmatprep.subr.bf16.mxu0 %v3296
    %4305 = vmatpush1.bf16.msra.mxu0 %v3295
    %4306 = vmatprep.subr.bf16.mxu0 %v3304
    %4307 = vmatpush1.bf16.msra.mxu0 %v3303
    %4308 = vmatprep.subr.bf16.mxu0 %v3312
    %4309 = vmatpush1.bf16.msra.mxu0 %v3311
    %4310 = vmatprep.mubr.bf16.mxu0 %v1258
    %4311 = vmatmul.mubr.bf16.gmra.mrb[0].mxu0 %v1257
    %v4312 = vpop.f32.mrb[0].mxu0
    %v4313 = vadd.f32 %v4272, %v4312
    %v4314 = vpop.f32.mrb[0].mxu0
    %v4315 = vadd.f32 %v4274, %v4314
    %v4316 = vpop.f32.mrb[0].mxu0
    %v4317 = vpop.f32.mrb[0].mxu0
    %4318 = vdwg.mxu0
    %4319 = vmatprep.subr.bf16.mxu0 %v2810
    %4320 = vmatpush1.bf16.msra.mxu0 %v2809
    %4321 = vmatprep.subr.bf16.mxu0 %v2818
    %4322 = vmatpush1.bf16.msra.mxu0 %v2817
    %4323 = vmatprep.subr.bf16.mxu0 %v2826
    %4324 = vmatpush1.bf16.msra.mxu0 %v2825
    %4325 = vmatprep.subr.bf16.mxu0 %v2834
    %4326 = vmatpush1.bf16.msra.mxu0 %v2833
    %4327 = vmatprep.subr.bf16.mxu0 %v2842
    %4328 = vmatpush1.bf16.msra.mxu0 %v2841
    %4329 = vmatprep.subr.bf16.mxu0 %v2850
    %4330 = vmatpush1.bf16.msra.mxu0 %v2849
    %4331 = vmatprep.subr.bf16.mxu0 %v2858
    %4332 = vmatpush1.bf16.msra.mxu0 %v2857
    %4333 = vmatprep.subr.bf16.mxu0 %v2866
    %4334 = vmatpush1.bf16.msra.mxu0 %v2865
    %4335 = vmatprep.subr.bf16.mxu0 %v2874
    %4336 = vmatpush1.bf16.msra.mxu0 %v2873
    %4337 = vmatprep.subr.bf16.mxu0 %v2882
    %4338 = vmatpush1.bf16.msra.mxu0 %v2881
    %4339 = vmatprep.subr.bf16.mxu0 %v2890
    %4340 = vmatpush1.bf16.msra.mxu0 %v2889
    %4341 = vmatprep.subr.bf16.mxu0 %v2898
    %4342 = vmatpush1.bf16.msra.mxu0 %v2897
    %4343 = vmatprep.subr.bf16.mxu0 %v2906
    %4344 = vmatpush1.bf16.msra.mxu0 %v2905
    %4345 = vmatprep.subr.bf16.mxu0 %v2914
    %4346 = vmatpush1.bf16.msra.mxu0 %v2913
    %4347 = vmatprep.subr.bf16.mxu0 %v2922
    %4348 = vmatpush1.bf16.msra.mxu0 %v2921
    %4349 = vmatprep.subr.bf16.mxu0 %v2930
    %4350 = vmatpush1.bf16.msra.mxu0 %v2929
    %4351 = vmatprep.mubr.bf16.mxu0 %v1252
    %4352 = vmatmul.mubr.bf16.gmra.mrb[0].mxu0 %v1251
    %v4353 = vpop.f32.mrb[0].mxu0
    %v4354 = vadd.f32 %v1123, %v4353
    %v4355 = vpop.f32.mrb[0].mxu0
    %v4356 = vadd.f32 %v1127, %v4355
    %v4357 = vpop.f32.mrb[0].mxu0
    %v4358 = vpop.f32.mrb[0].mxu0
    %4359 = vdwg.mxu0
    %4360 = vmatprep.subr.bf16.mxu0 %v2938
    %4361 = vmatpush1.bf16.msra.mxu0 %v2937
    %4362 = vmatprep.subr.bf16.mxu0 %v2946
    %4363 = vmatpush1.bf16.msra.mxu0 %v2945
    %4364 = vmatprep.subr.bf16.mxu0 %v2954
    %4365 = vmatpush1.bf16.msra.mxu0 %v2953
    %4366 = vmatprep.subr.bf16.mxu0 %v2962
    %4367 = vmatpush1.bf16.msra.mxu0 %v2961
    %4368 = vmatprep.subr.bf16.mxu0 %v2970
    %4369 = vmatpush1.bf16.msra.mxu0 %v2969
    %4370 = vmatprep.subr.bf16.mxu0 %v2978
    %4371 = vmatpush1.bf16.msra.mxu0 %v2977
    %4372 = vmatprep.subr.bf16.mxu0 %v2986
    %4373 = vmatpush1.bf16.msra.mxu0 %v2985
    %4374 = vmatprep.subr.bf16.mxu0 %v2994
    %4375 = vmatpush1.bf16.msra.mxu0 %v2993
    %4376 = vmatprep.subr.bf16.mxu0 %v3002
    %4377 = vmatpush1.bf16.msra.mxu0 %v3001
    %4378 = vmatprep.subr.bf16.mxu0 %v3010
    %4379 = vmatpush1.bf16.msra.mxu0 %v3009
    %4380 = vmatprep.subr.bf16.mxu0 %v3018
    %4381 = vmatpush1.bf16.msra.mxu0 %v3017
    %4382 = vmatprep.subr.bf16.mxu0 %v3026
    %4383 = vmatpush1.bf16.msra.mxu0 %v3025
    %4384 = vmatprep.subr.bf16.mxu0 %v3034
    %4385 = vmatpush1.bf16.msra.mxu0 %v3033
    %4386 = vmatprep.subr.bf16.mxu0 %v3042
    %4387 = vmatpush1.bf16.msra.mxu0 %v3041
    %4388 = vmatprep.subr.bf16.mxu0 %v3050
    %4389 = vmatpush1.bf16.msra.mxu0 %v3049
    %4390 = vmatprep.subr.bf16.mxu0 %v3058
    %4391 = vmatpush1.bf16.msra.mxu0 %v3057
    %4392 = vmatprep.mubr.bf16.mxu0 %v1254
    %4393 = vmatmul.mubr.bf16.gmra.mrb[0].mxu0 %v1253
    %v4394 = vpop.f32.mrb[0].mxu0
    %v4395 = vadd.f32 %v4354, %v4394
    %v4396 = vpop.f32.mrb[0].mxu0
    %v4397 = vadd.f32 %v4356, %v4396
    %v4398 = vpop.f32.mrb[0].mxu0
    %v4399 = vpop.f32.mrb[0].mxu0
    %4400 = vdwg.mxu0
    %4401 = vmatprep.subr.bf16.mxu0 %v3066
    %4402 = vmatpush1.bf16.msra.mxu0 %v3065
    %4403 = vmatprep.subr.bf16.mxu0 %v3074
    %4404 = vmatpush1.bf16.msra.mxu0 %v3073
    %4405 = vmatprep.subr.bf16.mxu0 %v3082
    %4406 = vmatpush1.bf16.msra.mxu0 %v3081
    %4407 = vmatprep.subr.bf16.mxu0 %v3090
    %4408 = vmatpush1.bf16.msra.mxu0 %v3089
    %4409 = vmatprep.subr.bf16.mxu0 %v3098
    %4410 = vmatpush1.bf16.msra.mxu0 %v3097
    %4411 = vmatprep.subr.bf16.mxu0 %v3106
    %4412 = vmatpush1.bf16.msra.mxu0 %v3105
    %4413 = vmatprep.subr.bf16.mxu0 %v3114
    %4414 = vmatpush1.bf16.msra.mxu0 %v3113
    %4415 = vmatprep.subr.bf16.mxu0 %v3122
    %4416 = vmatpush1.bf16.msra.mxu0 %v3121
    %4417 = vmatprep.subr.bf16.mxu0 %v3130
    %4418 = vmatpush1.bf16.msra.mxu0 %v3129
    %4419 = vmatprep.subr.bf16.mxu0 %v3138
    %4420 = vmatpush1.bf16.msra.mxu0 %v3137
    %4421 = vmatprep.subr.bf16.mxu0 %v3146
    %4422 = vmatpush1.bf16.msra.mxu0 %v3145
    %4423 = vmatprep.subr.bf16.mxu0 %v3154
    %4424 = vmatpush1.bf16.msra.mxu0 %v3153
    %4425 = vmatprep.subr.bf16.mxu0 %v3162
    %4426 = vmatpush1.bf16.msra.mxu0 %v3161
    %4427 = vmatprep.subr.bf16.mxu0 %v3170
    %4428 = vmatpush1.bf16.msra.mxu0 %v3169
    %4429 = vmatprep.subr.bf16.mxu0 %v3178
    %4430 = vmatpush1.bf16.msra.mxu0 %v3177
    %4431 = vmatprep.subr.bf16.mxu0 %v3186
    %4432 = vmatpush1.bf16.msra.mxu0 %v3185
    %4433 = vmatprep.mubr.bf16.mxu0 %v1256
    %4434 = vmatmul.mubr.bf16.gmra.mrb[0].mxu0 %v1255
    %v4435 = vpop.f32.mrb[0].mxu0
    %v4436 = vadd.f32 %v4395, %v4435
    %v4437 = vpop.f32.mrb[0].mxu0
    %v4438 = vadd.f32 %v4397, %v4437
    %v4439 = vpop.f32.mrb[0].mxu0
    %v4440 = vpop.f32.mrb[0].mxu0
    %4441 = vdwg.mxu0
    %4442 = vmatprep.subr.bf16.mxu0 %v3194
    %4443 = vmatpush1.bf16.msra.mxu0 %v3193
    %4444 = vmatprep.subr.bf16.mxu0 %v3202
    %4445 = vmatpush1.bf16.msra.mxu0 %v3201
    %4446 = vmatprep.subr.bf16.mxu0 %v3210
    %4447 = vmatpush1.bf16.msra.mxu0 %v3209
    %4448 = vmatprep.subr.bf16.mxu0 %v3218
    %4449 = vmatpush1.bf16.msra.mxu0 %v3217
    %4450 = vmatprep.subr.bf16.mxu0 %v3226
    %4451 = vmatpush1.bf16.msra.mxu0 %v3225
    %4452 = vmatprep.subr.bf16.mxu0 %v3234
    %4453 = vmatpush1.bf16.msra.mxu0 %v3233
    %4454 = vmatprep.subr.bf16.mxu0 %v3242
    %4455 = vmatpush1.bf16.msra.mxu0 %v3241
    %4456 = vmatprep.subr.bf16.mxu0 %v3250
    %4457 = vmatpush1.bf16.msra.mxu0 %v3249
    %4458 = vmatprep.subr.bf16.mxu0 %v3258
    %4459 = vmatpush1.bf16.msra.mxu0 %v3257
    %4460 = vmatprep.subr.bf16.mxu0 %v3266
    %4461 = vmatpush1.bf16.msra.mxu0 %v3265
    %4462 = vmatprep.subr.bf16.mxu0 %v3274
    %4463 = vmatpush1.bf16.msra.mxu0 %v3273
    %4464 = vmatprep.subr.bf16.mxu0 %v3282
    %4465 = vmatpush1.bf16.msra.mxu0 %v3281
    %4466 = vmatprep.subr.bf16.mxu0 %v3290
    %4467 = vmatpush1.bf16.msra.mxu0 %v3289
    %4468 = vmatprep.subr.bf16.mxu0 %v3298
    %4469 = vmatpush1.bf16.msra.mxu0 %v3297
    %4470 = vmatprep.subr.bf16.mxu0 %v3306
    %4471 = vmatpush1.bf16.msra.mxu0 %v3305
    %4472 = vmatprep.subr.bf16.mxu0 %v3314
    %4473 = vmatpush1.bf16.msra.mxu0 %v3313
    %4474 = vmatprep.mubr.bf16.mxu0 %v1258
    %4475 = vmatmul.mubr.bf16.gmra.mrb[0].mxu0 %v1257
    %v4476 = vpop.f32.mrb[0].mxu0
    %v4477 = vadd.f32 %v4436, %v4476
    %v4478 = vpop.f32.mrb[0].mxu0
    %v4479 = vadd.f32 %v4438, %v4478
    %v4480 = vpop.f32.mrb[0].mxu0
    %v4481 = vpop.f32.mrb[0].mxu0
    %4482 = vdwg.mxu0
    %vm4483 = vcmask 1043456
    %v4484 = vsel %vm4483, %v3985, 0.0
    %v4485 = vsel %vm4483, %v3987, 0.0
    %v4486 = vadd.f32 %v4484, %v4485
    %v4487 = vsel %vm4483, %v4149, 0.0
    %v4488 = vadd.f32 %v4486, %v4487
    %v4489 = vsel %vm4483, %v4151, 0.0
    %v4490 = vadd.f32 %v4488, %v4489
    %v4491 = vsel %vm4483, %v4313, 0.0
    %v4492 = vadd.f32 %v4490, %v4491
    %v4493 = vsel %vm4483, %v4315, 0.0
    %v4494 = vadd.f32 %v4492, %v4493
    %v4495 = vsel %vm4483, %v4477, 0.0
    %v4496 = vadd.f32 %v4494, %v4495
    %v4497 = vsel %vm4483, %v4479, 0.0
    %v4498 = vadd.f32 %v4496, %v4497
    %4499 = vadd.xlane.f32.xlu0 %v4498
    %v4500 = vpop.xlane.xlu0 %4499
    %v4501 = vrcp.pop 1024.0
    %v4502 = vmul.f32 %v4500, %v4501
    %v4503 = vsub.f32 %v3985, %v4502
    %v4504 = vsub.f32 %v3987, %v4502
    %v4505 = vsub.f32 %v4149, %v4502
    %v4506 = vsub.f32 %v4151, %v4502
    %v4507 = vsub.f32 %v4313, %v4502
    %v4508 = vsub.f32 %v4315, %v4502
    %v4509 = vsub.f32 %v4477, %v4502
    %v4510 = vsub.f32 %v4479, %v4502
    %v4511 = vmul.f32 %v4503, %v4503
    %v4512 = vmul.f32 %v4504, %v4504
    %v4513 = vmul.f32 %v4505, %v4505
    %v4514 = vmul.f32 %v4506, %v4506
    %v4515 = vmul.f32 %v4507, %v4507
    %v4516 = vmul.f32 %v4508, %v4508
    %v4517 = vmul.f32 %v4509, %v4509
    %v4518 = vmul.f32 %v4510, %v4510
    %v4519 = vsel %vm4483, %v4511, 0.0
    %v4520 = vsel %vm4483, %v4512, 0.0
    %v4521 = vadd.f32 %v4519, %v4520
    %v4522 = vsel %vm4483, %v4513, 0.0
    %v4523 = vadd.f32 %v4521, %v4522
    %v4524 = vsel %vm4483, %v4514, 0.0
    %v4525 = vadd.f32 %v4523, %v4524
    %v4526 = vsel %vm4483, %v4515, 0.0
    %v4527 = vadd.f32 %v4525, %v4526
    %v4528 = vsel %vm4483, %v4516, 0.0
    %v4529 = vadd.f32 %v4527, %v4528
    %v4530 = vsel %vm4483, %v4517, 0.0
    %v4531 = vadd.f32 %v4529, %v4530
    %v4532 = vsel %vm4483, %v4518, 0.0
    %v4533 = vadd.f32 %v4531, %v4532
    %4534 = vadd.xlane.f32.xlu0 %v4533
    %v4535 = vpop.xlane.xlu0 %4534
    %v4536 = vmul.f32 %v4535, %v4501
    %v4537 = vadd.f32 %v4536, 1e-05
    %v4538 = vrsqrt.pop %v4537
    %v4539 = vmul.f32 %v4503, %v4538
    %v4540 = vmul.f32 %v4504, %v4538
    %v4541 = vmul.f32 %v4505, %v4538
    %v4542 = vmul.f32 %v4506, %v4538
    %v4543 = vmul.f32 %v4507, %v4538
    %v4544 = vmul.f32 %v4508, %v4538
    %v4545 = vmul.f32 %v4509, %v4538
    %v4546 = vmul.f32 %v4510, %v4538
    %s4547 = scalar_lea.vmem [#allocation8], 1
    %v4548 = vld [vmem:[%s4547] ss:$4 sm:$0xff]
    %v4550 = vlaneseq
    %v4551 = vshrl.u32 %v4550, 7
    %v4552 = vsub.s32 0, %v4551
    %v4553 = vrot.slane %v4548, %v4552
    %v4554 = vlaneseq
    %v4555 = vshrl.u32 %v4554, 7
    %v4556 = vsub.s32 1, %v4555
    %v4557 = vrot.slane %v4548, %v4556
    %v4558 = vlaneseq
    %v4559 = vshrl.u32 %v4558, 7
    %v4560 = vsub.s32 2, %v4559
    %v4561 = vrot.slane %v4548, %v4560
    %v4562 = vlaneseq
    %v4563 = vshrl.u32 %v4562, 7
    %v4564 = vsub.s32 3, %v4563
    %v4565 = vrot.slane %v4548, %v4564
    %v4566 = vlaneseq
    %v4567 = vshrl.u32 %v4566, 7
    %v4568 = vsub.s32 4, %v4567
    %v4569 = vrot.slane %v4548, %v4568
    %v4570 = vlaneseq
    %v4571 = vshrl.u32 %v4570, 7
    %v4572 = vsub.s32 5, %v4571
    %v4573 = vrot.slane %v4548, %v4572
    %v4574 = vlaneseq
    %v4575 = vshrl.u32 %v4574, 7
    %v4576 = vsub.s32 6, %v4575
    %v4577 = vrot.slane %v4548, %v4576
    %v4578 = vlaneseq
    %v4579 = vshrl.u32 %v4578, 7
    %v4580 = vsub.s32 7, %v4579
    %v4581 = vrot.slane %v4548, %v4580
    %v4590 = vmul.f32 %v4539, %v4553
    %v4591 = vmul.f32 %v4540, %v4557
    %v4592 = vmul.f32 %v4541, %v4561
    %v4593 = vmul.f32 %v4542, %v4565
    %v4594 = vmul.f32 %v4543, %v4569
    %v4595 = vmul.f32 %v4544, %v4573
    %v4596 = vmul.f32 %v4545, %v4577
    %v4597 = vmul.f32 %v4546, %v4581
    %s4598 = scalar_lea.vmem [#allocation8], 2
    %v4599 = vld [vmem:[%s4598] ss:$4 sm:$0xff]
    %v4601 = vlaneseq
    %v4602 = vshrl.u32 %v4601, 7
    %v4603 = vsub.s32 0, %v4602
    %v4604 = vrot.slane %v4599, %v4603
    %v4605 = vlaneseq
    %v4606 = vshrl.u32 %v4605, 7
    %v4607 = vsub.s32 1, %v4606
    %v4608 = vrot.slane %v4599, %v4607
    %v4609 = vlaneseq
    %v4610 = vshrl.u32 %v4609, 7
    %v4611 = vsub.s32 2, %v4610
    %v4612 = vrot.slane %v4599, %v4611
    %v4613 = vlaneseq
    %v4614 = vshrl.u32 %v4613, 7
    %v4615 = vsub.s32 3, %v4614
    %v4616 = vrot.slane %v4599, %v4615
    %v4617 = vlaneseq
    %v4618 = vshrl.u32 %v4617, 7
    %v4619 = vsub.s32 4, %v4618
    %v4620 = vrot.slane %v4599, %v4619
    %v4621 = vlaneseq
    %v4622 = vshrl.u32 %v4621, 7
    %v4623 = vsub.s32 5, %v4622
    %v4624 = vrot.slane %v4599, %v4623
    %v4625 = vlaneseq
    %v4626 = vshrl.u32 %v4625, 7
    %v4627 = vsub.s32 6, %v4626
    %v4628 = vrot.slane %v4599, %v4627
    %v4629 = vlaneseq
    %v4630 = vshrl.u32 %v4629, 7
    %v4631 = vsub.s32 7, %v4630
    %v4632 = vrot.slane %v4599, %v4631
    %v4641 = vadd.f32 %v4590, %v4604
    %v4642 = vadd.f32 %v4591, %v4608
    %v4643 = vadd.f32 %v4592, %v4612
    %v4644 = vadd.f32 %v4593, %v4616
    %v4645 = vadd.f32 %v4594, %v4620
    %v4646 = vadd.f32 %v4595, %v4624
    %v4647 = vadd.f32 %v4596, %v4628
    %v4648 = vadd.f32 %v4597, %v4632
    %v4649 = vld [vmem:[#allocation7] sm:$0xff]
    %v4650 = vld [vmem:[#allocation7 + $0x8] sm:$0xff]
    %v4651 = vld [vmem:[#allocation7 + $0x10] sm:$0xff]
    %v4652 = vld [vmem:[#allocation7 + $0x18] sm:$0xff]
    %v4653 = vld [vmem:[#allocation7 + $0x20] sm:$0xff]
    %v4654 = vld [vmem:[#allocation7 + $0x28] sm:$0xff]
    %v4655 = vld [vmem:[#allocation7 + $0x30] sm:$0xff]
    %v4656 = vld [vmem:[#allocation7 + $0x38] sm:$0xff]
    %v4657 = vld [vmem:[#allocation7 + $0x40] sm:$0xff]
    %v4658 = vld [vmem:[#allocation7 + $0x48] sm:$0xff]
    %v4659 = vld [vmem:[#allocation7 + $0x50] sm:$0xff]
    %v4660 = vld [vmem:[#allocation7 + $0x58] sm:$0xff]
    %v4661 = vld [vmem:[#allocation7 + $0x60] sm:$0xff]
    %v4662 = vld [vmem:[#allocation7 + $0x68] sm:$0xff]
    %v4663 = vld [vmem:[#allocation7 + $0x70] sm:$0xff]
    %v4664 = vld [vmem:[#allocation7 + $0x78] sm:$0xff]
    %v4665 = vld [vmem:[#allocation7 + $0x80] sm:$0xff]
    %v4666 = vld [vmem:[#allocation7 + $0x88] sm:$0xff]
    %v4667 = vld [vmem:[#allocation7 + $0x90] sm:$0xff]
    %v4668 = vld [vmem:[#allocation7 + $0x98] sm:$0xff]
    %v4669 = vld [vmem:[#allocation7 + $0xa0] sm:$0xff]
    %v4670 = vld [vmem:[#allocation7 + $0xa8] sm:$0xff]
    %v4671 = vld [vmem:[#allocation7 + $0xb0] sm:$0xff]
    %v4672 = vld [vmem:[#allocation7 + $0xb8] sm:$0xff]
    %v4673 = vld [vmem:[#allocation7 + $0xc0] sm:$0xff]
    %v4674 = vld [vmem:[#allocation7 + $0xc8] sm:$0xff]
    %v4675 = vld [vmem:[#allocation7 + $0xd0] sm:$0xff]
    %v4676 = vld [vmem:[#allocation7 + $0xd8] sm:$0xff]
    %v4677 = vld [vmem:[#allocation7 + $0xe0] sm:$0xff]
    %v4678 = vld [vmem:[#allocation7 + $0xe8] sm:$0xff]
    %v4679 = vld [vmem:[#allocation7 + $0xf0] sm:$0xff]
    %v4680 = vld [vmem:[#allocation7 + $0xf8] sm:$0xff]
    %v4681 = vld [vmem:[#allocation7 + $0x100] sm:$0xff]
    %v4682 = vld [vmem:[#allocation7 + $0x108] sm:$0xff]
    %v4683 = vld [vmem:[#allocation7 + $0x110] sm:$0xff]
    %v4684 = vld [vmem:[#allocation7 + $0x118] sm:$0xff]
    %v4685 = vld [vmem:[#allocation7 + $0x120] sm:$0xff]
    %v4686 = vld [vmem:[#allocation7 + $0x128] sm:$0xff]
    %v4687 = vld [vmem:[#allocation7 + $0x130] sm:$0xff]
    %v4688 = vld [vmem:[#allocation7 + $0x138] sm:$0xff]
    %v4689 = vld [vmem:[#allocation7 + $0x140] sm:$0xff]
    %v4690 = vld [vmem:[#allocation7 + $0x148] sm:$0xff]
    %v4691 = vld [vmem:[#allocation7 + $0x150] sm:$0xff]
    %v4692 = vld [vmem:[#allocation7 + $0x158] sm:$0xff]
    %v4693 = vld [vmem:[#allocation7 + $0x160] sm:$0xff]
    %v4694 = vld [vmem:[#allocation7 + $0x168] sm:$0xff]
    %v4695 = vld [vmem:[#allocation7 + $0x170] sm:$0xff]
    %v4696 = vld [vmem:[#allocation7 + $0x178] sm:$0xff]
    %v4697 = vld [vmem:[#allocation7 + $0x180] sm:$0xff]
    %v4698 = vld [vmem:[#allocation7 + $0x188] sm:$0xff]
    %v4699 = vld [vmem:[#allocation7 + $0x190] sm:$0xff]
    %v4700 = vld [vmem:[#allocation7 + $0x198] sm:$0xff]
    %v4701 = vld [vmem:[#allocation7 + $0x1a0] sm:$0xff]
    %v4702 = vld [vmem:[#allocation7 + $0x1a8] sm:$0xff]
    %v4703 = vld [vmem:[#allocation7 + $0x1b0] sm:$0xff]
    %v4704 = vld [vmem:[#allocation7 + $0x1b8] sm:$0xff]
    %v4705 = vld [vmem:[#allocation7 + $0x1c0] sm:$0xff]
    %v4706 = vld [vmem:[#allocation7 + $0x1c8] sm:$0xff]
    %v4707 = vld [vmem:[#allocation7 + $0x1d0] sm:$0xff]
    %v4708 = vld [vmem:[#allocation7 + $0x1d8] sm:$0xff]
    %v4709 = vld [vmem:[#allocation7 + $0x1e0] sm:$0xff]
    %v4710 = vld [vmem:[#allocation7 + $0x1e8] sm:$0xff]
    %v4711 = vld [vmem:[#allocation7 + $0x1f0] sm:$0xff]
    %v4712 = vld [vmem:[#allocation7 + $0x1f8] sm:$0xff]
    %v4713 = vld [vmem:[#allocation7 + $0x200] sm:$0xff]
    %v4714 = vld [vmem:[#allocation7 + $0x208] sm:$0xff]
    %v4715 = vld [vmem:[#allocation7 + $0x210] sm:$0xff]
    %v4716 = vld [vmem:[#allocation7 + $0x218] sm:$0xff]
    %v4717 = vld [vmem:[#allocation7 + $0x220] sm:$0xff]
    %v4718 = vld [vmem:[#allocation7 + $0x228] sm:$0xff]
    %v4719 = vld [vmem:[#allocation7 + $0x230] sm:$0xff]
    %v4720 = vld [vmem:[#allocation7 + $0x238] sm:$0xff]
    %v4721 = vld [vmem:[#allocation7 + $0x240] sm:$0xff]
    %v4722 = vld [vmem:[#allocation7 + $0x248] sm:$0xff]
    %v4723 = vld [vmem:[#allocation7 + $0x250] sm:$0xff]
    %v4724 = vld [vmem:[#allocation7 + $0x258] sm:$0xff]
    %v4725 = vld [vmem:[#allocation7 + $0x260] sm:$0xff]
    %v4726 = vld [vmem:[#allocation7 + $0x268] sm:$0xff]
    %v4727 = vld [vmem:[#allocation7 + $0x270] sm:$0xff]
    %v4728 = vld [vmem:[#allocation7 + $0x278] sm:$0xff]
    %v4729 = vld [vmem:[#allocation7 + $0x280] sm:$0xff]
    %v4730 = vld [vmem:[#allocation7 + $0x288] sm:$0xff]
    %v4731 = vld [vmem:[#allocation7 + $0x290] sm:$0xff]
    %v4732 = vld [vmem:[#allocation7 + $0x298] sm:$0xff]
    %v4733 = vld [vmem:[#allocation7 + $0x2a0] sm:$0xff]
    %v4734 = vld [vmem:[#allocation7 + $0x2a8] sm:$0xff]
    %v4735 = vld [vmem:[#allocation7 + $0x2b0] sm:$0xff]
    %v4736 = vld [vmem:[#allocation7 + $0x2b8] sm:$0xff]
    %v4737 = vld [vmem:[#allocation7 + $0x2c0] sm:$0xff]
    %v4738 = vld [vmem:[#allocation7 + $0x2c8] sm:$0xff]
    %v4739 = vld [vmem:[#allocation7 + $0x2d0] sm:$0xff]
    %v4740 = vld [vmem:[#allocation7 + $0x2d8] sm:$0xff]
    %v4741 = vld [vmem:[#allocation7 + $0x2e0] sm:$0xff]
    %v4742 = vld [vmem:[#allocation7 + $0x2e8] sm:$0xff]
    %v4743 = vld [vmem:[#allocation7 + $0x2f0] sm:$0xff]
    %v4744 = vld [vmem:[#allocation7 + $0x2f8] sm:$0xff]
    %v4745 = vld [vmem:[#allocation7 + $0x300] sm:$0xff]
    %v4746 = vld [vmem:[#allocation7 + $0x308] sm:$0xff]
    %v4747 = vld [vmem:[#allocation7 + $0x310] sm:$0xff]
    %v4748 = vld [vmem:[#allocation7 + $0x318] sm:$0xff]
    %v4749 = vld [vmem:[#allocation7 + $0x320] sm:$0xff]
    %v4750 = vld [vmem:[#allocation7 + $0x328] sm:$0xff]
    %v4751 = vld [vmem:[#allocation7 + $0x330] sm:$0xff]
    %v4752 = vld [vmem:[#allocation7 + $0x338] sm:$0xff]
    %v4753 = vld [vmem:[#allocation7 + $0x340] sm:$0xff]
    %v4754 = vld [vmem:[#allocation7 + $0x348] sm:$0xff]
    %v4755 = vld [vmem:[#allocation7 + $0x350] sm:$0xff]
    %v4756 = vld [vmem:[#allocation7 + $0x358] sm:$0xff]
    %v4757 = vld [vmem:[#allocation7 + $0x360] sm:$0xff]
    %v4758 = vld [vmem:[#allocation7 + $0x368] sm:$0xff]
    %v4759 = vld [vmem:[#allocation7 + $0x370] sm:$0xff]
    %v4760 = vld [vmem:[#allocation7 + $0x378] sm:$0xff]
    %v4761 = vld [vmem:[#allocation7 + $0x380] sm:$0xff]
    %v4762 = vld [vmem:[#allocation7 + $0x388] sm:$0xff]
    %v4763 = vld [vmem:[#allocation7 + $0x390] sm:$0xff]
    %v4764 = vld [vmem:[#allocation7 + $0x398] sm:$0xff]
    %v4765 = vld [vmem:[#allocation7 + $0x3a0] sm:$0xff]
    %v4766 = vld [vmem:[#allocation7 + $0x3a8] sm:$0xff]
    %v4767 = vld [vmem:[#allocation7 + $0x3b0] sm:$0xff]
    %v4768 = vld [vmem:[#allocation7 + $0x3b8] sm:$0xff]
    %v4769 = vld [vmem:[#allocation7 + $0x3c0] sm:$0xff]
    %v4770 = vld [vmem:[#allocation7 + $0x3c8] sm:$0xff]
    %v4771 = vld [vmem:[#allocation7 + $0x3d0] sm:$0xff]
    %v4772 = vld [vmem:[#allocation7 + $0x3d8] sm:$0xff]
    %v4773 = vld [vmem:[#allocation7 + $0x3e0] sm:$0xff]
    %v4774 = vld [vmem:[#allocation7 + $0x3e8] sm:$0xff]
    %v4775 = vld [vmem:[#allocation7 + $0x3f0] sm:$0xff]
    %v4776 = vld [vmem:[#allocation7 + $0x3f8] sm:$0xff]
    %v4777 = vld [vmem:[#allocation8 + $0x3] sm:$0x1]
    %v4778 = vlaneseq
    %v4779 = vshrl.u32 %v4778, 7
    %v4780 = vsub.s32 0, %v4779
    %v4781 = vrot.slane %v4777, %v4780
    %4782 = vmatprep.subr.mxu0 0.0
    %4783 = vmatpush1.msra.mxu0 %v4649
    %4784 = vmatprep.subr.mxu0 0.0
    %4785 = vmatpush1.msra.mxu0 %v4650
    %4786 = vmatprep.subr.mxu0 0.0
    %4787 = vmatpush1.msra.mxu0 %v4651
    %4788 = vmatprep.subr.mxu0 0.0
    %4789 = vmatpush1.msra.mxu0 %v4652
    %4790 = vmatprep.subr.mxu0 0.0
    %4791 = vmatpush1.msra.mxu0 %v4653
    %4792 = vmatprep.subr.mxu0 0.0
    %4793 = vmatpush1.msra.mxu0 %v4654
    %4794 = vmatprep.subr.mxu0 0.0
    %4795 = vmatpush1.msra.mxu0 %v4655
    %4796 = vmatprep.subr.mxu0 0.0
    %4797 = vmatpush1.msra.mxu0 %v4656
    %4798 = vmatprep.subr.mxu0 0.0
    %4799 = vmatpush1.msra.mxu0 %v4657
    %4800 = vmatprep.subr.mxu0 0.0
    %4801 = vmatpush1.msra.mxu0 %v4658
    %4802 = vmatprep.subr.mxu0 0.0
    %4803 = vmatpush1.msra.mxu0 %v4659
    %4804 = vmatprep.subr.mxu0 0.0
    %4805 = vmatpush1.msra.mxu0 %v4660
    %4806 = vmatprep.subr.mxu0 0.0
    %4807 = vmatpush1.msra.mxu0 %v4661
    %4808 = vmatprep.subr.mxu0 0.0
    %4809 = vmatpush1.msra.mxu0 %v4662
    %4810 = vmatprep.subr.mxu0 0.0
    %4811 = vmatpush1.msra.mxu0 %v4663
    %4812 = vmatprep.subr.mxu0 0.0
    %4813 = vmatpush1.msra.mxu0 %v4664
    %4814 = vmatprep.subr.mxu0 0.0
    %4815 = vmatpush1.msra.mxu0 %v4665
    %4816 = vmatprep.subr.mxu0 0.0
    %4817 = vmatpush1.msra.mxu0 %v4666
    %4818 = vmatprep.subr.mxu0 0.0
    %4819 = vmatpush1.msra.mxu0 %v4667
    %4820 = vmatprep.subr.mxu0 0.0
    %4821 = vmatpush1.msra.mxu0 %v4668
    %4822 = vmatprep.subr.mxu0 0.0
    %4823 = vmatpush1.msra.mxu0 %v4669
    %4824 = vmatprep.subr.mxu0 0.0
    %4825 = vmatpush1.msra.mxu0 %v4670
    %4826 = vmatprep.subr.mxu0 0.0
    %4827 = vmatpush1.msra.mxu0 %v4671
    %4828 = vmatprep.subr.mxu0 0.0
    %4829 = vmatpush1.msra.mxu0 %v4672
    %4830 = vmatprep.subr.mxu0 0.0
    %4831 = vmatpush1.msra.mxu0 %v4673
    %4832 = vmatprep.subr.mxu0 0.0
    %4833 = vmatpush1.msra.mxu0 %v4674
    %4834 = vmatprep.subr.mxu0 0.0
    %4835 = vmatpush1.msra.mxu0 %v4675
    %4836 = vmatprep.subr.mxu0 0.0
    %4837 = vmatpush1.msra.mxu0 %v4676
    %4838 = vmatprep.subr.mxu0 0.0
    %4839 = vmatpush1.msra.mxu0 %v4677
    %4840 = vmatprep.subr.mxu0 0.0
    %4841 = vmatpush1.msra.mxu0 %v4678
    %4842 = vmatprep.subr.mxu0 0.0
    %4843 = vmatpush1.msra.mxu0 %v4679
    %4844 = vmatprep.subr.mxu0 0.0
    %4845 = vmatpush1.msra.mxu0 %v4680
    %4846 = vmatprep.mubr.f32.mxu0 %v4642
    %4847 = vmatmul.mubr.f32.gmra.mrb[0].mxu0 %v4641
    %v4848 = vpop.f32.mrb[0].mxu0
    %v4849 = vadd.f32 %v4781, %v4848
    %v4850 = vpop.f32.mrb[0].mxu0
    %4851 = vdwg.mxu0
    %4852 = vmatprep.subr.mxu0 0.0
    %4853 = vmatpush1.msra.mxu0 %v4681
    %4854 = vmatprep.subr.mxu0 0.0
    %4855 = vmatpush1.msra.mxu0 %v4682
    %4856 = vmatprep.subr.mxu0 0.0
    %4857 = vmatpush1.msra.mxu0 %v4683
    %4858 = vmatprep.subr.mxu0 0.0
    %4859 = vmatpush1.msra.mxu0 %v4684
    %4860 = vmatprep.subr.mxu0 0.0
    %4861 = vmatpush1.msra.mxu0 %v4685
    %4862 = vmatprep.subr.mxu0 0.0
    %4863 = vmatpush1.msra.mxu0 %v4686
    %4864 = vmatprep.subr.mxu0 0.0
    %4865 = vmatpush1.msra.mxu0 %v4687
    %4866 = vmatprep.subr.mxu0 0.0
    %4867 = vmatpush1.msra.mxu0 %v4688
    %4868 = vmatprep.subr.mxu0 0.0
    %4869 = vmatpush1.msra.mxu0 %v4689
    %4870 = vmatprep.subr.mxu0 0.0
    %4871 = vmatpush1.msra.mxu0 %v4690
    %4872 = vmatprep.subr.mxu0 0.0
    %4873 = vmatpush1.msra.mxu0 %v4691
    %4874 = vmatprep.subr.mxu0 0.0
    %4875 = vmatpush1.msra.mxu0 %v4692
    %4876 = vmatprep.subr.mxu0 0.0
    %4877 = vmatpush1.msra.mxu0 %v4693
    %4878 = vmatprep.subr.mxu0 0.0
    %4879 = vmatpush1.msra.mxu0 %v4694
    %4880 = vmatprep.subr.mxu0 0.0
    %4881 = vmatpush1.msra.mxu0 %v4695
    %4882 = vmatprep.subr.mxu0 0.0
    %4883 = vmatpush1.msra.mxu0 %v4696
    %4884 = vmatprep.subr.mxu0 0.0
    %4885 = vmatpush1.msra.mxu0 %v4697
    %4886 = vmatprep.subr.mxu0 0.0
    %4887 = vmatpush1.msra.mxu0 %v4698
    %4888 = vmatprep.subr.mxu0 0.0
    %4889 = vmatpush1.msra.mxu0 %v4699
    %4890 = vmatprep.subr.mxu0 0.0
    %4891 = vmatpush1.msra.mxu0 %v4700
    %4892 = vmatprep.subr.mxu0 0.0
    %4893 = vmatpush1.msra.mxu0 %v4701
    %4894 = vmatprep.subr.mxu0 0.0
    %4895 = vmatpush1.msra.mxu0 %v4702
    %4896 = vmatprep.subr.mxu0 0.0
    %4897 = vmatpush1.msra.mxu0 %v4703
    %4898 = vmatprep.subr.mxu0 0.0
    %4899 = vmatpush1.msra.mxu0 %v4704
    %4900 = vmatprep.subr.mxu0 0.0
    %4901 = vmatpush1.msra.mxu0 %v4705
    %4902 = vmatprep.subr.mxu0 0.0
    %4903 = vmatpush1.msra.mxu0 %v4706
    %4904 = vmatprep.subr.mxu0 0.0
    %4905 = vmatpush1.msra.mxu0 %v4707
    %4906 = vmatprep.subr.mxu0 0.0
    %4907 = vmatpush1.msra.mxu0 %v4708
    %4908 = vmatprep.subr.mxu0 0.0
    %4909 = vmatpush1.msra.mxu0 %v4709
    %4910 = vmatprep.subr.mxu0 0.0
    %4911 = vmatpush1.msra.mxu0 %v4710
    %4912 = vmatprep.subr.mxu0 0.0
    %4913 = vmatpush1.msra.mxu0 %v4711
    %4914 = vmatprep.subr.mxu0 0.0
    %4915 = vmatpush1.msra.mxu0 %v4712
    %4916 = vmatprep.mubr.f32.mxu0 %v4644
    %4917 = vmatmul.mubr.f32.gmra.mrb[0].mxu0 %v4643
    %v4918 = vpop.f32.mrb[0].mxu0
    %v4919 = vadd.f32 %v4849, %v4918
    %v4920 = vpop.f32.mrb[0].mxu0
    %4921 = vdwg.mxu0
    %4922 = vmatprep.subr.mxu0 0.0
    %4923 = vmatpush1.msra.mxu0 %v4713
    %4924 = vmatprep.subr.mxu0 0.0
    %4925 = vmatpush1.msra.mxu0 %v4714
    %4926 = vmatprep.subr.mxu0 0.0
    %4927 = vmatpush1.msra.mxu0 %v4715
    %4928 = vmatprep.subr.mxu0 0.0
    %4929 = vmatpush1.msra.mxu0 %v4716
    %4930 = vmatprep.subr.mxu0 0.0
    %4931 = vmatpush1.msra.mxu0 %v4717
    %4932 = vmatprep.subr.mxu0 0.0
    %4933 = vmatpush1.msra.mxu0 %v4718
    %4934 = vmatprep.subr.mxu0 0.0
    %4935 = vmatpush1.msra.mxu0 %v4719
    %4936 = vmatprep.subr.mxu0 0.0
    %4937 = vmatpush1.msra.mxu0 %v4720
    %4938 = vmatprep.subr.mxu0 0.0
    %4939 = vmatpush1.msra.mxu0 %v4721
    %4940 = vmatprep.subr.mxu0 0.0
    %4941 = vmatpush1.msra.mxu0 %v4722
    %4942 = vmatprep.subr.mxu0 0.0
    %4943 = vmatpush1.msra.mxu0 %v4723
    %4944 = vmatprep.subr.mxu0 0.0
    %4945 = vmatpush1.msra.mxu0 %v4724
    %4946 = vmatprep.subr.mxu0 0.0
    %4947 = vmatpush1.msra.mxu0 %v4725
    %4948 = vmatprep.subr.mxu0 0.0
    %4949 = vmatpush1.msra.mxu0 %v4726
    %4950 = vmatprep.subr.mxu0 0.0
    %4951 = vmatpush1.msra.mxu0 %v4727
    %4952 = vmatprep.subr.mxu0 0.0
    %4953 = vmatpush1.msra.mxu0 %v4728
    %4954 = vmatprep.subr.mxu0 0.0
    %4955 = vmatpush1.msra.mxu0 %v4729
    %4956 = vmatprep.subr.mxu0 0.0
    %4957 = vmatpush1.msra.mxu0 %v4730
    %4958 = vmatprep.subr.mxu0 0.0
    %4959 = vmatpush1.msra.mxu0 %v4731
    %4960 = vmatprep.subr.mxu0 0.0
    %4961 = vmatpush1.msra.mxu0 %v4732
    %4962 = vmatprep.subr.mxu0 0.0
    %4963 = vmatpush1.msra.mxu0 %v4733
    %4964 = vmatprep.subr.mxu0 0.0
    %4965 = vmatpush1.msra.mxu0 %v4734
    %4966 = vmatprep.subr.mxu0 0.0
    %4967 = vmatpush1.msra.mxu0 %v4735
    %4968 = vmatprep.subr.mxu0 0.0
    %4969 = vmatpush1.msra.mxu0 %v4736
    %4970 = vmatprep.subr.mxu0 0.0
    %4971 = vmatpush1.msra.mxu0 %v4737
    %4972 = vmatprep.subr.mxu0 0.0
    %4973 = vmatpush1.msra.mxu0 %v4738
    %4974 = vmatprep.subr.mxu0 0.0
    %4975 = vmatpush1.msra.mxu0 %v4739
    %4976 = vmatprep.subr.mxu0 0.0
    %4977 = vmatpush1.msra.mxu0 %v4740
    %4978 = vmatprep.subr.mxu0 0.0
    %4979 = vmatpush1.msra.mxu0 %v4741
    %4980 = vmatprep.subr.mxu0 0.0
    %4981 = vmatpush1.msra.mxu0 %v4742
    %4982 = vmatprep.subr.mxu0 0.0
    %4983 = vmatpush1.msra.mxu0 %v4743
    %4984 = vmatprep.subr.mxu0 0.0
    %4985 = vmatpush1.msra.mxu0 %v4744
    %4986 = vmatprep.mubr.f32.mxu0 %v4646
    %4987 = vmatmul.mubr.f32.gmra.mrb[0].mxu0 %v4645
    %v4988 = vpop.f32.mrb[0].mxu0
    %v4989 = vadd.f32 %v4919, %v4988
    %v4990 = vpop.f32.mrb[0].mxu0
    %4991 = vdwg.mxu0
    %4992 = vmatprep.subr.mxu0 0.0
    %4993 = vmatpush1.msra.mxu0 %v4745
    %4994 = vmatprep.subr.mxu0 0.0
    %4995 = vmatpush1.msra.mxu0 %v4746
    %4996 = vmatprep.subr.mxu0 0.0
    %4997 = vmatpush1.msra.mxu0 %v4747
    %4998 = vmatprep.subr.mxu0 0.0
    %4999 = vmatpush1.msra.mxu0 %v4748
    %5000 = vmatprep.subr.mxu0 0.0
    %5001 = vmatpush1.msra.mxu0 %v4749
    %5002 = vmatprep.subr.mxu0 0.0
    %5003 = vmatpush1.msra.mxu0 %v4750
    %5004 = vmatprep.subr.mxu0 0.0
    %5005 = vmatpush1.msra.mxu0 %v4751
    %5006 = vmatprep.subr.mxu0 0.0
    %5007 = vmatpush1.msra.mxu0 %v4752
    %5008 = vmatprep.subr.mxu0 0.0
    %5009 = vmatpush1.msra.mxu0 %v4753
    %5010 = vmatprep.subr.mxu0 0.0
    %5011 = vmatpush1.msra.mxu0 %v4754
    %5012 = vmatprep.subr.mxu0 0.0
    %5013 = vmatpush1.msra.mxu0 %v4755
    %5014 = vmatprep.subr.mxu0 0.0
    %5015 = vmatpush1.msra.mxu0 %v4756
    %5016 = vmatprep.subr.mxu0 0.0
    %5017 = vmatpush1.msra.mxu0 %v4757
    %5018 = vmatprep.subr.mxu0 0.0
    %5019 = vmatpush1.msra.mxu0 %v4758
    %5020 = vmatprep.subr.mxu0 0.0
    %5021 = vmatpush1.msra.mxu0 %v4759
    %5022 = vmatprep.subr.mxu0 0.0
    %5023 = vmatpush1.msra.mxu0 %v4760
    %5024 = vmatprep.subr.mxu0 0.0
    %5025 = vmatpush1.msra.mxu0 %v4761
    %5026 = vmatprep.subr.mxu0 0.0
    %5027 = vmatpush1.msra.mxu0 %v4762
    %5028 = vmatprep.subr.mxu0 0.0
    %5029 = vmatpush1.msra.mxu0 %v4763
    %5030 = vmatprep.subr.mxu0 0.0
    %5031 = vmatpush1.msra.mxu0 %v4764
    %5032 = vmatprep.subr.mxu0 0.0
    %5033 = vmatpush1.msra.mxu0 %v4765
    %5034 = vmatprep.subr.mxu0 0.0
    %5035 = vmatpush1.msra.mxu0 %v4766
    %5036 = vmatprep.subr.mxu0 0.0
    %5037 = vmatpush1.msra.mxu0 %v4767
    %5038 = vmatprep.subr.mxu0 0.0
    %5039 = vmatpush1.msra.mxu0 %v4768
    %5040 = vmatprep.subr.mxu0 0.0
    %5041 = vmatpush1.msra.mxu0 %v4769
    %5042 = vmatprep.subr.mxu0 0.0
    %5043 = vmatpush1.msra.mxu0 %v4770
    %5044 = vmatprep.subr.mxu0 0.0
    %5045 = vmatpush1.msra.mxu0 %v4771
    %5046 = vmatprep.subr.mxu0 0.0
    %5047 = vmatpush1.msra.mxu0 %v4772
    %5048 = vmatprep.subr.mxu0 0.0
    %5049 = vmatpush1.msra.mxu0 %v4773
    %5050 = vmatprep.subr.mxu0 0.0
    %5051 = vmatpush1.msra.mxu0 %v4774
    %5052 = vmatprep.subr.mxu0 0.0
    %5053 = vmatpush1.msra.mxu0 %v4775
    %5054 = vmatprep.subr.mxu0 0.0
    %5055 = vmatpush1.msra.mxu0 %v4776
    %5056 = vmatprep.mubr.f32.mxu0 %v4648
    %5057 = vmatmul.mubr.f32.gmra.mrb[0].mxu0 %v4647
    %v5058 = vpop.f32.mrb[0].mxu0
    %v5059 = vadd.f32 %v4989, %v5058
    %v5060 = vpop.f32.mrb[0].mxu0
    %5061 = vdwg.mxu0
    %5062 = vst [vmem:[#allocation10] sm:$0xf] %v5059
    // Predicated region
    $region34: #{tpu_custom_call.1} parent=1 // pred_check
      _
    $region35: #{tpu_custom_call.1} parent=1 // pred_check_branch
      %5064 = sbr.rel (0) target = $region37
    $region36: #{tpu_custom_call.1} parent=1 // pred_region
      %s5066 = ssub.s32 64, 64
      %5067 = vsyncadd [#allocation4], %s5066
      %s5069 = sshll.u32 [#allocation10], 4
      %s5070 = int_to_ptr.vmem [resolvable:$true] %s5069
      %5072 = dma.vmem_to_hbm [thread:$0]  %s5070, 64, %s4, [#allocation4]
    $region37: #{tpu_custom_call.1} parent=1 // pred_fallthru
      _
    // Predicated region
    $region38: #{tpu_custom_call.1} parent=1 // pred_check
      _
    $region39: #{tpu_custom_call.1} parent=1 // pred_check_branch
      %5074 = sbr.rel (0) target = $region41
    $region40: #{tpu_custom_call.1} parent=1 // pred_region
      %5075 = dma.done [#allocation4], 64
    $region41: #{tpu_custom_call.1} parent=1 // pred_fallthru
      _
    %5076 = vsyncpa [#allocation3], 1
    %5077 = vsyncpa [#allocation6], 1
    %5078 = vsyncpa [#allocation9], 1
    %5079 = vsyncpa [#allocation4], 1

</llo_original>
